<compile_context>
chip_gen: v5e
topology: v5e:2x2
jax: 0.10.0
libtpu: 0.0.40
codegen_flags: <defaults>
</compile_context>

<pallas_src>
from functools import partial

import jax
import jax.numpy as jnp
from jax import lax
from jax.experimental import pallas as pl
from jax.experimental.pallas import tpu as pltpu

_LANES = 128                                   # padded 11x11 board (121) + 7 zero lanes
_OFFSETS = (-12, -11, -10, -1, 0, 1, 10, 11, 12)  # (dh-1)*11 + (dw-1), s = dh*3+dw
_NEG_INF = -1e30


# ----------------------------------------------------------------------------
# Fused kernel: whole forward pass, activations never leave VMEM.
# ----------------------------------------------------------------------------
def _gocnn_kernel(x_ref, mask_ref, w6_ref, b6_ref, w32_ref, b32_ref,
                  w43_ref, b43_ref, wh_ref, bh_ref,
                  w1_ref, b1_ref, w2_ref, b2_ref,
                  wp0_ref, wp1_ref, bp_ref, o_ref, *, n_batch):
    f32 = jnp.float32
    bf16 = jnp.bfloat16
    mask = mask_ref[...]                       # (1, 128) interior-lane mask
    x_raw = x_ref[...]                         # (Cin*N, 128), zero padded

    def conv3x3(act, w_ref, b_ref):
        """3x3 conv = 9 lane-rolled bf16 matmuls; BN scale folded in w, shift in b."""
        co_rows = w_ref.shape[1]
        acc = jnp.zeros((co_rows, _LANES), f32)
        for s, off in enumerate(_OFFSETS):
            shifted = act if off == 0 else pltpu.roll(act, shift=(-off) % _LANES, axis=1)
            acc = acc + jnp.dot(w_ref[s], shifted.astype(bf16),
                                preferred_element_type=f32)
        return acc + b_ref[...]

    def relu_mask(y):
        # relu + re-zero padding lanes so the next conv sees clean borders (f32 epilogue)
        return jnp.maximum(y, 0.0) * mask

    # --- trunk ---------------------------------------------------------------
    a1 = relu_mask(conv3x3(x_raw, w6_ref, b6_ref))                        # (32N,128)
    a2 = relu_mask(jnp.concatenate([conv3x3(a1, w32_ref, b32_ref),
                                    x_raw], axis=0))                       # (43N,128)
    a3 = relu_mask(conv3x3(a2, w43_ref, b43_ref))                         # (32N,128)
    a4 = relu_mask(jnp.concatenate([conv3x3(a3, w32_ref, b32_ref),
                                    x_raw], axis=0))                       # (43N,128)

    # --- fused 1x1 heads: channels = [value, policy0, policy1] ---------------
    h = jnp.dot(wh_ref[...], a4.astype(bf16),
                preferred_element_type=f32) + bh_ref[...]
    h = relu_mask(h)                                                       # (3N,128)

    n = n_batch
    vfeat = h[0:n, :]                                                      # (N,128)
    p0 = h[n:2 * n, :]
    p1 = h[2 * n:3 * n, :]

    # --- value head: fc(81->256) via position-scattered weights, relu, fc, tanh
    v1 = jnp.maximum(
        jnp.dot(vfeat.astype(bf16), w1_ref[...],
                preferred_element_type=f32) + b1_ref[...], 0.0)            # (N,256)
    vfull = jnp.dot(v1.astype(bf16), w2_ref[...],
                    preferred_element_type=f32) + b2_ref[...]              # (N,128)
    value = jnp.tanh(vfull[:, 0:1])                                        # (N,1)

    # --- policy head: fc(162->82) split per channel, softmax over cols < 82
    logits = (jnp.dot(p0.astype(bf16), wp0_ref[...], preferred_element_type=f32)
              + jnp.dot(p1.astype(bf16), wp1_ref[...], preferred_element_type=f32)
              + bp_ref[...])                                               # (N,128)
    col = lax.broadcasted_iota(jnp.int32, logits.shape, 1)
    logits = jnp.where(col < 82, logits, _NEG_INF)
    m = jnp.max(logits, axis=-1, keepdims=True)
    e = jnp.exp(logits - m)
    denom = jnp.sum(e, axis=-1, keepdims=True)
    policy = e * pl.reciprocal(denom, approx=True)                         # (N,128)

    # packed lane-dense output slab: cols 0:82 = policy, col 82 = value
    o_ref[...] = policy + (col == 82).astype(f32) * value


# ----------------------------------------------------------------------------
# Wrapper-side parameter folding / layout plumbing (tiny, one-time)
# ----------------------------------------------------------------------------
def _bn_fold(bn, conv_bias, eps=1e-5):
    scale = bn["gamma"] * lax.rsqrt(bn["var"] + eps)
    shift = scale * (conv_bias - bn["mean"]) + bn["beta"]
    return scale, shift


def _kron_eye(w2d, n):
    """kron(w2d, I_n): (A,B) -> (A*n, B*n), row index = a*n + batch."""
    a, b = w2d.shape
    return jnp.einsum("ab,nm->anbm", w2d,
                      jnp.eye(n, dtype=w2d.dtype)).reshape(a * n, b * n)


def _prep_conv(w, b, bn, n):
    """Torch (Co,Ci,3,3) conv + shared BN -> (9, Co*n, Ci*n) bf16 and (Co*n,1) f32."""
    scale, shift = _bn_fold(bn, b)
    wf = w * scale[:, None, None, None]                        # fold BN scale
    co, ci = w.shape[0], w.shape[1]
    w9 = jnp.transpose(wf, (2, 3, 0, 1)).reshape(9, co, ci)    # s = dh*3 + dw
    eye = jnp.eye(n, dtype=w.dtype)
    wk = jnp.einsum("sab,nm->sanbm", w9, eye).reshape(9, co * n, ci * n)
    brow = jnp.repeat(shift, n).reshape(co * n, 1)
    return wk.astype(jnp.bfloat16), brow.astype(jnp.float32)


def _prep_kernel_inputs(params, n):
    f32, bf16 = jnp.float32, jnp.bfloat16
    # board position (i,j) -> padded flat index (i+1)*11 + (j+1)
    ii = jnp.arange(81) // 9
    jj = jnp.arange(81) % 9
    pos = (ii + 1) * 11 + (jj + 1)

    mask = jnp.zeros((11, 11), f32).at[1:10, 1:10].set(1.0)
    mask = jnp.pad(mask.reshape(1, 121), ((0, 0), (0, _LANES - 121)))

    w6, b6 = _prep_conv(params["conv6_w"], params["conv6_b"], params["bn32"], n)
    w32, b32 = _prep_conv(params["conv32_w"], params["conv32_b"], params["bn32"], n)
    w43, b43 = _prep_conv(params["conv43_w"], params["conv43_b"], params["bn32"], n)

    sv, hv = _bn_fold(params["bnv"], params["convv_b"])
    sp, hp = _bn_fold(params["bnp"], params["convp_b"])
    wh = jnp.concatenate([params["convv_w"] * sv[:, None],
                          params["convp_w"] * sp[:, None]], axis=0)     # (3,43)
    whk = _kron_eye(wh, n).astype(bf16)                                 # (3n,43n)
    bh = jnp.repeat(jnp.concatenate([hv, hp]), n).reshape(3 * n, 1).astype(f32)

    w1p = jnp.zeros((_LANES, 256), f32).at[pos].set(params["fcv1_w"]).astype(bf16)
    b1 = params["fcv1_b"].reshape(1, 256).astype(f32)
    w2p = jnp.pad(params["fcv2_w"], ((0, 0), (0, _LANES - 1))).astype(bf16)
    b2p = jnp.pad(params["fcv2_b"].reshape(1, 1),
                  ((0, 0), (0, _LANES - 1))).astype(f32)

    wp0 = jnp.zeros((_LANES, _LANES), f32).at[pos].set(
        jnp.pad(params["fcp_w"][:81], ((0, 0), (0, _LANES - 82)))).astype(bf16)
    wp1 = jnp.zeros((_LANES, _LANES), f32).at[pos].set(
        jnp.pad(params["fcp_w"][81:], ((0, 0), (0, _LANES - 82)))).astype(bf16)
    bp = jnp.pad(params["fcp_b"].reshape(1, 82),
                 ((0, 0), (0, _LANES - 82))).astype(f32)

    return (mask, w6, b6, w32, b32, w43, b43, whk, bh,
            w1p, b1, w2p, b2p, wp0, wp1, bp)


def _full_spec(shape):
    nd = len(shape)
    return pl.BlockSpec(shape, lambda i, _nd=nd: (0,) * _nd)


# ----------------------------------------------------------------------------
# Forward pass (mirrors GoCNN.forward), single pallas_call
# ----------------------------------------------------------------------------
def gocnn_forward(params, x_nchw):
    N, C, H, W = x_nchw.shape
    assert (H, W) == (9, 9)

    # input -> channel-major padded-board layout: (C*N, 128)
    xp = jnp.pad(x_nchw.astype(jnp.float32), ((0, 0), (0, 0), (1, 1), (1, 1)))
    x_in = jnp.transpose(xp, (1, 0, 2, 3)).reshape(C * N, 121)
    x_in = jnp.pad(x_in, ((0, 0), (0, _LANES - 121)))

    inputs = (x_in,) + _prep_kernel_inputs(params, N)

    out = pl.pallas_call(
        partial(_gocnn_kernel, n_batch=N),
        out_shape=jax.ShapeDtypeStruct((N, _LANES), jnp.float32),
        grid=(1,),
        in_specs=[_full_spec(a.shape) for a in inputs],
        out_specs=_full_spec((N, _LANES)),
        compiler_params=pltpu.CompilerParams(
            dimension_semantics=("arbitrary",)),
    )(*inputs)

    policy = out[:, :82]
    value = out[:, 82:83]
    return policy, value


# ----------------------------------------------------------------------------
# Parameters (deterministic synthetic init; shapes follow GoCNN.__init__)
# ----------------------------------------------------------------------------
def init_params(key, nb_channels=11):
    keys = jax.random.split(key, 32)
    it = iter(keys)

    def nrm(shape, s=0.1):
        return s * jax.random.normal(next(it), shape, dtype=jnp.float32)

    def bn(c):
        return dict(gamma=1.0 + nrm((c,)), beta=nrm((c,)),
                    mean=nrm((c,)), var=0.5 + jnp.abs(nrm((c,))))

    p = {}
    p["conv6_w"] = nrm((32, nb_channels, 3, 3)); p["conv6_b"] = nrm((32,))
    p["conv32_w"] = nrm((32, 32, 3, 3));         p["conv32_b"] = nrm((32,))
    p["conv43_w"] = nrm((32, 43, 3, 3));         p["conv43_b"] = nrm((32,))
    p["convv_w"] = nrm((1, 43));                 p["convv_b"] = nrm((1,))   # 1x1 conv
    p["convp_w"] = nrm((2, 43));                 p["convp_b"] = nrm((2,))   # 1x1 conv
    p["bn32"] = bn(32); p["bnv"] = bn(1); p["bnp"] = bn(2)
    p["fcv1_w"] = nrm((81, 256));  p["fcv1_b"] = nrm((256,))
    p["fcv2_w"] = nrm((256, 1));   p["fcv2_b"] = nrm((1,))
    p["fcp_w"] = nrm((162, 82));   p["fcp_b"] = nrm((82,))
    return p


if __name__ == "__main__":
    key = jax.random.PRNGKey(0)
    pkey, xkey = jax.random.split(key)

    nb_channels = 11  # 32 + 11 = 43, matching conv2D43 in the module
    params = init_params(pkey, nb_channels)
    x = jax.random.normal(xkey, (2, nb_channels, 9, 9), dtype=jnp.float32)

    policy, value = jax.jit(gocnn_forward)(params, x)
    jax.block_until_ready((policy, value))

    assert policy.shape == (2, 82), policy.shape
    assert value.shape == (2, 1), value.shape
    # bf16 matmul operands + approx softmax reciprocal -> slightly loose tolerance
    assert jnp.allclose(jnp.sum(policy, axis=1), 1.0, atol=5e-3)
    assert jnp.all(policy >= 0.0)
    assert jnp.all(jnp.abs(value) <= 1.0)
    print("KERNEL_OK")
</pallas_src>

<mosaic_0001>
module attributes {stable_mosaic.version = 11 : i64} {
  func.func @_gocnn_kernel(%arg0: i32, %arg1: memref<22x128xf32, #tpu.memory_space<vmem>>, %arg2: memref<1x128xf32, #tpu.memory_space<vmem>>, %arg3: memref<9x64x22xbf16, #tpu.memory_space<vmem>>, %arg4: memref<64x1xf32, #tpu.memory_space<vmem>>, %arg5: memref<9x64x64xbf16, #tpu.memory_space<vmem>>, %arg6: memref<64x1xf32, #tpu.memory_space<vmem>>, %arg7: memref<9x64x86xbf16, #tpu.memory_space<vmem>>, %arg8: memref<64x1xf32, #tpu.memory_space<vmem>>, %arg9: memref<6x86xbf16, #tpu.memory_space<vmem>>, %arg10: memref<6x1xf32, #tpu.memory_space<vmem>>, %arg11: memref<128x256xbf16, #tpu.memory_space<vmem>>, %arg12: memref<1x256xf32, #tpu.memory_space<vmem>>, %arg13: memref<256x128xbf16, #tpu.memory_space<vmem>>, %arg14: memref<1x128xf32, #tpu.memory_space<vmem>>, %arg15: memref<128x128xbf16, #tpu.memory_space<vmem>>, %arg16: memref<128x128xbf16, #tpu.memory_space<vmem>>, %arg17: memref<1x128xf32, #tpu.memory_space<vmem>>, %arg18: memref<2x128xf32, #tpu.memory_space<vmem>>) attributes {dimension_semantics = [#tpu.dimension_semantics<arbitrary>], iteration_bounds = array<i64: 1>, scalar_prefetch = 0 : i64, scratch_operands = 0 : i64, tpu.core_type = #tpu.core_type<tc>, window_params = [{pipeline_mode = #tpu.pipeline_mode<synchronous>, transform_indices = @transform_0, window_bounds = array<i64: 22, 128>}, {pipeline_mode = #tpu.pipeline_mode<synchronous>, transform_indices = @transform_1, window_bounds = array<i64: 1, 128>}, {pipeline_mode = #tpu.pipeline_mode<synchronous>, transform_indices = @transform_2, window_bounds = array<i64: 9, 64, 22>}, {pipeline_mode = #tpu.pipeline_mode<synchronous>, transform_indices = @transform_3, window_bounds = array<i64: 64, 1>}, {pipeline_mode = #tpu.pipeline_mode<synchronous>, transform_indices = @transform_4, window_bounds = array<i64: 9, 64, 64>}, {pipeline_mode = #tpu.pipeline_mode<synchronous>, transform_indices = @transform_5, window_bounds = array<i64: 64, 1>}, {pipeline_mode = #tpu.pipeline_mode<synchronous>, transform_indices = @transform_6, window_bounds = array<i64: 9, 64, 86>}, {pipeline_mode = #tpu.pipeline_mode<synchronous>, transform_indices = @transform_7, window_bounds = array<i64: 64, 1>}, {pipeline_mode = #tpu.pipeline_mode<synchronous>, transform_indices = @transform_8, window_bounds = array<i64: 6, 86>}, {pipeline_mode = #tpu.pipeline_mode<synchronous>, transform_indices = @transform_9, window_bounds = array<i64: 6, 1>}, {pipeline_mode = #tpu.pipeline_mode<synchronous>, transform_indices = @transform_10, window_bounds = array<i64: 128, 256>}, {pipeline_mode = #tpu.pipeline_mode<synchronous>, transform_indices = @transform_11, window_bounds = array<i64: 1, 256>}, {pipeline_mode = #tpu.pipeline_mode<synchronous>, transform_indices = @transform_12, window_bounds = array<i64: 256, 128>}, {pipeline_mode = #tpu.pipeline_mode<synchronous>, transform_indices = @transform_13, window_bounds = array<i64: 1, 128>}, {pipeline_mode = #tpu.pipeline_mode<synchronous>, transform_indices = @transform_14, window_bounds = array<i64: 128, 128>}, {pipeline_mode = #tpu.pipeline_mode<synchronous>, transform_indices = @transform_15, window_bounds = array<i64: 128, 128>}, {pipeline_mode = #tpu.pipeline_mode<synchronous>, transform_indices = @transform_16, window_bounds = array<i64: 1, 128>}, {pipeline_mode = #tpu.pipeline_mode<synchronous>, transform_indices = @transform_17, window_bounds = array<i64: 2, 128>}]} {
    %c0 = arith.constant 0 : index
    %c0_0 = arith.constant 0 : index
    %0 = vector.load %arg2[%c0, %c0_0] : memref<1x128xf32, #tpu.memory_space<vmem>>, vector<1x128xf32>
    %c0_1 = arith.constant 0 : index
    %c0_2 = arith.constant 0 : index
    %1 = vector.load %arg1[%c0_1, %c0_2] : memref<22x128xf32, #tpu.memory_space<vmem>>, vector<22x128xf32>
    %cst = arith.constant 0.000000e+00 : f32
    %2 = vector.broadcast %cst : f32 to vector<64x128xf32>
    %c12_i32 = arith.constant 12 : i32
    %3 = tpu.dynamic_rotate %1 by %c12_i32 dim 1 : vector<22x128xf32>, i32 -> vector<22x128xf32>
    %c0_3 = arith.constant 0 : index
    %c0_4 = arith.constant 0 : index
    %c0_5 = arith.constant 0 : index
    %4 = vector.load %arg3[%c0_3, %c0_4, %c0_5] : memref<9x64x22xbf16, #tpu.memory_space<vmem>>, vector<1x64x22xbf16>
    %5 = vector.shape_cast %4 : vector<1x64x22xbf16> to vector<64x22xbf16>
    %6 = arith.truncf %3 : vector<22x128xf32> to vector<22x128xbf16>
    %cst_6 = arith.constant dense<0.000000e+00> : vector<64x128xf32>
    %7 = tpu.matmul %5, %6, %cst_6 {dimension_numbers = #tpu.dot_dimension_numbers<[1], [0], [0], [1], [0, 0, 1, 1], [], []>} : vector<64x22xbf16>, vector<22x128xbf16>, vector<64x128xf32> -> vector<64x128xf32>
    %8 = arith.addf %2, %7 : vector<64x128xf32>
    %c11_i32 = arith.constant 11 : i32
    %9 = tpu.dynamic_rotate %1 by %c11_i32 dim 1 : vector<22x128xf32>, i32 -> vector<22x128xf32>
    %c1 = arith.constant 1 : index
    %c0_7 = arith.constant 0 : index
    %c0_8 = arith.constant 0 : index
    %10 = vector.load %arg3[%c1, %c0_7, %c0_8] : memref<9x64x22xbf16, #tpu.memory_space<vmem>>, vector<1x64x22xbf16>
    %11 = vector.shape_cast %10 : vector<1x64x22xbf16> to vector<64x22xbf16>
    %12 = arith.truncf %9 : vector<22x128xf32> to vector<22x128xbf16>
    %cst_9 = arith.constant dense<0.000000e+00> : vector<64x128xf32>
    %13 = tpu.matmul %11, %12, %cst_9 {dimension_numbers = #tpu.dot_dimension_numbers<[1], [0], [0], [1], [0, 0, 1, 1], [], []>} : vector<64x22xbf16>, vector<22x128xbf16>, vector<64x128xf32> -> vector<64x128xf32>
    %14 = arith.addf %8, %13 : vector<64x128xf32>
    %c10_i32 = arith.constant 10 : i32
    %15 = tpu.dynamic_rotate %1 by %c10_i32 dim 1 : vector<22x128xf32>, i32 -> vector<22x128xf32>
    %c2 = arith.constant 2 : index
    %c0_10 = arith.constant 0 : index
    %c0_11 = arith.constant 0 : index
    %16 = vector.load %arg3[%c2, %c0_10, %c0_11] : memref<9x64x22xbf16, #tpu.memory_space<vmem>>, vector<1x64x22xbf16>
    %17 = vector.shape_cast %16 : vector<1x64x22xbf16> to vector<64x22xbf16>
    %18 = arith.truncf %15 : vector<22x128xf32> to vector<22x128xbf16>
    %cst_12 = arith.constant dense<0.000000e+00> : vector<64x128xf32>
    %19 = tpu.matmul %17, %18, %cst_12 {dimension_numbers = #tpu.dot_dimension_numbers<[1], [0], [0], [1], [0, 0, 1, 1], [], []>} : vector<64x22xbf16>, vector<22x128xbf16>, vector<64x128xf32> -> vector<64x128xf32>
    %20 = arith.addf %14, %19 : vector<64x128xf32>
    %c1_i32 = arith.constant 1 : i32
    %21 = tpu.dynamic_rotate %1 by %c1_i32 dim 1 : vector<22x128xf32>, i32 -> vector<22x128xf32>
    %c3 = arith.constant 3 : index
    %c0_13 = arith.constant 0 : index
    %c0_14 = arith.constant 0 : index
    %22 = vector.load %arg3[%c3, %c0_13, %c0_14] : memref<9x64x22xbf16, #tpu.memory_space<vmem>>, vector<1x64x22xbf16>
    %23 = vector.shape_cast %22 : vector<1x64x22xbf16> to vector<64x22xbf16>
    %24 = arith.truncf %21 : vector<22x128xf32> to vector<22x128xbf16>
    %cst_15 = arith.constant dense<0.000000e+00> : vector<64x128xf32>
    %25 = tpu.matmul %23, %24, %cst_15 {dimension_numbers = #tpu.dot_dimension_numbers<[1], [0], [0], [1], [0, 0, 1, 1], [], []>} : vector<64x22xbf16>, vector<22x128xbf16>, vector<64x128xf32> -> vector<64x128xf32>
    %26 = arith.addf %20, %25 : vector<64x128xf32>
    %c4 = arith.constant 4 : index
    %c0_16 = arith.constant 0 : index
    %c0_17 = arith.constant 0 : index
    %27 = vector.load %arg3[%c4, %c0_16, %c0_17] : memref<9x64x22xbf16, #tpu.memory_space<vmem>>, vector<1x64x22xbf16>
    %28 = vector.shape_cast %27 : vector<1x64x22xbf16> to vector<64x22xbf16>
    %29 = arith.truncf %1 : vector<22x128xf32> to vector<22x128xbf16>
    %cst_18 = arith.constant dense<0.000000e+00> : vector<64x128xf32>
    %30 = tpu.matmul %28, %29, %cst_18 {dimension_numbers = #tpu.dot_dimension_numbers<[1], [0], [0], [1], [0, 0, 1, 1], [], []>} : vector<64x22xbf16>, vector<22x128xbf16>, vector<64x128xf32> -> vector<64x128xf32>
    %31 = arith.addf %26, %30 : vector<64x128xf32>
    %c127_i32 = arith.constant 127 : i32
    %32 = tpu.dynamic_rotate %1 by %c127_i32 dim 1 : vector<22x128xf32>, i32 -> vector<22x128xf32>
    %c5 = arith.constant 5 : index
    %c0_19 = arith.constant 0 : index
    %c0_20 = arith.constant 0 : index
    %33 = vector.load %arg3[%c5, %c0_19, %c0_20] : memref<9x64x22xbf16, #tpu.memory_space<vmem>>, vector<1x64x22xbf16>
    %34 = vector.shape_cast %33 : vector<1x64x22xbf16> to vector<64x22xbf16>
    %35 = arith.truncf %32 : vector<22x128xf32> to vector<22x128xbf16>
    %cst_21 = arith.constant dense<0.000000e+00> : vector<64x128xf32>
    %36 = tpu.matmul %34, %35, %cst_21 {dimension_numbers = #tpu.dot_dimension_numbers<[1], [0], [0], [1], [0, 0, 1, 1], [], []>} : vector<64x22xbf16>, vector<22x128xbf16>, vector<64x128xf32> -> vector<64x128xf32>
    %37 = arith.addf %31, %36 : vector<64x128xf32>
    %c118_i32 = arith.constant 118 : i32
    %38 = tpu.dynamic_rotate %1 by %c118_i32 dim 1 : vector<22x128xf32>, i32 -> vector<22x128xf32>
    %c6 = arith.constant 6 : index
    %c0_22 = arith.constant 0 : index
    %c0_23 = arith.constant 0 : index
    %39 = vector.load %arg3[%c6, %c0_22, %c0_23] : memref<9x64x22xbf16, #tpu.memory_space<vmem>>, vector<1x64x22xbf16>
    %40 = vector.shape_cast %39 : vector<1x64x22xbf16> to vector<64x22xbf16>
    %41 = arith.truncf %38 : vector<22x128xf32> to vector<22x128xbf16>
    %cst_24 = arith.constant dense<0.000000e+00> : vector<64x128xf32>
    %42 = tpu.matmul %40, %41, %cst_24 {dimension_numbers = #tpu.dot_dimension_numbers<[1], [0], [0], [1], [0, 0, 1, 1], [], []>} : vector<64x22xbf16>, vector<22x128xbf16>, vector<64x128xf32> -> vector<64x128xf32>
    %43 = arith.addf %37, %42 : vector<64x128xf32>
    %c117_i32 = arith.constant 117 : i32
    %44 = tpu.dynamic_rotate %1 by %c117_i32 dim 1 : vector<22x128xf32>, i32 -> vector<22x128xf32>
    %c7 = arith.constant 7 : index
    %c0_25 = arith.constant 0 : index
    %c0_26 = arith.constant 0 : index
    %45 = vector.load %arg3[%c7, %c0_25, %c0_26] : memref<9x64x22xbf16, #tpu.memory_space<vmem>>, vector<1x64x22xbf16>
    %46 = vector.shape_cast %45 : vector<1x64x22xbf16> to vector<64x22xbf16>
    %47 = arith.truncf %44 : vector<22x128xf32> to vector<22x128xbf16>
    %cst_27 = arith.constant dense<0.000000e+00> : vector<64x128xf32>
    %48 = tpu.matmul %46, %47, %cst_27 {dimension_numbers = #tpu.dot_dimension_numbers<[1], [0], [0], [1], [0, 0, 1, 1], [], []>} : vector<64x22xbf16>, vector<22x128xbf16>, vector<64x128xf32> -> vector<64x128xf32>
    %49 = arith.addf %43, %48 : vector<64x128xf32>
    %c116_i32 = arith.constant 116 : i32
    %50 = tpu.dynamic_rotate %1 by %c116_i32 dim 1 : vector<22x128xf32>, i32 -> vector<22x128xf32>
    %c8 = arith.constant 8 : index
    %c0_28 = arith.constant 0 : index
    %c0_29 = arith.constant 0 : index
    %51 = vector.load %arg3[%c8, %c0_28, %c0_29] : memref<9x64x22xbf16, #tpu.memory_space<vmem>>, vector<1x64x22xbf16>
    %52 = vector.shape_cast %51 : vector<1x64x22xbf16> to vector<64x22xbf16>
    %53 = arith.truncf %50 : vector<22x128xf32> to vector<22x128xbf16>
    %cst_30 = arith.constant dense<0.000000e+00> : vector<64x128xf32>
    %54 = tpu.matmul %52, %53, %cst_30 {dimension_numbers = #tpu.dot_dimension_numbers<[1], [0], [0], [1], [0, 0, 1, 1], [], []>} : vector<64x22xbf16>, vector<22x128xbf16>, vector<64x128xf32> -> vector<64x128xf32>
    %55 = arith.addf %49, %54 : vector<64x128xf32>
    %c0_31 = arith.constant 0 : index
    %c0_32 = arith.constant 0 : index
    %56 = vector.load %arg4[%c0_31, %c0_32] : memref<64x1xf32, #tpu.memory_space<vmem>>, vector<64x1xf32>
    %57 = vector.broadcast %56 : vector<64x1xf32> to vector<64x128xf32>
    %58 = arith.addf %55, %57 : vector<64x128xf32>
    %cst_33 = arith.constant 0.000000e+00 : f32
    %59 = vector.broadcast %cst_33 : f32 to vector<64x128xf32>
    %60 = arith.maximumf %58, %59 : vector<64x128xf32>
    %61 = vector.broadcast %0 : vector<1x128xf32> to vector<64x128xf32>
    %62 = arith.mulf %60, %61 : vector<64x128xf32>
    %cst_34 = arith.constant 0.000000e+00 : f32
    %63 = vector.broadcast %cst_34 : f32 to vector<64x128xf32>
    %c12_i32_35 = arith.constant 12 : i32
    %64 = tpu.dynamic_rotate %62 by %c12_i32_35 dim 1 : vector<64x128xf32>, i32 -> vector<64x128xf32>
    %c0_36 = arith.constant 0 : index
    %c0_37 = arith.constant 0 : index
    %c0_38 = arith.constant 0 : index
    %65 = vector.load %arg5[%c0_36, %c0_37, %c0_38] : memref<9x64x64xbf16, #tpu.memory_space<vmem>>, vector<1x64x64xbf16>
    %66 = vector.shape_cast %65 : vector<1x64x64xbf16> to vector<64x64xbf16>
    %67 = arith.truncf %64 : vector<64x128xf32> to vector<64x128xbf16>
    %cst_39 = arith.constant dense<0.000000e+00> : vector<64x128xf32>
    %68 = tpu.matmul %66, %67, %cst_39 {dimension_numbers = #tpu.dot_dimension_numbers<[1], [0], [0], [1], [0, 0, 1, 1], [], []>} : vector<64x64xbf16>, vector<64x128xbf16>, vector<64x128xf32> -> vector<64x128xf32>
    %69 = arith.addf %63, %68 : vector<64x128xf32>
    %c11_i32_40 = arith.constant 11 : i32
    %70 = tpu.dynamic_rotate %62 by %c11_i32_40 dim 1 : vector<64x128xf32>, i32 -> vector<64x128xf32>
    %c1_41 = arith.constant 1 : index
    %c0_42 = arith.constant 0 : index
    %c0_43 = arith.constant 0 : index
    %71 = vector.load %arg5[%c1_41, %c0_42, %c0_43] : memref<9x64x64xbf16, #tpu.memory_space<vmem>>, vector<1x64x64xbf16>
    %72 = vector.shape_cast %71 : vector<1x64x64xbf16> to vector<64x64xbf16>
    %73 = arith.truncf %70 : vector<64x128xf32> to vector<64x128xbf16>
    %cst_44 = arith.constant dense<0.000000e+00> : vector<64x128xf32>
    %74 = tpu.matmul %72, %73, %cst_44 {dimension_numbers = #tpu.dot_dimension_numbers<[1], [0], [0], [1], [0, 0, 1, 1], [], []>} : vector<64x64xbf16>, vector<64x128xbf16>, vector<64x128xf32> -> vector<64x128xf32>
    %75 = arith.addf %69, %74 : vector<64x128xf32>
    %c10_i32_45 = arith.constant 10 : i32
    %76 = tpu.dynamic_rotate %62 by %c10_i32_45 dim 1 : vector<64x128xf32>, i32 -> vector<64x128xf32>
    %c2_46 = arith.constant 2 : index
    %c0_47 = arith.constant 0 : index
    %c0_48 = arith.constant 0 : index
    %77 = vector.load %arg5[%c2_46, %c0_47, %c0_48] : memref<9x64x64xbf16, #tpu.memory_space<vmem>>, vector<1x64x64xbf16>
    %78 = vector.shape_cast %77 : vector<1x64x64xbf16> to vector<64x64xbf16>
    %79 = arith.truncf %76 : vector<64x128xf32> to vector<64x128xbf16>
    %cst_49 = arith.constant dense<0.000000e+00> : vector<64x128xf32>
    %80 = tpu.matmul %78, %79, %cst_49 {dimension_numbers = #tpu.dot_dimension_numbers<[1], [0], [0], [1], [0, 0, 1, 1], [], []>} : vector<64x64xbf16>, vector<64x128xbf16>, vector<64x128xf32> -> vector<64x128xf32>
    %81 = arith.addf %75, %80 : vector<64x128xf32>
    %c1_i32_50 = arith.constant 1 : i32
    %82 = tpu.dynamic_rotate %62 by %c1_i32_50 dim 1 : vector<64x128xf32>, i32 -> vector<64x128xf32>
    %c3_51 = arith.constant 3 : index
    %c0_52 = arith.constant 0 : index
    %c0_53 = arith.constant 0 : index
    %83 = vector.load %arg5[%c3_51, %c0_52, %c0_53] : memref<9x64x64xbf16, #tpu.memory_space<vmem>>, vector<1x64x64xbf16>
    %84 = vector.shape_cast %83 : vector<1x64x64xbf16> to vector<64x64xbf16>
    %85 = arith.truncf %82 : vector<64x128xf32> to vector<64x128xbf16>
    %cst_54 = arith.constant dense<0.000000e+00> : vector<64x128xf32>
    %86 = tpu.matmul %84, %85, %cst_54 {dimension_numbers = #tpu.dot_dimension_numbers<[1], [0], [0], [1], [0, 0, 1, 1], [], []>} : vector<64x64xbf16>, vector<64x128xbf16>, vector<64x128xf32> -> vector<64x128xf32>
    %87 = arith.addf %81, %86 : vector<64x128xf32>
    %c4_55 = arith.constant 4 : index
    %c0_56 = arith.constant 0 : index
    %c0_57 = arith.constant 0 : index
    %88 = vector.load %arg5[%c4_55, %c0_56, %c0_57] : memref<9x64x64xbf16, #tpu.memory_space<vmem>>, vector<1x64x64xbf16>
    %89 = vector.shape_cast %88 : vector<1x64x64xbf16> to vector<64x64xbf16>
    %90 = arith.truncf %62 : vector<64x128xf32> to vector<64x128xbf16>
    %cst_58 = arith.constant dense<0.000000e+00> : vector<64x128xf32>
    %91 = tpu.matmul %89, %90, %cst_58 {dimension_numbers = #tpu.dot_dimension_numbers<[1], [0], [0], [1], [0, 0, 1, 1], [], []>} : vector<64x64xbf16>, vector<64x128xbf16>, vector<64x128xf32> -> vector<64x128xf32>
    %92 = arith.addf %87, %91 : vector<64x128xf32>
    %c127_i32_59 = arith.constant 127 : i32
    %93 = tpu.dynamic_rotate %62 by %c127_i32_59 dim 1 : vector<64x128xf32>, i32 -> vector<64x128xf32>
    %c5_60 = arith.constant 5 : index
    %c0_61 = arith.constant 0 : index
    %c0_62 = arith.constant 0 : index
    %94 = vector.load %arg5[%c5_60, %c0_61, %c0_62] : memref<9x64x64xbf16, #tpu.memory_space<vmem>>, vector<1x64x64xbf16>
    %95 = vector.shape_cast %94 : vector<1x64x64xbf16> to vector<64x64xbf16>
    %96 = arith.truncf %93 : vector<64x128xf32> to vector<64x128xbf16>
    %cst_63 = arith.constant dense<0.000000e+00> : vector<64x128xf32>
    %97 = tpu.matmul %95, %96, %cst_63 {dimension_numbers = #tpu.dot_dimension_numbers<[1], [0], [0], [1], [0, 0, 1, 1], [], []>} : vector<64x64xbf16>, vector<64x128xbf16>, vector<64x128xf32> -> vector<64x128xf32>
    %98 = arith.addf %92, %97 : vector<64x128xf32>
    %c118_i32_64 = arith.constant 118 : i32
    %99 = tpu.dynamic_rotate %62 by %c118_i32_64 dim 1 : vector<64x128xf32>, i32 -> vector<64x128xf32>
    %c6_65 = arith.constant 6 : index
    %c0_66 = arith.constant 0 : index
    %c0_67 = arith.constant 0 : index
    %100 = vector.load %arg5[%c6_65, %c0_66, %c0_67] : memref<9x64x64xbf16, #tpu.memory_space<vmem>>, vector<1x64x64xbf16>
    %101 = vector.shape_cast %100 : vector<1x64x64xbf16> to vector<64x64xbf16>
    %102 = arith.truncf %99 : vector<64x128xf32> to vector<64x128xbf16>
    %cst_68 = arith.constant dense<0.000000e+00> : vector<64x128xf32>
    %103 = tpu.matmul %101, %102, %cst_68 {dimension_numbers = #tpu.dot_dimension_numbers<[1], [0], [0], [1], [0, 0, 1, 1], [], []>} : vector<64x64xbf16>, vector<64x128xbf16>, vector<64x128xf32> -> vector<64x128xf32>
    %104 = arith.addf %98, %103 : vector<64x128xf32>
    %c117_i32_69 = arith.constant 117 : i32
    %105 = tpu.dynamic_rotate %62 by %c117_i32_69 dim 1 : vector<64x128xf32>, i32 -> vector<64x128xf32>
    %c7_70 = arith.constant 7 : index
    %c0_71 = arith.constant 0 : index
    %c0_72 = arith.constant 0 : index
    %106 = vector.load %arg5[%c7_70, %c0_71, %c0_72] : memref<9x64x64xbf16, #tpu.memory_space<vmem>>, vector<1x64x64xbf16>
    %107 = vector.shape_cast %106 : vector<1x64x64xbf16> to vector<64x64xbf16>
    %108 = arith.truncf %105 : vector<64x128xf32> to vector<64x128xbf16>
    %cst_73 = arith.constant dense<0.000000e+00> : vector<64x128xf32>
    %109 = tpu.matmul %107, %108, %cst_73 {dimension_numbers = #tpu.dot_dimension_numbers<[1], [0], [0], [1], [0, 0, 1, 1], [], []>} : vector<64x64xbf16>, vector<64x128xbf16>, vector<64x128xf32> -> vector<64x128xf32>
    %110 = arith.addf %104, %109 : vector<64x128xf32>
    %c116_i32_74 = arith.constant 116 : i32
    %111 = tpu.dynamic_rotate %62 by %c116_i32_74 dim 1 : vector<64x128xf32>, i32 -> vector<64x128xf32>
    %c8_75 = arith.constant 8 : index
    %c0_76 = arith.constant 0 : index
    %c0_77 = arith.constant 0 : index
    %112 = vector.load %arg5[%c8_75, %c0_76, %c0_77] : memref<9x64x64xbf16, #tpu.memory_space<vmem>>, vector<1x64x64xbf16>
    %113 = vector.shape_cast %112 : vector<1x64x64xbf16> to vector<64x64xbf16>
    %114 = arith.truncf %111 : vector<64x128xf32> to vector<64x128xbf16>
    %cst_78 = arith.constant dense<0.000000e+00> : vector<64x128xf32>
    %115 = tpu.matmul %113, %114, %cst_78 {dimension_numbers = #tpu.dot_dimension_numbers<[1], [0], [0], [1], [0, 0, 1, 1], [], []>} : vector<64x64xbf16>, vector<64x128xbf16>, vector<64x128xf32> -> vector<64x128xf32>
    %116 = arith.addf %110, %115 : vector<64x128xf32>
    %c0_79 = arith.constant 0 : index
    %c0_80 = arith.constant 0 : index
    %117 = vector.load %arg6[%c0_79, %c0_80] : memref<64x1xf32, #tpu.memory_space<vmem>>, vector<64x1xf32>
    %118 = vector.broadcast %117 : vector<64x1xf32> to vector<64x128xf32>
    %119 = arith.addf %116, %118 : vector<64x128xf32>
    %120 = tpu.concatenate %119, %1 in 0 : vector<64x128xf32>, vector<22x128xf32> -> vector<86x128xf32>
    %cst_81 = arith.constant 0.000000e+00 : f32
    %121 = vector.broadcast %cst_81 : f32 to vector<86x128xf32>
    %122 = arith.maximumf %120, %121 : vector<86x128xf32>
    %123 = vector.broadcast %0 : vector<1x128xf32> to vector<86x128xf32>
    %124 = arith.mulf %122, %123 : vector<86x128xf32>
    %cst_82 = arith.constant 0.000000e+00 : f32
    %125 = vector.broadcast %cst_82 : f32 to vector<64x128xf32>
    %c12_i32_83 = arith.constant 12 : i32
    %126 = tpu.dynamic_rotate %124 by %c12_i32_83 dim 1 : vector<86x128xf32>, i32 -> vector<86x128xf32>
    %c0_84 = arith.constant 0 : index
    %c0_85 = arith.constant 0 : index
    %c0_86 = arith.constant 0 : index
    %127 = vector.load %arg7[%c0_84, %c0_85, %c0_86] : memref<9x64x86xbf16, #tpu.memory_space<vmem>>, vector<1x64x86xbf16>
    %128 = vector.shape_cast %127 : vector<1x64x86xbf16> to vector<64x86xbf16>
    %129 = arith.truncf %126 : vector<86x128xf32> to vector<86x128xbf16>
    %cst_87 = arith.constant dense<0.000000e+00> : vector<64x128xf32>
    %130 = tpu.matmul %128, %129, %cst_87 {dimension_numbers = #tpu.dot_dimension_numbers<[1], [0], [0], [1], [0, 0, 1, 1], [], []>} : vector<64x86xbf16>, vector<86x128xbf16>, vector<64x128xf32> -> vector<64x128xf32>
    %131 = arith.addf %125, %130 : vector<64x128xf32>
    %c11_i32_88 = arith.constant 11 : i32
    %132 = tpu.dynamic_rotate %124 by %c11_i32_88 dim 1 : vector<86x128xf32>, i32 -> vector<86x128xf32>
    %c1_89 = arith.constant 1 : index
    %c0_90 = arith.constant 0 : index
    %c0_91 = arith.constant 0 : index
    %133 = vector.load %arg7[%c1_89, %c0_90, %c0_91] : memref<9x64x86xbf16, #tpu.memory_space<vmem>>, vector<1x64x86xbf16>
    %134 = vector.shape_cast %133 : vector<1x64x86xbf16> to vector<64x86xbf16>
    %135 = arith.truncf %132 : vector<86x128xf32> to vector<86x128xbf16>
    %cst_92 = arith.constant dense<0.000000e+00> : vector<64x128xf32>
    %136 = tpu.matmul %134, %135, %cst_92 {dimension_numbers = #tpu.dot_dimension_numbers<[1], [0], [0], [1], [0, 0, 1, 1], [], []>} : vector<64x86xbf16>, vector<86x128xbf16>, vector<64x128xf32> -> vector<64x128xf32>
    %137 = arith.addf %131, %136 : vector<64x128xf32>
    %c10_i32_93 = arith.constant 10 : i32
    %138 = tpu.dynamic_rotate %124 by %c10_i32_93 dim 1 : vector<86x128xf32>, i32 -> vector<86x128xf32>
    %c2_94 = arith.constant 2 : index
    %c0_95 = arith.constant 0 : index
    %c0_96 = arith.constant 0 : index
    %139 = vector.load %arg7[%c2_94, %c0_95, %c0_96] : memref<9x64x86xbf16, #tpu.memory_space<vmem>>, vector<1x64x86xbf16>
    %140 = vector.shape_cast %139 : vector<1x64x86xbf16> to vector<64x86xbf16>
    %141 = arith.truncf %138 : vector<86x128xf32> to vector<86x128xbf16>
    %cst_97 = arith.constant dense<0.000000e+00> : vector<64x128xf32>
    %142 = tpu.matmul %140, %141, %cst_97 {dimension_numbers = #tpu.dot_dimension_numbers<[1], [0], [0], [1], [0, 0, 1, 1], [], []>} : vector<64x86xbf16>, vector<86x128xbf16>, vector<64x128xf32> -> vector<64x128xf32>
    %143 = arith.addf %137, %142 : vector<64x128xf32>
    %c1_i32_98 = arith.constant 1 : i32
    %144 = tpu.dynamic_rotate %124 by %c1_i32_98 dim 1 : vector<86x128xf32>, i32 -> vector<86x128xf32>
    %c3_99 = arith.constant 3 : index
    %c0_100 = arith.constant 0 : index
    %c0_101 = arith.constant 0 : index
    %145 = vector.load %arg7[%c3_99, %c0_100, %c0_101] : memref<9x64x86xbf16, #tpu.memory_space<vmem>>, vector<1x64x86xbf16>
    %146 = vector.shape_cast %145 : vector<1x64x86xbf16> to vector<64x86xbf16>
    %147 = arith.truncf %144 : vector<86x128xf32> to vector<86x128xbf16>
    %cst_102 = arith.constant dense<0.000000e+00> : vector<64x128xf32>
    %148 = tpu.matmul %146, %147, %cst_102 {dimension_numbers = #tpu.dot_dimension_numbers<[1], [0], [0], [1], [0, 0, 1, 1], [], []>} : vector<64x86xbf16>, vector<86x128xbf16>, vector<64x128xf32> -> vector<64x128xf32>
    %149 = arith.addf %143, %148 : vector<64x128xf32>
    %c4_103 = arith.constant 4 : index
    %c0_104 = arith.constant 0 : index
    %c0_105 = arith.constant 0 : index
    %150 = vector.load %arg7[%c4_103, %c0_104, %c0_105] : memref<9x64x86xbf16, #tpu.memory_space<vmem>>, vector<1x64x86xbf16>
    %151 = vector.shape_cast %150 : vector<1x64x86xbf16> to vector<64x86xbf16>
    %152 = arith.truncf %124 : vector<86x128xf32> to vector<86x128xbf16>
    %cst_106 = arith.constant dense<0.000000e+00> : vector<64x128xf32>
    %153 = tpu.matmul %151, %152, %cst_106 {dimension_numbers = #tpu.dot_dimension_numbers<[1], [0], [0], [1], [0, 0, 1, 1], [], []>} : vector<64x86xbf16>, vector<86x128xbf16>, vector<64x128xf32> -> vector<64x128xf32>
    %154 = arith.addf %149, %153 : vector<64x128xf32>
    %c127_i32_107 = arith.constant 127 : i32
    %155 = tpu.dynamic_rotate %124 by %c127_i32_107 dim 1 : vector<86x128xf32>, i32 -> vector<86x128xf32>
    %c5_108 = arith.constant 5 : index
    %c0_109 = arith.constant 0 : index
    %c0_110 = arith.constant 0 : index
    %156 = vector.load %arg7[%c5_108, %c0_109, %c0_110] : memref<9x64x86xbf16, #tpu.memory_space<vmem>>, vector<1x64x86xbf16>
    %157 = vector.shape_cast %156 : vector<1x64x86xbf16> to vector<64x86xbf16>
    %158 = arith.truncf %155 : vector<86x128xf32> to vector<86x128xbf16>
    %cst_111 = arith.constant dense<0.000000e+00> : vector<64x128xf32>
    %159 = tpu.matmul %157, %158, %cst_111 {dimension_numbers = #tpu.dot_dimension_numbers<[1], [0], [0], [1], [0, 0, 1, 1], [], []>} : vector<64x86xbf16>, vector<86x128xbf16>, vector<64x128xf32> -> vector<64x128xf32>
    %160 = arith.addf %154, %159 : vector<64x128xf32>
    %c118_i32_112 = arith.constant 118 : i32
    %161 = tpu.dynamic_rotate %124 by %c118_i32_112 dim 1 : vector<86x128xf32>, i32 -> vector<86x128xf32>
    %c6_113 = arith.constant 6 : index
    %c0_114 = arith.constant 0 : index
    %c0_115 = arith.constant 0 : index
    %162 = vector.load %arg7[%c6_113, %c0_114, %c0_115] : memref<9x64x86xbf16, #tpu.memory_space<vmem>>, vector<1x64x86xbf16>
    %163 = vector.shape_cast %162 : vector<1x64x86xbf16> to vector<64x86xbf16>
    %164 = arith.truncf %161 : vector<86x128xf32> to vector<86x128xbf16>
    %cst_116 = arith.constant dense<0.000000e+00> : vector<64x128xf32>
    %165 = tpu.matmul %163, %164, %cst_116 {dimension_numbers = #tpu.dot_dimension_numbers<[1], [0], [0], [1], [0, 0, 1, 1], [], []>} : vector<64x86xbf16>, vector<86x128xbf16>, vector<64x128xf32> -> vector<64x128xf32>
    %166 = arith.addf %160, %165 : vector<64x128xf32>
    %c117_i32_117 = arith.constant 117 : i32
    %167 = tpu.dynamic_rotate %124 by %c117_i32_117 dim 1 : vector<86x128xf32>, i32 -> vector<86x128xf32>
    %c7_118 = arith.constant 7 : index
    %c0_119 = arith.constant 0 : index
    %c0_120 = arith.constant 0 : index
    %168 = vector.load %arg7[%c7_118, %c0_119, %c0_120] : memref<9x64x86xbf16, #tpu.memory_space<vmem>>, vector<1x64x86xbf16>
    %169 = vector.shape_cast %168 : vector<1x64x86xbf16> to vector<64x86xbf16>
    %170 = arith.truncf %167 : vector<86x128xf32> to vector<86x128xbf16>
    %cst_121 = arith.constant dense<0.000000e+00> : vector<64x128xf32>
    %171 = tpu.matmul %169, %170, %cst_121 {dimension_numbers = #tpu.dot_dimension_numbers<[1], [0], [0], [1], [0, 0, 1, 1], [], []>} : vector<64x86xbf16>, vector<86x128xbf16>, vector<64x128xf32> -> vector<64x128xf32>
    %172 = arith.addf %166, %171 : vector<64x128xf32>
    %c116_i32_122 = arith.constant 116 : i32
    %173 = tpu.dynamic_rotate %124 by %c116_i32_122 dim 1 : vector<86x128xf32>, i32 -> vector<86x128xf32>
    %c8_123 = arith.constant 8 : index
    %c0_124 = arith.constant 0 : index
    %c0_125 = arith.constant 0 : index
    %174 = vector.load %arg7[%c8_123, %c0_124, %c0_125] : memref<9x64x86xbf16, #tpu.memory_space<vmem>>, vector<1x64x86xbf16>
    %175 = vector.shape_cast %174 : vector<1x64x86xbf16> to vector<64x86xbf16>
    %176 = arith.truncf %173 : vector<86x128xf32> to vector<86x128xbf16>
    %cst_126 = arith.constant dense<0.000000e+00> : vector<64x128xf32>
    %177 = tpu.matmul %175, %176, %cst_126 {dimension_numbers = #tpu.dot_dimension_numbers<[1], [0], [0], [1], [0, 0, 1, 1], [], []>} : vector<64x86xbf16>, vector<86x128xbf16>, vector<64x128xf32> -> vector<64x128xf32>
    %178 = arith.addf %172, %177 : vector<64x128xf32>
    %c0_127 = arith.constant 0 : index
    %c0_128 = arith.constant 0 : index
    %179 = vector.load %arg8[%c0_127, %c0_128] : memref<64x1xf32, #tpu.memory_space<vmem>>, vector<64x1xf32>
    %180 = vector.broadcast %179 : vector<64x1xf32> to vector<64x128xf32>
    %181 = arith.addf %178, %180 : vector<64x128xf32>
    %cst_129 = arith.constant 0.000000e+00 : f32
    %182 = vector.broadcast %cst_129 : f32 to vector<64x128xf32>
    %183 = arith.maximumf %181, %182 : vector<64x128xf32>
    %184 = vector.broadcast %0 : vector<1x128xf32> to vector<64x128xf32>
    %185 = arith.mulf %183, %184 : vector<64x128xf32>
    %cst_130 = arith.constant 0.000000e+00 : f32
    %186 = vector.broadcast %cst_130 : f32 to vector<64x128xf32>
    %c12_i32_131 = arith.constant 12 : i32
    %187 = tpu.dynamic_rotate %185 by %c12_i32_131 dim 1 : vector<64x128xf32>, i32 -> vector<64x128xf32>
    %c0_132 = arith.constant 0 : index
    %c0_133 = arith.constant 0 : index
    %c0_134 = arith.constant 0 : index
    %188 = vector.load %arg5[%c0_132, %c0_133, %c0_134] : memref<9x64x64xbf16, #tpu.memory_space<vmem>>, vector<1x64x64xbf16>
    %189 = vector.shape_cast %188 : vector<1x64x64xbf16> to vector<64x64xbf16>
    %190 = arith.truncf %187 : vector<64x128xf32> to vector<64x128xbf16>
    %cst_135 = arith.constant dense<0.000000e+00> : vector<64x128xf32>
    %191 = tpu.matmul %189, %190, %cst_135 {dimension_numbers = #tpu.dot_dimension_numbers<[1], [0], [0], [1], [0, 0, 1, 1], [], []>} : vector<64x64xbf16>, vector<64x128xbf16>, vector<64x128xf32> -> vector<64x128xf32>
    %192 = arith.addf %186, %191 : vector<64x128xf32>
    %c11_i32_136 = arith.constant 11 : i32
    %193 = tpu.dynamic_rotate %185 by %c11_i32_136 dim 1 : vector<64x128xf32>, i32 -> vector<64x128xf32>
    %c1_137 = arith.constant 1 : index
    %c0_138 = arith.constant 0 : index
    %c0_139 = arith.constant 0 : index
    %194 = vector.load %arg5[%c1_137, %c0_138, %c0_139] : memref<9x64x64xbf16, #tpu.memory_space<vmem>>, vector<1x64x64xbf16>
    %195 = vector.shape_cast %194 : vector<1x64x64xbf16> to vector<64x64xbf16>
    %196 = arith.truncf %193 : vector<64x128xf32> to vector<64x128xbf16>
    %cst_140 = arith.constant dense<0.000000e+00> : vector<64x128xf32>
    %197 = tpu.matmul %195, %196, %cst_140 {dimension_numbers = #tpu.dot_dimension_numbers<[1], [0], [0], [1], [0, 0, 1, 1], [], []>} : vector<64x64xbf16>, vector<64x128xbf16>, vector<64x128xf32> -> vector<64x128xf32>
    %198 = arith.addf %192, %197 : vector<64x128xf32>
    %c10_i32_141 = arith.constant 10 : i32
    %199 = tpu.dynamic_rotate %185 by %c10_i32_141 dim 1 : vector<64x128xf32>, i32 -> vector<64x128xf32>
    %c2_142 = arith.constant 2 : index
    %c0_143 = arith.constant 0 : index
    %c0_144 = arith.constant 0 : index
    %200 = vector.load %arg5[%c2_142, %c0_143, %c0_144] : memref<9x64x64xbf16, #tpu.memory_space<vmem>>, vector<1x64x64xbf16>
    %201 = vector.shape_cast %200 : vector<1x64x64xbf16> to vector<64x64xbf16>
    %202 = arith.truncf %199 : vector<64x128xf32> to vector<64x128xbf16>
    %cst_145 = arith.constant dense<0.000000e+00> : vector<64x128xf32>
    %203 = tpu.matmul %201, %202, %cst_145 {dimension_numbers = #tpu.dot_dimension_numbers<[1], [0], [0], [1], [0, 0, 1, 1], [], []>} : vector<64x64xbf16>, vector<64x128xbf16>, vector<64x128xf32> -> vector<64x128xf32>
    %204 = arith.addf %198, %203 : vector<64x128xf32>
    %c1_i32_146 = arith.constant 1 : i32
    %205 = tpu.dynamic_rotate %185 by %c1_i32_146 dim 1 : vector<64x128xf32>, i32 -> vector<64x128xf32>
    %c3_147 = arith.constant 3 : index
    %c0_148 = arith.constant 0 : index
    %c0_149 = arith.constant 0 : index
    %206 = vector.load %arg5[%c3_147, %c0_148, %c0_149] : memref<9x64x64xbf16, #tpu.memory_space<vmem>>, vector<1x64x64xbf16>
    %207 = vector.shape_cast %206 : vector<1x64x64xbf16> to vector<64x64xbf16>
    %208 = arith.truncf %205 : vector<64x128xf32> to vector<64x128xbf16>
    %cst_150 = arith.constant dense<0.000000e+00> : vector<64x128xf32>
    %209 = tpu.matmul %207, %208, %cst_150 {dimension_numbers = #tpu.dot_dimension_numbers<[1], [0], [0], [1], [0, 0, 1, 1], [], []>} : vector<64x64xbf16>, vector<64x128xbf16>, vector<64x128xf32> -> vector<64x128xf32>
    %210 = arith.addf %204, %209 : vector<64x128xf32>
    %c4_151 = arith.constant 4 : index
    %c0_152 = arith.constant 0 : index
    %c0_153 = arith.constant 0 : index
    %211 = vector.load %arg5[%c4_151, %c0_152, %c0_153] : memref<9x64x64xbf16, #tpu.memory_space<vmem>>, vector<1x64x64xbf16>
    %212 = vector.shape_cast %211 : vector<1x64x64xbf16> to vector<64x64xbf16>
    %213 = arith.truncf %185 : vector<64x128xf32> to vector<64x128xbf16>
    %cst_154 = arith.constant dense<0.000000e+00> : vector<64x128xf32>
    %214 = tpu.matmul %212, %213, %cst_154 {dimension_numbers = #tpu.dot_dimension_numbers<[1], [0], [0], [1], [0, 0, 1, 1], [], []>} : vector<64x64xbf16>, vector<64x128xbf16>, vector<64x128xf32> -> vector<64x128xf32>
    %215 = arith.addf %210, %214 : vector<64x128xf32>
    %c127_i32_155 = arith.constant 127 : i32
    %216 = tpu.dynamic_rotate %185 by %c127_i32_155 dim 1 : vector<64x128xf32>, i32 -> vector<64x128xf32>
    %c5_156 = arith.constant 5 : index
    %c0_157 = arith.constant 0 : index
    %c0_158 = arith.constant 0 : index
    %217 = vector.load %arg5[%c5_156, %c0_157, %c0_158] : memref<9x64x64xbf16, #tpu.memory_space<vmem>>, vector<1x64x64xbf16>
    %218 = vector.shape_cast %217 : vector<1x64x64xbf16> to vector<64x64xbf16>
    %219 = arith.truncf %216 : vector<64x128xf32> to vector<64x128xbf16>
    %cst_159 = arith.constant dense<0.000000e+00> : vector<64x128xf32>
    %220 = tpu.matmul %218, %219, %cst_159 {dimension_numbers = #tpu.dot_dimension_numbers<[1], [0], [0], [1], [0, 0, 1, 1], [], []>} : vector<64x64xbf16>, vector<64x128xbf16>, vector<64x128xf32> -> vector<64x128xf32>
    %221 = arith.addf %215, %220 : vector<64x128xf32>
    %c118_i32_160 = arith.constant 118 : i32
    %222 = tpu.dynamic_rotate %185 by %c118_i32_160 dim 1 : vector<64x128xf32>, i32 -> vector<64x128xf32>
    %c6_161 = arith.constant 6 : index
    %c0_162 = arith.constant 0 : index
    %c0_163 = arith.constant 0 : index
    %223 = vector.load %arg5[%c6_161, %c0_162, %c0_163] : memref<9x64x64xbf16, #tpu.memory_space<vmem>>, vector<1x64x64xbf16>
    %224 = vector.shape_cast %223 : vector<1x64x64xbf16> to vector<64x64xbf16>
    %225 = arith.truncf %222 : vector<64x128xf32> to vector<64x128xbf16>
    %cst_164 = arith.constant dense<0.000000e+00> : vector<64x128xf32>
    %226 = tpu.matmul %224, %225, %cst_164 {dimension_numbers = #tpu.dot_dimension_numbers<[1], [0], [0], [1], [0, 0, 1, 1], [], []>} : vector<64x64xbf16>, vector<64x128xbf16>, vector<64x128xf32> -> vector<64x128xf32>
    %227 = arith.addf %221, %226 : vector<64x128xf32>
    %c117_i32_165 = arith.constant 117 : i32
    %228 = tpu.dynamic_rotate %185 by %c117_i32_165 dim 1 : vector<64x128xf32>, i32 -> vector<64x128xf32>
    %c7_166 = arith.constant 7 : index
    %c0_167 = arith.constant 0 : index
    %c0_168 = arith.constant 0 : index
    %229 = vector.load %arg5[%c7_166, %c0_167, %c0_168] : memref<9x64x64xbf16, #tpu.memory_space<vmem>>, vector<1x64x64xbf16>
    %230 = vector.shape_cast %229 : vector<1x64x64xbf16> to vector<64x64xbf16>
    %231 = arith.truncf %228 : vector<64x128xf32> to vector<64x128xbf16>
    %cst_169 = arith.constant dense<0.000000e+00> : vector<64x128xf32>
    %232 = tpu.matmul %230, %231, %cst_169 {dimension_numbers = #tpu.dot_dimension_numbers<[1], [0], [0], [1], [0, 0, 1, 1], [], []>} : vector<64x64xbf16>, vector<64x128xbf16>, vector<64x128xf32> -> vector<64x128xf32>
    %233 = arith.addf %227, %232 : vector<64x128xf32>
    %c116_i32_170 = arith.constant 116 : i32
    %234 = tpu.dynamic_rotate %185 by %c116_i32_170 dim 1 : vector<64x128xf32>, i32 -> vector<64x128xf32>
    %c8_171 = arith.constant 8 : index
    %c0_172 = arith.constant 0 : index
    %c0_173 = arith.constant 0 : index
    %235 = vector.load %arg5[%c8_171, %c0_172, %c0_173] : memref<9x64x64xbf16, #tpu.memory_space<vmem>>, vector<1x64x64xbf16>
    %236 = vector.shape_cast %235 : vector<1x64x64xbf16> to vector<64x64xbf16>
    %237 = arith.truncf %234 : vector<64x128xf32> to vector<64x128xbf16>
    %cst_174 = arith.constant dense<0.000000e+00> : vector<64x128xf32>
    %238 = tpu.matmul %236, %237, %cst_174 {dimension_numbers = #tpu.dot_dimension_numbers<[1], [0], [0], [1], [0, 0, 1, 1], [], []>} : vector<64x64xbf16>, vector<64x128xbf16>, vector<64x128xf32> -> vector<64x128xf32>
    %239 = arith.addf %233, %238 : vector<64x128xf32>
    %c0_175 = arith.constant 0 : index
    %c0_176 = arith.constant 0 : index
    %240 = vector.load %arg6[%c0_175, %c0_176] : memref<64x1xf32, #tpu.memory_space<vmem>>, vector<64x1xf32>
    %241 = vector.broadcast %240 : vector<64x1xf32> to vector<64x128xf32>
    %242 = arith.addf %239, %241 : vector<64x128xf32>
    %243 = tpu.concatenate %242, %1 in 0 : vector<64x128xf32>, vector<22x128xf32> -> vector<86x128xf32>
    %cst_177 = arith.constant 0.000000e+00 : f32
    %244 = vector.broadcast %cst_177 : f32 to vector<86x128xf32>
    %245 = arith.maximumf %243, %244 : vector<86x128xf32>
    %246 = vector.broadcast %0 : vector<1x128xf32> to vector<86x128xf32>
    %247 = arith.mulf %245, %246 : vector<86x128xf32>
    %c0_178 = arith.constant 0 : index
    %c0_179 = arith.constant 0 : index
    %248 = vector.load %arg9[%c0_178, %c0_179] : memref<6x86xbf16, #tpu.memory_space<vmem>>, vector<6x86xbf16>
    %249 = arith.truncf %247 : vector<86x128xf32> to vector<86x128xbf16>
    %cst_180 = arith.constant dense<0.000000e+00> : vector<6x128xf32>
    %250 = tpu.matmul %248, %249, %cst_180 {dimension_numbers = #tpu.dot_dimension_numbers<[1], [0], [0], [1], [0, 0, 1, 1], [], []>} : vector<6x86xbf16>, vector<86x128xbf16>, vector<6x128xf32> -> vector<6x128xf32>
    %c0_181 = arith.constant 0 : index
    %c0_182 = arith.constant 0 : index
    %251 = vector.load %arg10[%c0_181, %c0_182] : memref<6x1xf32, #tpu.memory_space<vmem>>, vector<6x1xf32>
    %252 = vector.broadcast %251 : vector<6x1xf32> to vector<6x128xf32>
    %253 = arith.addf %250, %252 : vector<6x128xf32>
    %cst_183 = arith.constant 0.000000e+00 : f32
    %254 = vector.broadcast %cst_183 : f32 to vector<6x128xf32>
    %255 = arith.maximumf %253, %254 : vector<6x128xf32>
    %256 = vector.broadcast %0 : vector<1x128xf32> to vector<6x128xf32>
    %257 = arith.mulf %255, %256 : vector<6x128xf32>
    %258 = vector.extract_strided_slice %257 {offsets = [0, 0], sizes = [2, 128], strides = [1, 1]} : vector<6x128xf32> to vector<2x128xf32>
    %259 = vector.extract_strided_slice %257 {offsets = [2, 0], sizes = [2, 128], strides = [1, 1]} : vector<6x128xf32> to vector<2x128xf32>
    %260 = vector.extract_strided_slice %257 {offsets = [4, 0], sizes = [2, 128], strides = [1, 1]} : vector<6x128xf32> to vector<2x128xf32>
    %261 = arith.truncf %258 : vector<2x128xf32> to vector<2x128xbf16>
    %c0_184 = arith.constant 0 : index
    %c0_185 = arith.constant 0 : index
    %262 = vector.load %arg11[%c0_184, %c0_185] : memref<128x256xbf16, #tpu.memory_space<vmem>>, vector<128x256xbf16>
    %cst_186 = arith.constant dense<0.000000e+00> : vector<2x256xf32>
    %263 = tpu.matmul %261, %262, %cst_186 {dimension_numbers = #tpu.dot_dimension_numbers<[1], [0], [0], [1], [0, 0, 1, 1], [], []>} : vector<2x128xbf16>, vector<128x256xbf16>, vector<2x256xf32> -> vector<2x256xf32>
    %c0_187 = arith.constant 0 : index
    %c0_188 = arith.constant 0 : index
    %264 = vector.load %arg12[%c0_187, %c0_188] : memref<1x256xf32, #tpu.memory_space<vmem>>, vector<1x256xf32>
    %265 = vector.broadcast %264 : vector<1x256xf32> to vector<2x256xf32>
    %266 = arith.addf %263, %265 : vector<2x256xf32>
    %cst_189 = arith.constant 0.000000e+00 : f32
    %267 = vector.broadcast %cst_189 : f32 to vector<2x256xf32>
    %268 = arith.maximumf %266, %267 : vector<2x256xf32>
    %269 = arith.truncf %268 : vector<2x256xf32> to vector<2x256xbf16>
    %c0_190 = arith.constant 0 : index
    %c0_191 = arith.constant 0 : index
    %270 = vector.load %arg13[%c0_190, %c0_191] : memref<256x128xbf16, #tpu.memory_space<vmem>>, vector<256x128xbf16>
    %cst_192 = arith.constant dense<0.000000e+00> : vector<2x128xf32>
    %271 = tpu.matmul %269, %270, %cst_192 {dimension_numbers = #tpu.dot_dimension_numbers<[1], [0], [0], [1], [0, 0, 1, 1], [], []>} : vector<2x256xbf16>, vector<256x128xbf16>, vector<2x128xf32> -> vector<2x128xf32>
    %c0_193 = arith.constant 0 : index
    %c0_194 = arith.constant 0 : index
    %272 = vector.load %arg14[%c0_193, %c0_194] : memref<1x128xf32, #tpu.memory_space<vmem>>, vector<1x128xf32>
    %273 = vector.broadcast %272 : vector<1x128xf32> to vector<2x128xf32>
    %274 = arith.addf %271, %273 : vector<2x128xf32>
    %275 = vector.extract_strided_slice %274 {offsets = [0, 0], sizes = [2, 1], strides = [1, 1]} : vector<2x128xf32> to vector<2x1xf32>
    %276 = math.tanh %275 : vector<2x1xf32>
    %277 = arith.truncf %259 : vector<2x128xf32> to vector<2x128xbf16>
    %c0_195 = arith.constant 0 : index
    %c0_196 = arith.constant 0 : index
    %278 = vector.load %arg15[%c0_195, %c0_196] : memref<128x128xbf16, #tpu.memory_space<vmem>>, vector<128x128xbf16>
    %cst_197 = arith.constant dense<0.000000e+00> : vector<2x128xf32>
    %279 = tpu.matmul %277, %278, %cst_197 {dimension_numbers = #tpu.dot_dimension_numbers<[1], [0], [0], [1], [0, 0, 1, 1], [], []>} : vector<2x128xbf16>, vector<128x128xbf16>, vector<2x128xf32> -> vector<2x128xf32>
    %280 = arith.truncf %260 : vector<2x128xf32> to vector<2x128xbf16>
    %c0_198 = arith.constant 0 : index
    %c0_199 = arith.constant 0 : index
    %281 = vector.load %arg16[%c0_198, %c0_199] : memref<128x128xbf16, #tpu.memory_space<vmem>>, vector<128x128xbf16>
    %cst_200 = arith.constant dense<0.000000e+00> : vector<2x128xf32>
    %282 = tpu.matmul %280, %281, %cst_200 {dimension_numbers = #tpu.dot_dimension_numbers<[1], [0], [0], [1], [0, 0, 1, 1], [], []>} : vector<2x128xbf16>, vector<128x128xbf16>, vector<2x128xf32> -> vector<2x128xf32>
    %283 = arith.addf %279, %282 : vector<2x128xf32>
    %c0_201 = arith.constant 0 : index
    %c0_202 = arith.constant 0 : index
    %284 = vector.load %arg17[%c0_201, %c0_202] : memref<1x128xf32, #tpu.memory_space<vmem>>, vector<1x128xf32>
    %285 = vector.broadcast %284 : vector<1x128xf32> to vector<2x128xf32>
    %286 = arith.addf %283, %285 : vector<2x128xf32>
    %287 = tpu.iota {dimensions = array<i32: 1>} : vector<2x128xi32>
    %c82_i32 = arith.constant 82 : i32
    %288 = vector.broadcast %c82_i32 : i32 to vector<2x128xi32>
    %289 = arith.cmpi slt, %287, %288 : vector<2x128xi32>
    %cst_203 = arith.constant -1.000000e+30 : f32
    %290 = vector.broadcast %cst_203 : f32 to vector<2x128xf32>
    %291 = arith.select %289, %286, %290 : vector<2x128xi1>, vector<2x128xf32>
    %cst_204 = arith.constant dense<0xFF800000> : vector<2xf32>
    %292 = vector.multi_reduction <maximumf>, %291, %cst_204 [1] : vector<2x128xf32> to vector<2xf32>
    %293 = vector.shape_cast %292 : vector<2xf32> to vector<2x1xf32>
    %294 = vector.broadcast %293 : vector<2x1xf32> to vector<2x128xf32>
    %295 = arith.subf %291, %294 : vector<2x128xf32>
    %296 = math.exp %295 : vector<2x128xf32>
    %cst_205 = arith.constant dense<0.000000e+00> : vector<2xf32>
    %297 = vector.multi_reduction <add>, %296, %cst_205 [1] : vector<2x128xf32> to vector<2xf32>
    %298 = vector.shape_cast %297 : vector<2xf32> to vector<2x1xf32>
    %299 = tpu.reciprocal %298 {approx = true} : vector<2x1xf32> -> vector<2x1xf32>
    %300 = vector.broadcast %299 : vector<2x1xf32> to vector<2x128xf32>
    %301 = arith.mulf %296, %300 : vector<2x128xf32>
    %c82_i32_206 = arith.constant 82 : i32
    %302 = vector.broadcast %c82_i32_206 : i32 to vector<2x128xi32>
    %303 = arith.cmpi eq, %287, %302 : vector<2x128xi32>
    %304 = arith.extui %303 : vector<2x128xi1> to vector<2x128xi32>
    %305 = arith.sitofp %304 : vector<2x128xi32> to vector<2x128xf32>
    %306 = vector.broadcast %276 : vector<2x1xf32> to vector<2x128xf32>
    %307 = arith.mulf %305, %306 : vector<2x128xf32>
    %308 = arith.addf %301, %307 : vector<2x128xf32>
    %c0_207 = arith.constant 0 : index
    %c0_208 = arith.constant 0 : index
    %309 = vector.load %arg18[%c0_207, %c0_208] : memref<2x128xf32, #tpu.memory_space<vmem>>, vector<2x128xf32>
    tpu.vector_store %arg18[%c0_207, %c0_208], %308 {strides = array<i32>} : memref<2x128xf32, #tpu.memory_space<vmem>>, vector<2x128xf32>,
    return
  }
  func.func @transform_0(%arg0: i32) -> (i32, i32) {
    %c0_i32 = arith.constant 0 : i32
    %c0_i32_0 = arith.constant 0 : i32
    %c0_i32_1 = arith.constant 0 : i32
    return %c0_i32, %c0_i32_0 : i32, i32
  }
  func.func @transform_1(%arg0: i32) -> (i32, i32) {
    %c0_i32 = arith.constant 0 : i32
    %c0_i32_0 = arith.constant 0 : i32
    %c0_i32_1 = arith.constant 0 : i32
    return %c0_i32, %c0_i32_0 : i32, i32
  }
  func.func @transform_2(%arg0: i32) -> (i32, i32, i32) {
    %c0_i32 = arith.constant 0 : i32
    %c0_i32_0 = arith.constant 0 : i32
    %c0_i32_1 = arith.constant 0 : i32
    %c0_i32_2 = arith.constant 0 : i32
    return %c0_i32, %c0_i32_0, %c0_i32_1 : i32, i32, i32
  }
  func.func @transform_3(%arg0: i32) -> (i32, i32) {
    %c0_i32 = arith.constant 0 : i32
    %c0_i32_0 = arith.constant 0 : i32
    %c0_i32_1 = arith.constant 0 : i32
    return %c0_i32, %c0_i32_0 : i32, i32
  }
  func.func @transform_4(%arg0: i32) -> (i32, i32, i32) {
    %c0_i32 = arith.constant 0 : i32
    %c0_i32_0 = arith.constant 0 : i32
    %c0_i32_1 = arith.constant 0 : i32
    %c0_i32_2 = arith.constant 0 : i32
    return %c0_i32, %c0_i32_0, %c0_i32_1 : i32, i32, i32
  }
  func.func @transform_5(%arg0: i32) -> (i32, i32) {
    %c0_i32 = arith.constant 0 : i32
    %c0_i32_0 = arith.constant 0 : i32
    %c0_i32_1 = arith.constant 0 : i32
    return %c0_i32, %c0_i32_0 : i32, i32
  }
  func.func @transform_6(%arg0: i32) -> (i32, i32, i32) {
    %c0_i32 = arith.constant 0 : i32
    %c0_i32_0 = arith.constant 0 : i32
    %c0_i32_1 = arith.constant 0 : i32
    %c0_i32_2 = arith.constant 0 : i32
    return %c0_i32, %c0_i32_0, %c0_i32_1 : i32, i32, i32
  }
  func.func @transform_7(%arg0: i32) -> (i32, i32) {
    %c0_i32 = arith.constant 0 : i32
    %c0_i32_0 = arith.constant 0 : i32
    %c0_i32_1 = arith.constant 0 : i32
    return %c0_i32, %c0_i32_0 : i32, i32
  }
  func.func @transform_8(%arg0: i32) -> (i32, i32) {
    %c0_i32 = arith.constant 0 : i32
    %c0_i32_0 = arith.constant 0 : i32
    %c0_i32_1 = arith.constant 0 : i32
    return %c0_i32, %c0_i32_0 : i32, i32
  }
  func.func @transform_9(%arg0: i32) -> (i32, i32) {
    %c0_i32 = arith.constant 0 : i32
    %c0_i32_0 = arith.constant 0 : i32
    %c0_i32_1 = arith.constant 0 : i32
    return %c0_i32, %c0_i32_0 : i32, i32
  }
  func.func @transform_10(%arg0: i32) -> (i32, i32) {
    %c0_i32 = arith.constant 0 : i32
    %c0_i32_0 = arith.constant 0 : i32
    %c0_i32_1 = arith.constant 0 : i32
    return %c0_i32, %c0_i32_0 : i32, i32
  }
  func.func @transform_11(%arg0: i32) -> (i32, i32) {
    %c0_i32 = arith.constant 0 : i32
    %c0_i32_0 = arith.constant 0 : i32
    %c0_i32_1 = arith.constant 0 : i32
    return %c0_i32, %c0_i32_0 : i32, i32
  }
  func.func @transform_12(%arg0: i32) -> (i32, i32) {
    %c0_i32 = arith.constant 0 : i32
    %c0_i32_0 = arith.constant 0 : i32
    %c0_i32_1 = arith.constant 0 : i32
    return %c0_i32, %c0_i32_0 : i32, i32
  }
  func.func @transform_13(%arg0: i32) -> (i32, i32) {
    %c0_i32 = arith.constant 0 : i32
    %c0_i32_0 = arith.constant 0 : i32
    %c0_i32_1 = arith.constant 0 : i32
    return %c0_i32, %c0_i32_0 : i32, i32
  }
  func.func @transform_14(%arg0: i32) -> (i32, i32) {
    %c0_i32 = arith.constant 0 : i32
    %c0_i32_0 = arith.constant 0 : i32
    %c0_i32_1 = arith.constant 0 : i32
    return %c0_i32, %c0_i32_0 : i32, i32
  }
  func.func @transform_15(%arg0: i32) -> (i32, i32) {
    %c0_i32 = arith.constant 0 : i32
    %c0_i32_0 = arith.constant 0 : i32
    %c0_i32_1 = arith.constant 0 : i32
    return %c0_i32, %c0_i32_0 : i32, i32
  }
  func.func @transform_16(%arg0: i32) -> (i32, i32) {
    %c0_i32 = arith.constant 0 : i32
    %c0_i32_0 = arith.constant 0 : i32
    %c0_i32_1 = arith.constant 0 : i32
    return %c0_i32, %c0_i32_0 : i32, i32
  }
  func.func @transform_17(%arg0: i32) -> (i32, i32) {
    %c0_i32 = arith.constant 0 : i32
    %c0_i32_0 = arith.constant 0 : i32
    %c0_i32_1 = arith.constant 0 : i32
    return %c0_i32, %c0_i32_0 : i32, i32
  }
}

</mosaic_0001>

<llo_original>
// kernel: gocnn_forward.1
$region0: #{gocnn_forward.1}
  #allocation0 [shape = 'u32[]', space=smem, size = 0x4, offset = 0x4, fixed_abs, tag = 'smem constant byte address 0x4 - core index']
  #allocation1 [shape = 'u32[72,128]{1,0:T(1,128)}', space=vmem, size = 0x9000, scoped, tag = 'internal scratch']
  %s0 = inlined_call_operand.vmem [shape: f32[22,128], index: 0, kind: input, shape index: {}]
  %s1 = inlined_call_operand.vmem [shape: f32[1,128], index: 1, kind: input, shape index: {}]
  %s2 = inlined_call_operand.vmem [shape: bf16[9,64,22], index: 2, kind: input, shape index: {}]
  %s3 = inlined_call_operand.vmem [shape: f32[64,1], index: 3, kind: input, shape index: {}]
  %s4 = inlined_call_operand.vmem [shape: bf16[9,64,64], index: 4, kind: input, shape index: {}]
  %s5 = inlined_call_operand.vmem [shape: f32[64,1], index: 5, kind: input, shape index: {}]
  %s6 = inlined_call_operand.vmem [shape: bf16[9,64,86], index: 6, kind: input, shape index: {}]
  %s7 = inlined_call_operand.vmem [shape: f32[64,1], index: 7, kind: input, shape index: {}]
  %s8 = inlined_call_operand.vmem [shape: bf16[6,86], index: 8, kind: input, shape index: {}]
  %s9 = inlined_call_operand.vmem [shape: f32[6,1], index: 9, kind: input, shape index: {}]
  %s10 = inlined_call_operand.vmem [shape: bf16[128,256], index: 10, kind: input, shape index: {}]
  %s11 = inlined_call_operand.vmem [shape: f32[1,256], index: 11, kind: input, shape index: {}]
  %s12 = inlined_call_operand.vmem [shape: bf16[256,128], index: 12, kind: input, shape index: {}]
  %s13 = inlined_call_operand.vmem [shape: f32[1,128], index: 13, kind: input, shape index: {}]
  %s14 = inlined_call_operand.vmem [shape: bf16[128,128], index: 14, kind: input, shape index: {}]
  %s15 = inlined_call_operand.vmem [shape: bf16[128,128], index: 15, kind: input, shape index: {}]
  %s16 = inlined_call_operand.vmem [shape: f32[1,128], index: 16, kind: input, shape index: {}]
  %s17 = inlined_call_operand.vmem [shape: f32[2,128], index: 17, kind: output, shape index: {}]
  %s18 = sld [smem:[#allocation0]]
  $region78: #{gocnn_forward.1} parent=0
    _
  %s20 = ssub.s32 1, %s18
  %s21 = scalar_select 0, %s20, %s18
  // Predicated region
  $region2: #{gocnn_forward.1} parent=0 // pred_check
    _
  $region3: #{gocnn_forward.1} parent=0 // pred_check_branch
    %23 = sbr.rel (0) target = $region5
  $region4: #{gocnn_forward.1} parent=0 // pred_region
    _
  $region5: #{gocnn_forward.1} parent=0 // pred_fallthru
    _
  // Predicated region
  $region6: #{gocnn_forward.1} parent=0 // pred_check
    _
  $region7: #{gocnn_forward.1} parent=0 // pred_check_branch
    %25 = sbr.rel (0) target = $region9
  $region8: #{gocnn_forward.1} parent=0 // pred_region
    _
  $region9: #{gocnn_forward.1} parent=0 // pred_fallthru
    _
  // Predicated region
  $region10: #{gocnn_forward.1} parent=0 // pred_check
    _
  $region11: #{gocnn_forward.1} parent=0 // pred_check_branch
    %27 = sbr.rel (0) target = $region13
  $region12: #{gocnn_forward.1} parent=0 // pred_region
    _
  $region13: #{gocnn_forward.1} parent=0 // pred_fallthru
    _
  // Predicated region
  $region14: #{gocnn_forward.1} parent=0 // pred_check
    _
  $region15: #{gocnn_forward.1} parent=0 // pred_check_branch
    %29 = sbr.rel (0) target = $region17
  $region16: #{gocnn_forward.1} parent=0 // pred_region
    _
  $region17: #{gocnn_forward.1} parent=0 // pred_fallthru
    _
  // Predicated region
  $region18: #{gocnn_forward.1} parent=0 // pred_check
    _
  $region19: #{gocnn_forward.1} parent=0 // pred_check_branch
    %31 = sbr.rel (0) target = $region21
  $region20: #{gocnn_forward.1} parent=0 // pred_region
    _
  $region21: #{gocnn_forward.1} parent=0 // pred_fallthru
    _
  // Predicated region
  $region22: #{gocnn_forward.1} parent=0 // pred_check
    _
  $region23: #{gocnn_forward.1} parent=0 // pred_check_branch
    %33 = sbr.rel (0) target = $region25
  $region24: #{gocnn_forward.1} parent=0 // pred_region
    _
  $region25: #{gocnn_forward.1} parent=0 // pred_fallthru
    _
  // Predicated region
  $region26: #{gocnn_forward.1} parent=0 // pred_check
    _
  $region27: #{gocnn_forward.1} parent=0 // pred_check_branch
    %35 = sbr.rel (0) target = $region29
  $region28: #{gocnn_forward.1} parent=0 // pred_region
    _
  $region29: #{gocnn_forward.1} parent=0 // pred_fallthru
    _
  // Predicated region
  $region30: #{gocnn_forward.1} parent=0 // pred_check
    _
  $region31: #{gocnn_forward.1} parent=0 // pred_check_branch
    %37 = sbr.rel (0) target = $region33
  $region32: #{gocnn_forward.1} parent=0 // pred_region
    _
  $region33: #{gocnn_forward.1} parent=0 // pred_fallthru
    _
  // Predicated region
  $region34: #{gocnn_forward.1} parent=0 // pred_check
    _
  $region35: #{gocnn_forward.1} parent=0 // pred_check_branch
    %39 = sbr.rel (0) target = $region37
  $region36: #{gocnn_forward.1} parent=0 // pred_region
    _
  $region37: #{gocnn_forward.1} parent=0 // pred_fallthru
    _
  // Predicated region
  $region38: #{gocnn_forward.1} parent=0 // pred_check
    _
  $region39: #{gocnn_forward.1} parent=0 // pred_check_branch
    %41 = sbr.rel (0) target = $region41
  $region40: #{gocnn_forward.1} parent=0 // pred_region
    _
  $region41: #{gocnn_forward.1} parent=0 // pred_fallthru
    _
  // Predicated region
  $region42: #{gocnn_forward.1} parent=0 // pred_check
    _
  $region43: #{gocnn_forward.1} parent=0 // pred_check_branch
    %43 = sbr.rel (0) target = $region45
  $region44: #{gocnn_forward.1} parent=0 // pred_region
    _
  $region45: #{gocnn_forward.1} parent=0 // pred_fallthru
    _
  // Predicated region
  $region46: #{gocnn_forward.1} parent=0 // pred_check
    _
  $region47: #{gocnn_forward.1} parent=0 // pred_check_branch
    %45 = sbr.rel (0) target = $region49
  $region48: #{gocnn_forward.1} parent=0 // pred_region
    _
  $region49: #{gocnn_forward.1} parent=0 // pred_fallthru
    _
  // Predicated region
  $region50: #{gocnn_forward.1} parent=0 // pred_check
    _
  $region51: #{gocnn_forward.1} parent=0 // pred_check_branch
    %47 = sbr.rel (0) target = $region53
  $region52: #{gocnn_forward.1} parent=0 // pred_region
    _
  $region53: #{gocnn_forward.1} parent=0 // pred_fallthru
    _
  // Predicated region
  $region54: #{gocnn_forward.1} parent=0 // pred_check
    _
  $region55: #{gocnn_forward.1} parent=0 // pred_check_branch
    %49 = sbr.rel (0) target = $region57
  $region56: #{gocnn_forward.1} parent=0 // pred_region
    _
  $region57: #{gocnn_forward.1} parent=0 // pred_fallthru
    _
  // Predicated region
  $region58: #{gocnn_forward.1} parent=0 // pred_check
    _
  $region59: #{gocnn_forward.1} parent=0 // pred_check_branch
    %51 = sbr.rel (0) target = $region61
  $region60: #{gocnn_forward.1} parent=0 // pred_region
    _
  $region61: #{gocnn_forward.1} parent=0 // pred_fallthru
    _
  // Predicated region
  $region62: #{gocnn_forward.1} parent=0 // pred_check
    _
  $region63: #{gocnn_forward.1} parent=0 // pred_check_branch
    %53 = sbr.rel (0) target = $region65
  $region64: #{gocnn_forward.1} parent=0 // pred_region
    _
  $region65: #{gocnn_forward.1} parent=0 // pred_fallthru
    _
  // Predicated region
  $region66: #{gocnn_forward.1} parent=0 // pred_check
    _
  $region67: #{gocnn_forward.1} parent=0 // pred_check_branch
    %55 = sbr.rel (0) target = $region69
  $region68: #{gocnn_forward.1} parent=0 // pred_region
    _
  $region69: #{gocnn_forward.1} parent=0 // pred_fallthru
    _
  %v57 = vld [vmem:[%s1] sm:$0x1]
  %v58 = vld [vmem:[%s0] sm:$0xff]
  %v59 = vld [vmem:[%s0 + $0x8] sm:$0xff]
  %v60 = vld [vmem:[%s0 + $0x10] sm:$0x3f]
  %61 = vrot.lane.b32.xlu0 %v58, 12
  %v62 = vpop.permute.xlu0 %61
  %63 = vrot.lane.b32.xlu0 %v59, 12
  %v64 = vpop.permute.xlu0 %63
  %65 = vrot.lane.b32.xlu0 %v60, 12
  %v66 = vpop.permute.xlu0 %65
  %v67 = vld [vmem:[%s2] sm:$0xf]
  %v68 = vld [vmem:[%s2 + $0x4] sm:$0xf]
  %v69 = vld [vmem:[%s2 + $0x8] sm:$0xf]
  %v70 = vld [vmem:[%s2 + $0xc] sm:$0xf]
  %v71 = vld [vmem:[%s2 + $0x10] sm:$0xf]
  %v72 = vld [vmem:[%s2 + $0x14] sm:$0xf]
  %v73 = vld [vmem:[%s2 + $0x18] sm:$0xf]
  %v74 = vld [vmem:[%s2 + $0x1c] sm:$0xf]
  %v75 = vpack.c.bf16 %v64, %v62
  %v76 = vpack.c.bf16 %v66, %v66
  %77 = vrot.lane.b32.xlu0 %v58, 11
  %v78 = vpop.permute.xlu0 %77
  %79 = vrot.lane.b32.xlu0 %v59, 11
  %v80 = vpop.permute.xlu0 %79
  %81 = vrot.lane.b32.xlu0 %v60, 11
  %v82 = vpop.permute.xlu0 %81
  %s83 = scalar_lea.vmem %s2, 32
  %v84 = vld [vmem:[%s83] sm:$0xf]
  %v85 = vld [vmem:[%s83 + $0x4] sm:$0xf]
  %v86 = vld [vmem:[%s83 + $0x8] sm:$0xf]
  %v87 = vld [vmem:[%s83 + $0xc] sm:$0xf]
  %v88 = vld [vmem:[%s83 + $0x10] sm:$0xf]
  %v89 = vld [vmem:[%s83 + $0x14] sm:$0xf]
  %v90 = vld [vmem:[%s83 + $0x18] sm:$0xf]
  %v91 = vld [vmem:[%s83 + $0x1c] sm:$0xf]
  %v92 = vpack.c.bf16 %v80, %v78
  %v93 = vpack.c.bf16 %v82, %v82
  %v102 = vunpack.c.l.b16 %v84
  %v103 = vunpack.c.l.b16 %v85
  %v104 = vunpack.c.l.b16 %v86
  %v105 = vunpack.c.l.b16 %v87
  %v106 = vunpack.c.l.b16 %v88
  %v107 = vunpack.c.l.b16 %v89
  %v108 = vunpack.c.l.b16 %v90
  %v109 = vunpack.c.l.b16 %v91
  %v110 = vpack.c.b16 %v103, %v102
  %v111 = vpack.c.b16 %v105, %v104
  %v112 = vpack.c.b16 %v107, %v106
  %v113 = vpack.c.b16 %v109, %v108
  %vm114 = vcmask 179200
  %v116 = vsel %vm114, %v110, 0
  %v119 = vsel %vm114, %v111, 0
  %v122 = vsel %vm114, %v112, 0
  %v125 = vsel %vm114, %v113, 0
  %vm127 = vcmask 1042432
  %v129 = vsel %vm127, %v93, 0
  %131 = vmatpush.bf16.msra.mxu0 0
  %132 = vmatpush.bf16.msra.mxu0 0
  %133 = vmatpush.bf16.msra.mxu0 0
  %134 = vmatpush.bf16.msra.mxu0 0
  %135 = vmatpush.bf16.msra.mxu0 0
  %136 = vmatpush.bf16.msra.mxu0 0
  %137 = vmatpush.bf16.msra.mxu0 %v129
  %138 = vmatpush.bf16.msra.mxu0 %v92
  %139 = vmatmul.bf16.gmra.mxu0 %v116
  %v140 = vpop.f32.mrf.mxu0
  %v141 = vadd.f32 0.0, %v140
  %v142 = vpop.f32.mrf.mxu0
  %v143 = vadd.f32 0.0, %v142
  %144 = vmatmul.bf16.gmra.mxu0 %v119
  %v145 = vpop.f32.mrf.mxu0
  %v146 = vadd.f32 0.0, %v145
  %v147 = vpop.f32.mrf.mxu0
  %v148 = vadd.f32 0.0, %v147
  %149 = vmatmul.bf16.gmra.mxu0 %v122
  %v150 = vpop.f32.mrf.mxu0
  %v151 = vadd.f32 0.0, %v150
  %v152 = vpop.f32.mrf.mxu0
  %v153 = vadd.f32 0.0, %v152
  %154 = vmatmul.bf16.gmra.mxu0 %v125
  %v155 = vpop.f32.mrf.mxu0
  %v156 = vadd.f32 0.0, %v155
  %v157 = vpop.f32.mrf.mxu0
  %v158 = vadd.f32 0.0, %v157
  %159 = vdwg.mxu0
  %v168 = vunpack.c.l.b16 %v67
  %v169 = vunpack.c.l.b16 %v68
  %v170 = vunpack.c.l.b16 %v69
  %v171 = vunpack.c.l.b16 %v70
  %v172 = vunpack.c.l.b16 %v71
  %v173 = vunpack.c.l.b16 %v72
  %v174 = vunpack.c.l.b16 %v73
  %v175 = vunpack.c.l.b16 %v74
  %v176 = vpack.c.b16 %v169, %v168
  %v177 = vpack.c.b16 %v171, %v170
  %v178 = vpack.c.b16 %v173, %v172
  %v179 = vpack.c.b16 %v175, %v174
  %v181 = vsel %vm114, %v176, 0
  %v184 = vsel %vm114, %v177, 0
  %v187 = vsel %vm114, %v178, 0
  %v190 = vsel %vm114, %v179, 0
  %v193 = vsel %vm127, %v76, 0
  %195 = vmatpush.bf16.msra.mxu0 0
  %196 = vmatpush.bf16.msra.mxu0 0
  %197 = vmatpush.bf16.msra.mxu0 0
  %198 = vmatpush.bf16.msra.mxu0 0
  %199 = vmatpush.bf16.msra.mxu0 0
  %200 = vmatpush.bf16.msra.mxu0 0
  %201 = vmatpush.bf16.msra.mxu0 %v193
  %202 = vmatpush.bf16.msra.mxu0 %v75
  %203 = vmatmul.bf16.gmra.mxu0 %v181
  %v204 = vpop.f32.mrf.mxu0
  %v205 = vadd.f32 %v141, %v204
  %v206 = vpop.f32.mrf.mxu0
  %v207 = vadd.f32 %v143, %v206
  %208 = vmatmul.bf16.gmra.mxu0 %v184
  %v209 = vpop.f32.mrf.mxu0
  %v210 = vadd.f32 %v146, %v209
  %v211 = vpop.f32.mrf.mxu0
  %v212 = vadd.f32 %v148, %v211
  %213 = vmatmul.bf16.gmra.mxu0 %v187
  %v214 = vpop.f32.mrf.mxu0
  %v215 = vadd.f32 %v151, %v214
  %v216 = vpop.f32.mrf.mxu0
  %v217 = vadd.f32 %v153, %v216
  %218 = vmatmul.bf16.gmra.mxu0 %v190
  %v219 = vpop.f32.mrf.mxu0
  %v220 = vadd.f32 %v156, %v219
  %v221 = vpop.f32.mrf.mxu0
  %v222 = vadd.f32 %v158, %v221
  %223 = vdwg.mxu0
  %224 = vrot.lane.b32.xlu0 %v58, 10
  %v225 = vpop.permute.xlu0 %224
  %226 = vrot.lane.b32.xlu0 %v59, 10
  %v227 = vpop.permute.xlu0 %226
  %228 = vrot.lane.b32.xlu0 %v60, 10
  %v229 = vpop.permute.xlu0 %228
  %s230 = scalar_lea.vmem %s2, 64
  %v231 = vld [vmem:[%s230] sm:$0xf]
  %v232 = vld [vmem:[%s230 + $0x4] sm:$0xf]
  %v233 = vld [vmem:[%s230 + $0x8] sm:$0xf]
  %v234 = vld [vmem:[%s230 + $0xc] sm:$0xf]
  %v235 = vld [vmem:[%s230 + $0x10] sm:$0xf]
  %v236 = vld [vmem:[%s230 + $0x14] sm:$0xf]
  %v237 = vld [vmem:[%s230 + $0x18] sm:$0xf]
  %v238 = vld [vmem:[%s230 + $0x1c] sm:$0xf]
  %v239 = vpack.c.bf16 %v227, %v225
  %v240 = vpack.c.bf16 %v229, %v229
  %v249 = vunpack.c.l.b16 %v231
  %v250 = vunpack.c.l.b16 %v232
  %v251 = vunpack.c.l.b16 %v233
  %v252 = vunpack.c.l.b16 %v234
  %v253 = vunpack.c.l.b16 %v235
  %v254 = vunpack.c.l.b16 %v236
  %v255 = vunpack.c.l.b16 %v237
  %v256 = vunpack.c.l.b16 %v238
  %v257 = vpack.c.b16 %v250, %v249
  %v258 = vpack.c.b16 %v252, %v251
  %v259 = vpack.c.b16 %v254, %v253
  %v260 = vpack.c.b16 %v256, %v255
  %v262 = vsel %vm114, %v257, 0
  %v265 = vsel %vm114, %v258, 0
  %v268 = vsel %vm114, %v259, 0
  %v271 = vsel %vm114, %v260, 0
  %v274 = vsel %vm127, %v240, 0
  %276 = vmatpush.bf16.msra.mxu0 0
  %277 = vmatpush.bf16.msra.mxu0 0
  %278 = vmatpush.bf16.msra.mxu0 0
  %279 = vmatpush.bf16.msra.mxu0 0
  %280 = vmatpush.bf16.msra.mxu0 0
  %281 = vmatpush.bf16.msra.mxu0 0
  %282 = vmatpush.bf16.msra.mxu0 %v274
  %283 = vmatpush.bf16.msra.mxu0 %v239
  %284 = vmatmul.bf16.gmra.mxu0 %v262
  %v285 = vpop.f32.mrf.mxu0
  %v286 = vadd.f32 0.0, %v285
  %v287 = vpop.f32.mrf.mxu0
  %v288 = vadd.f32 0.0, %v287
  %289 = vmatmul.bf16.gmra.mxu0 %v265
  %v290 = vpop.f32.mrf.mxu0
  %v291 = vadd.f32 0.0, %v290
  %v292 = vpop.f32.mrf.mxu0
  %v293 = vadd.f32 0.0, %v292
  %294 = vmatmul.bf16.gmra.mxu0 %v268
  %v295 = vpop.f32.mrf.mxu0
  %v296 = vadd.f32 0.0, %v295
  %v297 = vpop.f32.mrf.mxu0
  %v298 = vadd.f32 0.0, %v297
  %299 = vmatmul.bf16.gmra.mxu0 %v271
  %v300 = vpop.f32.mrf.mxu0
  %v301 = vadd.f32 0.0, %v300
  %v302 = vpop.f32.mrf.mxu0
  %v303 = vadd.f32 0.0, %v302
  %304 = vdwg.mxu0
  %v305 = vadd.f32 %v205, %v286
  %v306 = vadd.f32 %v207, %v288
  %v307 = vadd.f32 %v210, %v291
  %v308 = vadd.f32 %v212, %v293
  %v309 = vadd.f32 %v215, %v296
  %v310 = vadd.f32 %v217, %v298
  %v311 = vadd.f32 %v220, %v301
  %v312 = vadd.f32 %v222, %v303
  %313 = vrot.lane.b32.xlu0 %v58, 1
  %v314 = vpop.permute.xlu0 %313
  %315 = vrot.lane.b32.xlu0 %v59, 1
  %v316 = vpop.permute.xlu0 %315
  %317 = vrot.lane.b32.xlu0 %v60, 1
  %v318 = vpop.permute.xlu0 %317
  %s319 = scalar_lea.vmem %s2, 96
  %v320 = vld [vmem:[%s319] sm:$0xf]
  %v321 = vld [vmem:[%s319 + $0x4] sm:$0xf]
  %v322 = vld [vmem:[%s319 + $0x8] sm:$0xf]
  %v323 = vld [vmem:[%s319 + $0xc] sm:$0xf]
  %v324 = vld [vmem:[%s319 + $0x10] sm:$0xf]
  %v325 = vld [vmem:[%s319 + $0x14] sm:$0xf]
  %v326 = vld [vmem:[%s319 + $0x18] sm:$0xf]
  %v327 = vld [vmem:[%s319 + $0x1c] sm:$0xf]
  %v328 = vpack.c.bf16 %v316, %v314
  %v329 = vpack.c.bf16 %v318, %v318
  %v338 = vunpack.c.l.b16 %v320
  %v339 = vunpack.c.l.b16 %v321
  %v340 = vunpack.c.l.b16 %v322
  %v341 = vunpack.c.l.b16 %v323
  %v342 = vunpack.c.l.b16 %v324
  %v343 = vunpack.c.l.b16 %v325
  %v344 = vunpack.c.l.b16 %v326
  %v345 = vunpack.c.l.b16 %v327
  %v346 = vpack.c.b16 %v339, %v338
  %v347 = vpack.c.b16 %v341, %v340
  %v348 = vpack.c.b16 %v343, %v342
  %v349 = vpack.c.b16 %v345, %v344
  %v351 = vsel %vm114, %v346, 0
  %v354 = vsel %vm114, %v347, 0
  %v357 = vsel %vm114, %v348, 0
  %v360 = vsel %vm114, %v349, 0
  %v363 = vsel %vm127, %v329, 0
  %365 = vmatpush.bf16.msra.mxu0 0
  %366 = vmatpush.bf16.msra.mxu0 0
  %367 = vmatpush.bf16.msra.mxu0 0
  %368 = vmatpush.bf16.msra.mxu0 0
  %369 = vmatpush.bf16.msra.mxu0 0
  %370 = vmatpush.bf16.msra.mxu0 0
  %371 = vmatpush.bf16.msra.mxu0 %v363
  %372 = vmatpush.bf16.msra.mxu0 %v328
  %373 = vmatmul.bf16.gmra.mxu0 %v351
  %v374 = vpop.f32.mrf.mxu0
  %v375 = vadd.f32 0.0, %v374
  %v376 = vpop.f32.mrf.mxu0
  %v377 = vadd.f32 0.0, %v376
  %378 = vmatmul.bf16.gmra.mxu0 %v354
  %v379 = vpop.f32.mrf.mxu0
  %v380 = vadd.f32 0.0, %v379
  %v381 = vpop.f32.mrf.mxu0
  %v382 = vadd.f32 0.0, %v381
  %383 = vmatmul.bf16.gmra.mxu0 %v357
  %v384 = vpop.f32.mrf.mxu0
  %v385 = vadd.f32 0.0, %v384
  %v386 = vpop.f32.mrf.mxu0
  %v387 = vadd.f32 0.0, %v386
  %388 = vmatmul.bf16.gmra.mxu0 %v360
  %v389 = vpop.f32.mrf.mxu0
  %v390 = vadd.f32 0.0, %v389
  %v391 = vpop.f32.mrf.mxu0
  %v392 = vadd.f32 0.0, %v391
  %393 = vdwg.mxu0
  %v394 = vadd.f32 %v305, %v375
  %v395 = vadd.f32 %v306, %v377
  %v396 = vadd.f32 %v307, %v380
  %v397 = vadd.f32 %v308, %v382
  %v398 = vadd.f32 %v309, %v385
  %v399 = vadd.f32 %v310, %v387
  %v400 = vadd.f32 %v311, %v390
  %v401 = vadd.f32 %v312, %v392
  %s402 = scalar_lea.vmem %s2, 128
  %v403 = vld [vmem:[%s402] sm:$0xf]
  %v404 = vld [vmem:[%s402 + $0x4] sm:$0xf]
  %v405 = vld [vmem:[%s402 + $0x8] sm:$0xf]
  %v406 = vld [vmem:[%s402 + $0xc] sm:$0xf]
  %v407 = vld [vmem:[%s402 + $0x10] sm:$0xf]
  %v408 = vld [vmem:[%s402 + $0x14] sm:$0xf]
  %v409 = vld [vmem:[%s402 + $0x18] sm:$0xf]
  %v410 = vld [vmem:[%s402 + $0x1c] sm:$0xf]
  %v411 = vpack.c.bf16 %v59, %v58
  %v412 = vpack.c.bf16 %v60, %v60
  %v421 = vunpack.c.l.b16 %v403
  %v422 = vunpack.c.l.b16 %v404
  %v423 = vunpack.c.l.b16 %v405
  %v424 = vunpack.c.l.b16 %v406
  %v425 = vunpack.c.l.b16 %v407
  %v426 = vunpack.c.l.b16 %v408
  %v427 = vunpack.c.l.b16 %v409
  %v428 = vunpack.c.l.b16 %v410
  %v429 = vpack.c.b16 %v422, %v421
  %v430 = vpack.c.b16 %v424, %v423
  %v431 = vpack.c.b16 %v426, %v425
  %v432 = vpack.c.b16 %v428, %v427
  %v434 = vsel %vm114, %v429, 0
  %v437 = vsel %vm114, %v430, 0
  %v440 = vsel %vm114, %v431, 0
  %v443 = vsel %vm114, %v432, 0
  %v446 = vsel %vm127, %v412, 0
  %448 = vmatpush.bf16.msra.mxu0 0
  %449 = vmatpush.bf16.msra.mxu0 0
  %450 = vmatpush.bf16.msra.mxu0 0
  %451 = vmatpush.bf16.msra.mxu0 0
  %452 = vmatpush.bf16.msra.mxu0 0
  %453 = vmatpush.bf16.msra.mxu0 0
  %454 = vmatpush.bf16.msra.mxu0 %v446
  %455 = vmatpush.bf16.msra.mxu0 %v411
  %456 = vmatmul.bf16.gmra.mxu0 %v434
  %v457 = vpop.f32.mrf.mxu0
  %v458 = vadd.f32 0.0, %v457
  %v459 = vpop.f32.mrf.mxu0
  %v460 = vadd.f32 0.0, %v459
  %461 = vmatmul.bf16.gmra.mxu0 %v437
  %v462 = vpop.f32.mrf.mxu0
  %v463 = vadd.f32 0.0, %v462
  %v464 = vpop.f32.mrf.mxu0
  %v465 = vadd.f32 0.0, %v464
  %466 = vmatmul.bf16.gmra.mxu0 %v440
  %v467 = vpop.f32.mrf.mxu0
  %v468 = vadd.f32 0.0, %v467
  %v469 = vpop.f32.mrf.mxu0
  %v470 = vadd.f32 0.0, %v469
  %471 = vmatmul.bf16.gmra.mxu0 %v443
  %v472 = vpop.f32.mrf.mxu0
  %v473 = vadd.f32 0.0, %v472
  %v474 = vpop.f32.mrf.mxu0
  %v475 = vadd.f32 0.0, %v474
  %476 = vdwg.mxu0
  %v477 = vadd.f32 %v394, %v458
  %v478 = vadd.f32 %v395, %v460
  %v479 = vadd.f32 %v396, %v463
  %v480 = vadd.f32 %v397, %v465
  %v481 = vadd.f32 %v398, %v468
  %v482 = vadd.f32 %v399, %v470
  %v483 = vadd.f32 %v400, %v473
  %v484 = vadd.f32 %v401, %v475
  %485 = vrot.lane.b32.xlu0 %v58, 127
  %v486 = vpop.permute.xlu0 %485
  %487 = vrot.lane.b32.xlu0 %v59, 127
  %v488 = vpop.permute.xlu0 %487
  %489 = vrot.lane.b32.xlu0 %v60, 127
  %v490 = vpop.permute.xlu0 %489
  %s491 = scalar_lea.vmem %s2, 160
  %v492 = vld [vmem:[%s491] sm:$0xf]
  %v493 = vld [vmem:[%s491 + $0x4] sm:$0xf]
  %v494 = vld [vmem:[%s491 + $0x8] sm:$0xf]
  %v495 = vld [vmem:[%s491 + $0xc] sm:$0xf]
  %v496 = vld [vmem:[%s491 + $0x10] sm:$0xf]
  %v497 = vld [vmem:[%s491 + $0x14] sm:$0xf]
  %v498 = vld [vmem:[%s491 + $0x18] sm:$0xf]
  %v499 = vld [vmem:[%s491 + $0x1c] sm:$0xf]
  %v500 = vpack.c.bf16 %v488, %v486
  %v501 = vpack.c.bf16 %v490, %v490
  %v510 = vunpack.c.l.b16 %v492
  %v511 = vunpack.c.l.b16 %v493
  %v512 = vunpack.c.l.b16 %v494
  %v513 = vunpack.c.l.b16 %v495
  %v514 = vunpack.c.l.b16 %v496
  %v515 = vunpack.c.l.b16 %v497
  %v516 = vunpack.c.l.b16 %v498
  %v517 = vunpack.c.l.b16 %v499
  %v518 = vpack.c.b16 %v511, %v510
  %v519 = vpack.c.b16 %v513, %v512
  %v520 = vpack.c.b16 %v515, %v514
  %v521 = vpack.c.b16 %v517, %v516
  %v523 = vsel %vm114, %v518, 0
  %v526 = vsel %vm114, %v519, 0
  %v529 = vsel %vm114, %v520, 0
  %v532 = vsel %vm114, %v521, 0
  %v535 = vsel %vm127, %v501, 0
  %537 = vmatpush.bf16.msra.mxu0 0
  %538 = vmatpush.bf16.msra.mxu0 0
  %539 = vmatpush.bf16.msra.mxu0 0
  %540 = vmatpush.bf16.msra.mxu0 0
  %541 = vmatpush.bf16.msra.mxu0 0
  %542 = vmatpush.bf16.msra.mxu0 0
  %543 = vmatpush.bf16.msra.mxu0 %v535
  %544 = vmatpush.bf16.msra.mxu0 %v500
  %545 = vmatmul.bf16.gmra.mxu0 %v523
  %v546 = vpop.f32.mrf.mxu0
  %v547 = vadd.f32 0.0, %v546
  %v548 = vpop.f32.mrf.mxu0
  %v549 = vadd.f32 0.0, %v548
  %550 = vmatmul.bf16.gmra.mxu0 %v526
  %v551 = vpop.f32.mrf.mxu0
  %v552 = vadd.f32 0.0, %v551
  %v553 = vpop.f32.mrf.mxu0
  %v554 = vadd.f32 0.0, %v553
  %555 = vmatmul.bf16.gmra.mxu0 %v529
  %v556 = vpop.f32.mrf.mxu0
  %v557 = vadd.f32 0.0, %v556
  %v558 = vpop.f32.mrf.mxu0
  %v559 = vadd.f32 0.0, %v558
  %560 = vmatmul.bf16.gmra.mxu0 %v532
  %v561 = vpop.f32.mrf.mxu0
  %v562 = vadd.f32 0.0, %v561
  %v563 = vpop.f32.mrf.mxu0
  %v564 = vadd.f32 0.0, %v563
  %565 = vdwg.mxu0
  %v566 = vadd.f32 %v477, %v547
  %v567 = vadd.f32 %v478, %v549
  %v568 = vadd.f32 %v479, %v552
  %v569 = vadd.f32 %v480, %v554
  %v570 = vadd.f32 %v481, %v557
  %v571 = vadd.f32 %v482, %v559
  %v572 = vadd.f32 %v483, %v562
  %v573 = vadd.f32 %v484, %v564
  %574 = vrot.lane.b32.xlu0 %v58, 118
  %v575 = vpop.permute.xlu0 %574
  %576 = vrot.lane.b32.xlu0 %v59, 118
  %v577 = vpop.permute.xlu0 %576
  %578 = vrot.lane.b32.xlu0 %v60, 118
  %v579 = vpop.permute.xlu0 %578
  %s580 = scalar_lea.vmem %s2, 192
  %v581 = vld [vmem:[%s580] sm:$0xf]
  %v582 = vld [vmem:[%s580 + $0x4] sm:$0xf]
  %v583 = vld [vmem:[%s580 + $0x8] sm:$0xf]
  %v584 = vld [vmem:[%s580 + $0xc] sm:$0xf]
  %v585 = vld [vmem:[%s580 + $0x10] sm:$0xf]
  %v586 = vld [vmem:[%s580 + $0x14] sm:$0xf]
  %v587 = vld [vmem:[%s580 + $0x18] sm:$0xf]
  %v588 = vld [vmem:[%s580 + $0x1c] sm:$0xf]
  %v589 = vpack.c.bf16 %v577, %v575
  %v590 = vpack.c.bf16 %v579, %v579
  %v599 = vunpack.c.l.b16 %v581
  %v600 = vunpack.c.l.b16 %v582
  %v601 = vunpack.c.l.b16 %v583
  %v602 = vunpack.c.l.b16 %v584
  %v603 = vunpack.c.l.b16 %v585
  %v604 = vunpack.c.l.b16 %v586
  %v605 = vunpack.c.l.b16 %v587
  %v606 = vunpack.c.l.b16 %v588
  %v607 = vpack.c.b16 %v600, %v599
  %v608 = vpack.c.b16 %v602, %v601
  %v609 = vpack.c.b16 %v604, %v603
  %v610 = vpack.c.b16 %v606, %v605
  %v612 = vsel %vm114, %v607, 0
  %v615 = vsel %vm114, %v608, 0
  %v618 = vsel %vm114, %v609, 0
  %v621 = vsel %vm114, %v610, 0
  %v624 = vsel %vm127, %v590, 0
  %626 = vmatpush.bf16.msra.mxu0 0
  %627 = vmatpush.bf16.msra.mxu0 0
  %628 = vmatpush.bf16.msra.mxu0 0
  %629 = vmatpush.bf16.msra.mxu0 0
  %630 = vmatpush.bf16.msra.mxu0 0
  %631 = vmatpush.bf16.msra.mxu0 0
  %632 = vmatpush.bf16.msra.mxu0 %v624
  %633 = vmatpush.bf16.msra.mxu0 %v589
  %634 = vmatmul.bf16.gmra.mxu0 %v612
  %v635 = vpop.f32.mrf.mxu0
  %v636 = vadd.f32 0.0, %v635
  %v637 = vpop.f32.mrf.mxu0
  %v638 = vadd.f32 0.0, %v637
  %639 = vmatmul.bf16.gmra.mxu0 %v615
  %v640 = vpop.f32.mrf.mxu0
  %v641 = vadd.f32 0.0, %v640
  %v642 = vpop.f32.mrf.mxu0
  %v643 = vadd.f32 0.0, %v642
  %644 = vmatmul.bf16.gmra.mxu0 %v618
  %v645 = vpop.f32.mrf.mxu0
  %v646 = vadd.f32 0.0, %v645
  %v647 = vpop.f32.mrf.mxu0
  %v648 = vadd.f32 0.0, %v647
  %649 = vmatmul.bf16.gmra.mxu0 %v621
  %v650 = vpop.f32.mrf.mxu0
  %v651 = vadd.f32 0.0, %v650
  %v652 = vpop.f32.mrf.mxu0
  %v653 = vadd.f32 0.0, %v652
  %654 = vdwg.mxu0
  %v655 = vadd.f32 %v566, %v636
  %v656 = vadd.f32 %v567, %v638
  %v657 = vadd.f32 %v568, %v641
  %v658 = vadd.f32 %v569, %v643
  %v659 = vadd.f32 %v570, %v646
  %v660 = vadd.f32 %v571, %v648
  %v661 = vadd.f32 %v572, %v651
  %v662 = vadd.f32 %v573, %v653
  %663 = vrot.lane.b32.xlu0 %v58, 117
  %v664 = vpop.permute.xlu0 %663
  %665 = vrot.lane.b32.xlu0 %v59, 117
  %v666 = vpop.permute.xlu0 %665
  %667 = vrot.lane.b32.xlu0 %v60, 117
  %v668 = vpop.permute.xlu0 %667
  %s669 = scalar_lea.vmem %s2, 224
  %v670 = vld [vmem:[%s669] sm:$0xf]
  %v671 = vld [vmem:[%s669 + $0x4] sm:$0xf]
  %v672 = vld [vmem:[%s669 + $0x8] sm:$0xf]
  %v673 = vld [vmem:[%s669 + $0xc] sm:$0xf]
  %v674 = vld [vmem:[%s669 + $0x10] sm:$0xf]
  %v675 = vld [vmem:[%s669 + $0x14] sm:$0xf]
  %v676 = vld [vmem:[%s669 + $0x18] sm:$0xf]
  %v677 = vld [vmem:[%s669 + $0x1c] sm:$0xf]
  %v678 = vpack.c.bf16 %v666, %v664
  %v679 = vpack.c.bf16 %v668, %v668
  %v688 = vunpack.c.l.b16 %v670
  %v689 = vunpack.c.l.b16 %v671
  %v690 = vunpack.c.l.b16 %v672
  %v691 = vunpack.c.l.b16 %v673
  %v692 = vunpack.c.l.b16 %v674
  %v693 = vunpack.c.l.b16 %v675
  %v694 = vunpack.c.l.b16 %v676
  %v695 = vunpack.c.l.b16 %v677
  %v696 = vpack.c.b16 %v689, %v688
  %v697 = vpack.c.b16 %v691, %v690
  %v698 = vpack.c.b16 %v693, %v692
  %v699 = vpack.c.b16 %v695, %v694
  %v701 = vsel %vm114, %v696, 0
  %v704 = vsel %vm114, %v697, 0
  %v707 = vsel %vm114, %v698, 0
  %v710 = vsel %vm114, %v699, 0
  %v713 = vsel %vm127, %v679, 0
  %715 = vmatpush.bf16.msra.mxu0 0
  %716 = vmatpush.bf16.msra.mxu0 0
  %717 = vmatpush.bf16.msra.mxu0 0
  %718 = vmatpush.bf16.msra.mxu0 0
  %719 = vmatpush.bf16.msra.mxu0 0
  %720 = vmatpush.bf16.msra.mxu0 0
  %721 = vmatpush.bf16.msra.mxu0 %v713
  %722 = vmatpush.bf16.msra.mxu0 %v678
  %723 = vmatmul.bf16.gmra.mxu0 %v701
  %v724 = vpop.f32.mrf.mxu0
  %v725 = vadd.f32 0.0, %v724
  %v726 = vpop.f32.mrf.mxu0
  %v727 = vadd.f32 0.0, %v726
  %728 = vmatmul.bf16.gmra.mxu0 %v704
  %v729 = vpop.f32.mrf.mxu0
  %v730 = vadd.f32 0.0, %v729
  %v731 = vpop.f32.mrf.mxu0
  %v732 = vadd.f32 0.0, %v731
  %733 = vmatmul.bf16.gmra.mxu0 %v707
  %v734 = vpop.f32.mrf.mxu0
  %v735 = vadd.f32 0.0, %v734
  %v736 = vpop.f32.mrf.mxu0
  %v737 = vadd.f32 0.0, %v736
  %738 = vmatmul.bf16.gmra.mxu0 %v710
  %v739 = vpop.f32.mrf.mxu0
  %v740 = vadd.f32 0.0, %v739
  %v741 = vpop.f32.mrf.mxu0
  %v742 = vadd.f32 0.0, %v741
  %743 = vdwg.mxu0
  %v744 = vadd.f32 %v655, %v725
  %v745 = vadd.f32 %v656, %v727
  %v746 = vadd.f32 %v657, %v730
  %v747 = vadd.f32 %v658, %v732
  %v748 = vadd.f32 %v659, %v735
  %v749 = vadd.f32 %v660, %v737
  %v750 = vadd.f32 %v661, %v740
  %v751 = vadd.f32 %v662, %v742
  %752 = vrot.lane.b32.xlu0 %v58, 116
  %v753 = vpop.permute.xlu0 %752
  %754 = vrot.lane.b32.xlu0 %v59, 116
  %v755 = vpop.permute.xlu0 %754
  %756 = vrot.lane.b32.xlu0 %v60, 116
  %v757 = vpop.permute.xlu0 %756
  %s758 = scalar_lea.vmem %s2, 256
  %v759 = vld [vmem:[%s758] sm:$0xf]
  %v760 = vld [vmem:[%s758 + $0x4] sm:$0xf]
  %v761 = vld [vmem:[%s758 + $0x8] sm:$0xf]
  %v762 = vld [vmem:[%s758 + $0xc] sm:$0xf]
  %v763 = vld [vmem:[%s758 + $0x10] sm:$0xf]
  %v764 = vld [vmem:[%s758 + $0x14] sm:$0xf]
  %v765 = vld [vmem:[%s758 + $0x18] sm:$0xf]
  %v766 = vld [vmem:[%s758 + $0x1c] sm:$0xf]
  %v767 = vpack.c.bf16 %v755, %v753
  %v768 = vpack.c.bf16 %v757, %v757
  %v777 = vunpack.c.l.b16 %v759
  %v778 = vunpack.c.l.b16 %v760
  %v779 = vunpack.c.l.b16 %v761
  %v780 = vunpack.c.l.b16 %v762
  %v781 = vunpack.c.l.b16 %v763
  %v782 = vunpack.c.l.b16 %v764
  %v783 = vunpack.c.l.b16 %v765
  %v784 = vunpack.c.l.b16 %v766
  %v785 = vpack.c.b16 %v778, %v777
  %v786 = vpack.c.b16 %v780, %v779
  %v787 = vpack.c.b16 %v782, %v781
  %v788 = vpack.c.b16 %v784, %v783
  %v790 = vsel %vm114, %v785, 0
  %v793 = vsel %vm114, %v786, 0
  %v796 = vsel %vm114, %v787, 0
  %v799 = vsel %vm114, %v788, 0
  %v802 = vsel %vm127, %v768, 0
  %804 = vmatpush.bf16.msra.mxu0 0
  %805 = vmatpush.bf16.msra.mxu0 0
  %806 = vmatpush.bf16.msra.mxu0 0
  %807 = vmatpush.bf16.msra.mxu0 0
  %808 = vmatpush.bf16.msra.mxu0 0
  %809 = vmatpush.bf16.msra.mxu0 0
  %810 = vmatpush.bf16.msra.mxu0 %v802
  %811 = vmatpush.bf16.msra.mxu0 %v767
  %812 = vmatmul.bf16.gmra.mxu0 %v790
  %v813 = vpop.f32.mrf.mxu0
  %v814 = vadd.f32 0.0, %v813
  %v815 = vpop.f32.mrf.mxu0
  %v816 = vadd.f32 0.0, %v815
  %817 = vmatmul.bf16.gmra.mxu0 %v793
  %v818 = vpop.f32.mrf.mxu0
  %v819 = vadd.f32 0.0, %v818
  %v820 = vpop.f32.mrf.mxu0
  %v821 = vadd.f32 0.0, %v820
  %822 = vmatmul.bf16.gmra.mxu0 %v796
  %v823 = vpop.f32.mrf.mxu0
  %v824 = vadd.f32 0.0, %v823
  %v825 = vpop.f32.mrf.mxu0
  %v826 = vadd.f32 0.0, %v825
  %827 = vmatmul.bf16.gmra.mxu0 %v799
  %v828 = vpop.f32.mrf.mxu0
  %v829 = vadd.f32 0.0, %v828
  %v830 = vpop.f32.mrf.mxu0
  %v831 = vadd.f32 0.0, %v830
  %832 = vdwg.mxu0
  %v833 = vadd.f32 %v744, %v814
  %v834 = vadd.f32 %v745, %v816
  %v835 = vadd.f32 %v746, %v819
  %v836 = vadd.f32 %v747, %v821
  %v837 = vadd.f32 %v748, %v824
  %v838 = vadd.f32 %v749, %v826
  %v839 = vadd.f32 %v750, %v829
  %v840 = vadd.f32 %v751, %v831
  %v841 = vld [vmem:[%s3] sm:$0xff]
  %v842 = vld [vmem:[%s3 + $0x8] sm:$0xff]
  %v843 = vld [vmem:[%s3 + $0x10] sm:$0xff]
  %v844 = vld [vmem:[%s3 + $0x18] sm:$0xff]
  %v845 = vld [vmem:[%s3 + $0x20] sm:$0xff]
  %v846 = vld [vmem:[%s3 + $0x28] sm:$0xff]
  %v847 = vld [vmem:[%s3 + $0x30] sm:$0xff]
  %v848 = vld [vmem:[%s3 + $0x38] sm:$0xff]
  %850 = vset.pattern.permute.xlu0 0
  %851 = vperm.xlu0 %850, %v841
  %v852 = vpop.permute.xlu0 %851
  %855 = vset.pattern.permute.xlu0 0
  %856 = vperm.xlu0 %855, %v842
  %v857 = vpop.permute.xlu0 %856
  %860 = vset.pattern.permute.xlu0 0
  %861 = vperm.xlu0 %860, %v843
  %v862 = vpop.permute.xlu0 %861
  %865 = vset.pattern.permute.xlu0 0
  %866 = vperm.xlu0 %865, %v844
  %v867 = vpop.permute.xlu0 %866
  %870 = vset.pattern.permute.xlu0 0
  %871 = vperm.xlu0 %870, %v845
  %v872 = vpop.permute.xlu0 %871
  %875 = vset.pattern.permute.xlu0 0
  %876 = vperm.xlu0 %875, %v846
  %v877 = vpop.permute.xlu0 %876
  %880 = vset.pattern.permute.xlu0 0
  %881 = vperm.xlu0 %880, %v847
  %v882 = vpop.permute.xlu0 %881
  %885 = vset.pattern.permute.xlu0 0
  %886 = vperm.xlu0 %885, %v848
  %v887 = vpop.permute.xlu0 %886
  %v889 = vadd.f32 %v833, %v852
  %v890 = vadd.f32 %v834, %v857
  %v891 = vadd.f32 %v835, %v862
  %v892 = vadd.f32 %v836, %v867
  %v893 = vadd.f32 %v837, %v872
  %v894 = vadd.f32 %v838, %v877
  %v895 = vadd.f32 %v839, %v882
  %v896 = vadd.f32 %v840, %v887
  %v897 = vmax.f32 %v889, 0.0
  %v898 = vmax.f32 %v890, 0.0
  %v899 = vmax.f32 %v891, 0.0
  %v900 = vmax.f32 %v892, 0.0
  %v901 = vmax.f32 %v893, 0.0
  %v902 = vmax.f32 %v894, 0.0
  %v903 = vmax.f32 %v895, 0.0
  %v904 = vmax.f32 %v896, 0.0
  %v906 = vperm.slane %v57, 0
  %v908 = vmul.f32 %v897, %v906
  %v909 = vmul.f32 %v898, %v906
  %v910 = vmul.f32 %v899, %v906
  %v911 = vmul.f32 %v900, %v906
  %v912 = vmul.f32 %v901, %v906
  %v913 = vmul.f32 %v902, %v906
  %v914 = vmul.f32 %v903, %v906
  %v915 = vmul.f32 %v904, %v906
  %916 = vrot.lane.b32.xlu0 %v908, 12
  %v917 = vpop.permute.xlu0 %916
  %918 = vrot.lane.b32.xlu0 %v909, 12
  %v919 = vpop.permute.xlu0 %918
  %920 = vrot.lane.b32.xlu0 %v910, 12
  %v921 = vpop.permute.xlu0 %920
  %922 = vrot.lane.b32.xlu0 %v911, 12
  %v923 = vpop.permute.xlu0 %922
  %924 = vrot.lane.b32.xlu0 %v912, 12
  %v925 = vpop.permute.xlu0 %924
  %926 = vrot.lane.b32.xlu0 %v913, 12
  %v927 = vpop.permute.xlu0 %926
  %928 = vrot.lane.b32.xlu0 %v914, 12
  %v929 = vpop.permute.xlu0 %928
  %930 = vrot.lane.b32.xlu0 %v915, 12
  %v931 = vpop.permute.xlu0 %930
  %v932 = vld [vmem:[%s4] sm:$0xf]
  %v933 = vld [vmem:[%s4 + $0x4] sm:$0xf]
  %v934 = vld [vmem:[%s4 + $0x8] sm:$0xf]
  %v935 = vld [vmem:[%s4 + $0xc] sm:$0xf]
  %v936 = vld [vmem:[%s4 + $0x10] sm:$0xf]
  %v937 = vld [vmem:[%s4 + $0x14] sm:$0xf]
  %v938 = vld [vmem:[%s4 + $0x18] sm:$0xf]
  %v939 = vld [vmem:[%s4 + $0x1c] sm:$0xf]
  %v940 = vpack.c.bf16 %v919, %v917
  %v941 = vpack.c.bf16 %v923, %v921
  %v942 = vpack.c.bf16 %v927, %v925
  %v943 = vpack.c.bf16 %v931, %v929
  %944 = vrot.lane.b32.xlu0 %v908, 11
  %v945 = vpop.permute.xlu0 %944
  %946 = vrot.lane.b32.xlu0 %v909, 11
  %v947 = vpop.permute.xlu0 %946
  %948 = vrot.lane.b32.xlu0 %v910, 11
  %v949 = vpop.permute.xlu0 %948
  %950 = vrot.lane.b32.xlu0 %v911, 11
  %v951 = vpop.permute.xlu0 %950
  %952 = vrot.lane.b32.xlu0 %v912, 11
  %v953 = vpop.permute.xlu0 %952
  %954 = vrot.lane.b32.xlu0 %v913, 11
  %v955 = vpop.permute.xlu0 %954
  %956 = vrot.lane.b32.xlu0 %v914, 11
  %v957 = vpop.permute.xlu0 %956
  %958 = vrot.lane.b32.xlu0 %v915, 11
  %v959 = vpop.permute.xlu0 %958
  %s960 = scalar_lea.vmem %s4, 32
  %v961 = vld [vmem:[%s960] sm:$0xf]
  %v962 = vld [vmem:[%s960 + $0x4] sm:$0xf]
  %v963 = vld [vmem:[%s960 + $0x8] sm:$0xf]
  %v964 = vld [vmem:[%s960 + $0xc] sm:$0xf]
  %v965 = vld [vmem:[%s960 + $0x10] sm:$0xf]
  %v966 = vld [vmem:[%s960 + $0x14] sm:$0xf]
  %v967 = vld [vmem:[%s960 + $0x18] sm:$0xf]
  %v968 = vld [vmem:[%s960 + $0x1c] sm:$0xf]
  %v969 = vpack.c.bf16 %v947, %v945
  %v970 = vpack.c.bf16 %v951, %v949
  %v971 = vpack.c.bf16 %v955, %v953
  %v972 = vpack.c.bf16 %v959, %v957
  %v981 = vunpack.c.l.b16 %v961
  %v982 = vunpack.c.l.b16 %v962
  %v983 = vunpack.c.l.b16 %v963
  %v984 = vunpack.c.l.b16 %v964
  %v985 = vunpack.c.l.b16 %v965
  %v986 = vunpack.c.l.b16 %v966
  %v987 = vunpack.c.l.b16 %v967
  %v988 = vunpack.c.l.b16 %v968
  %v989 = vpack.c.b16 %v982, %v981
  %v990 = vpack.c.b16 %v984, %v983
  %v991 = vpack.c.b16 %v986, %v985
  %v992 = vpack.c.b16 %v988, %v987
  %vm993 = vcmask 523264
  %v995 = vsel %vm993, %v989, 0
  %v998 = vsel %vm993, %v990, 0
  %v1001 = vsel %vm993, %v991, 0
  %v1004 = vsel %vm993, %v992, 0
  %1006 = vmatpush.bf16.msra.mxu0 0
  %1007 = vmatpush.bf16.msra.mxu0 0
  %1008 = vmatpush.bf16.msra.mxu0 0
  %1009 = vmatpush.bf16.msra.mxu0 0
  %1010 = vmatpush.bf16.msra.mxu0 %v972
  %1011 = vmatpush.bf16.msra.mxu0 %v971
  %1012 = vmatpush.bf16.msra.mxu0 %v970
  %1013 = vmatpush.bf16.msra.mxu0 %v969
  %1014 = vmatmul.bf16.gmra.mxu0 %v995
  %v1015 = vpop.f32.mrf.mxu0
  %v1016 = vadd.f32 0.0, %v1015
  %v1017 = vpop.f32.mrf.mxu0
  %v1018 = vadd.f32 0.0, %v1017
  %1019 = vmatmul.bf16.gmra.mxu0 %v998
  %v1020 = vpop.f32.mrf.mxu0
  %v1021 = vadd.f32 0.0, %v1020
  %v1022 = vpop.f32.mrf.mxu0
  %v1023 = vadd.f32 0.0, %v1022
  %1024 = vmatmul.bf16.gmra.mxu0 %v1001
  %v1025 = vpop.f32.mrf.mxu0
  %v1026 = vadd.f32 0.0, %v1025
  %v1027 = vpop.f32.mrf.mxu0
  %v1028 = vadd.f32 0.0, %v1027
  %1029 = vmatmul.bf16.gmra.mxu0 %v1004
  %v1030 = vpop.f32.mrf.mxu0
  %v1031 = vadd.f32 0.0, %v1030
  %v1032 = vpop.f32.mrf.mxu0
  %v1033 = vadd.f32 0.0, %v1032
  %1034 = vdwg.mxu0
  %v1043 = vunpack.c.l.b16 %v932
  %v1044 = vunpack.c.l.b16 %v933
  %v1045 = vunpack.c.l.b16 %v934
  %v1046 = vunpack.c.l.b16 %v935
  %v1047 = vunpack.c.l.b16 %v936
  %v1048 = vunpack.c.l.b16 %v937
  %v1049 = vunpack.c.l.b16 %v938
  %v1050 = vunpack.c.l.b16 %v939
  %v1051 = vpack.c.b16 %v1044, %v1043
  %v1052 = vpack.c.b16 %v1046, %v1045
  %v1053 = vpack.c.b16 %v1048, %v1047
  %v1054 = vpack.c.b16 %v1050, %v1049
  %v1056 = vsel %vm993, %v1051, 0
  %v1059 = vsel %vm993, %v1052, 0
  %v1062 = vsel %vm993, %v1053, 0
  %v1065 = vsel %vm993, %v1054, 0
  %1067 = vmatpush.bf16.msra.mxu0 0
  %1068 = vmatpush.bf16.msra.mxu0 0
  %1069 = vmatpush.bf16.msra.mxu0 0
  %1070 = vmatpush.bf16.msra.mxu0 0
  %1071 = vmatpush.bf16.msra.mxu0 %v943
  %1072 = vmatpush.bf16.msra.mxu0 %v942
  %1073 = vmatpush.bf16.msra.mxu0 %v941
  %1074 = vmatpush.bf16.msra.mxu0 %v940
  %1075 = vmatmul.bf16.gmra.mxu0 %v1056
  %v1076 = vpop.f32.mrf.mxu0
  %v1077 = vadd.f32 %v1016, %v1076
  %v1078 = vpop.f32.mrf.mxu0
  %v1079 = vadd.f32 %v1018, %v1078
  %1080 = vmatmul.bf16.gmra.mxu0 %v1059
  %v1081 = vpop.f32.mrf.mxu0
  %v1082 = vadd.f32 %v1021, %v1081
  %v1083 = vpop.f32.mrf.mxu0
  %v1084 = vadd.f32 %v1023, %v1083
  %1085 = vmatmul.bf16.gmra.mxu0 %v1062
  %v1086 = vpop.f32.mrf.mxu0
  %v1087 = vadd.f32 %v1026, %v1086
  %v1088 = vpop.f32.mrf.mxu0
  %v1089 = vadd.f32 %v1028, %v1088
  %1090 = vmatmul.bf16.gmra.mxu0 %v1065
  %v1091 = vpop.f32.mrf.mxu0
  %v1092 = vadd.f32 %v1031, %v1091
  %v1093 = vpop.f32.mrf.mxu0
  %v1094 = vadd.f32 %v1033, %v1093
  %1095 = vdwg.mxu0
  %1096 = vrot.lane.b32.xlu0 %v908, 10
  %v1097 = vpop.permute.xlu0 %1096
  %1098 = vrot.lane.b32.xlu0 %v909, 10
  %v1099 = vpop.permute.xlu0 %1098
  %1100 = vrot.lane.b32.xlu0 %v910, 10
  %v1101 = vpop.permute.xlu0 %1100
  %1102 = vrot.lane.b32.xlu0 %v911, 10
  %v1103 = vpop.permute.xlu0 %1102
  %1104 = vrot.lane.b32.xlu0 %v912, 10
  %v1105 = vpop.permute.xlu0 %1104
  %1106 = vrot.lane.b32.xlu0 %v913, 10
  %v1107 = vpop.permute.xlu0 %1106
  %1108 = vrot.lane.b32.xlu0 %v914, 10
  %v1109 = vpop.permute.xlu0 %1108
  %1110 = vrot.lane.b32.xlu0 %v915, 10
  %v1111 = vpop.permute.xlu0 %1110
  %s1112 = scalar_lea.vmem %s4, 64
  %v1113 = vld [vmem:[%s1112] sm:$0xf]
  %v1114 = vld [vmem:[%s1112 + $0x4] sm:$0xf]
  %v1115 = vld [vmem:[%s1112 + $0x8] sm:$0xf]
  %v1116 = vld [vmem:[%s1112 + $0xc] sm:$0xf]
  %v1117 = vld [vmem:[%s1112 + $0x10] sm:$0xf]
  %v1118 = vld [vmem:[%s1112 + $0x14] sm:$0xf]
  %v1119 = vld [vmem:[%s1112 + $0x18] sm:$0xf]
  %v1120 = vld [vmem:[%s1112 + $0x1c] sm:$0xf]
  %v1121 = vpack.c.bf16 %v1099, %v1097
  %v1122 = vpack.c.bf16 %v1103, %v1101
  %v1123 = vpack.c.bf16 %v1107, %v1105
  %v1124 = vpack.c.bf16 %v1111, %v1109
  %v1133 = vunpack.c.l.b16 %v1113
  %v1134 = vunpack.c.l.b16 %v1114
  %v1135 = vunpack.c.l.b16 %v1115
  %v1136 = vunpack.c.l.b16 %v1116
  %v1137 = vunpack.c.l.b16 %v1117
  %v1138 = vunpack.c.l.b16 %v1118
  %v1139 = vunpack.c.l.b16 %v1119
  %v1140 = vunpack.c.l.b16 %v1120
  %v1141 = vpack.c.b16 %v1134, %v1133
  %v1142 = vpack.c.b16 %v1136, %v1135
  %v1143 = vpack.c.b16 %v1138, %v1137
  %v1144 = vpack.c.b16 %v1140, %v1139
  %v1146 = vsel %vm993, %v1141, 0
  %v1149 = vsel %vm993, %v1142, 0
  %v1152 = vsel %vm993, %v1143, 0
  %v1155 = vsel %vm993, %v1144, 0
  %1157 = vmatpush.bf16.msra.mxu0 0
  %1158 = vmatpush.bf16.msra.mxu0 0
  %1159 = vmatpush.bf16.msra.mxu0 0
  %1160 = vmatpush.bf16.msra.mxu0 0
  %1161 = vmatpush.bf16.msra.mxu0 %v1124
  %1162 = vmatpush.bf16.msra.mxu0 %v1123
  %1163 = vmatpush.bf16.msra.mxu0 %v1122
  %1164 = vmatpush.bf16.msra.mxu0 %v1121
  %1165 = vmatmul.bf16.gmra.mxu0 %v1146
  %v1166 = vpop.f32.mrf.mxu0
  %v1167 = vadd.f32 0.0, %v1166
  %v1168 = vpop.f32.mrf.mxu0
  %v1169 = vadd.f32 0.0, %v1168
  %1170 = vmatmul.bf16.gmra.mxu0 %v1149
  %v1171 = vpop.f32.mrf.mxu0
  %v1172 = vadd.f32 0.0, %v1171
  %v1173 = vpop.f32.mrf.mxu0
  %v1174 = vadd.f32 0.0, %v1173
  %1175 = vmatmul.bf16.gmra.mxu0 %v1152
  %v1176 = vpop.f32.mrf.mxu0
  %v1177 = vadd.f32 0.0, %v1176
  %v1178 = vpop.f32.mrf.mxu0
  %v1179 = vadd.f32 0.0, %v1178
  %1180 = vmatmul.bf16.gmra.mxu0 %v1155
  %v1181 = vpop.f32.mrf.mxu0
  %v1182 = vadd.f32 0.0, %v1181
  %v1183 = vpop.f32.mrf.mxu0
  %v1184 = vadd.f32 0.0, %v1183
  %1185 = vdwg.mxu0
  %v1186 = vadd.f32 %v1077, %v1167
  %v1187 = vadd.f32 %v1079, %v1169
  %v1188 = vadd.f32 %v1082, %v1172
  %v1189 = vadd.f32 %v1084, %v1174
  %v1190 = vadd.f32 %v1087, %v1177
  %v1191 = vadd.f32 %v1089, %v1179
  %v1192 = vadd.f32 %v1092, %v1182
  %v1193 = vadd.f32 %v1094, %v1184
  %1194 = vrot.lane.b32.xlu0 %v908, 1
  %v1195 = vpop.permute.xlu0 %1194
  %1196 = vrot.lane.b32.xlu0 %v909, 1
  %v1197 = vpop.permute.xlu0 %1196
  %1198 = vrot.lane.b32.xlu0 %v910, 1
  %v1199 = vpop.permute.xlu0 %1198
  %1200 = vrot.lane.b32.xlu0 %v911, 1
  %v1201 = vpop.permute.xlu0 %1200
  %1202 = vrot.lane.b32.xlu0 %v912, 1
  %v1203 = vpop.permute.xlu0 %1202
  %1204 = vrot.lane.b32.xlu0 %v913, 1
  %v1205 = vpop.permute.xlu0 %1204
  %1206 = vrot.lane.b32.xlu0 %v914, 1
  %v1207 = vpop.permute.xlu0 %1206
  %1208 = vrot.lane.b32.xlu0 %v915, 1
  %v1209 = vpop.permute.xlu0 %1208
  %s1210 = scalar_lea.vmem %s4, 96
  %v1211 = vld [vmem:[%s1210] sm:$0xf]
  %v1212 = vld [vmem:[%s1210 + $0x4] sm:$0xf]
  %v1213 = vld [vmem:[%s1210 + $0x8] sm:$0xf]
  %v1214 = vld [vmem:[%s1210 + $0xc] sm:$0xf]
  %v1215 = vld [vmem:[%s1210 + $0x10] sm:$0xf]
  %v1216 = vld [vmem:[%s1210 + $0x14] sm:$0xf]
  %v1217 = vld [vmem:[%s1210 + $0x18] sm:$0xf]
  %v1218 = vld [vmem:[%s1210 + $0x1c] sm:$0xf]
  %v1219 = vpack.c.bf16 %v1197, %v1195
  %v1220 = vpack.c.bf16 %v1201, %v1199
  %v1221 = vpack.c.bf16 %v1205, %v1203
  %v1222 = vpack.c.bf16 %v1209, %v1207
  %v1231 = vunpack.c.l.b16 %v1211
  %v1232 = vunpack.c.l.b16 %v1212
  %v1233 = vunpack.c.l.b16 %v1213
  %v1234 = vunpack.c.l.b16 %v1214
  %v1235 = vunpack.c.l.b16 %v1215
  %v1236 = vunpack.c.l.b16 %v1216
  %v1237 = vunpack.c.l.b16 %v1217
  %v1238 = vunpack.c.l.b16 %v1218
  %v1239 = vpack.c.b16 %v1232, %v1231
  %v1240 = vpack.c.b16 %v1234, %v1233
  %v1241 = vpack.c.b16 %v1236, %v1235
  %v1242 = vpack.c.b16 %v1238, %v1237
  %v1244 = vsel %vm993, %v1239, 0
  %v1247 = vsel %vm993, %v1240, 0
  %v1250 = vsel %vm993, %v1241, 0
  %v1253 = vsel %vm993, %v1242, 0
  %1255 = vmatpush.bf16.msra.mxu0 0
  %1256 = vmatpush.bf16.msra.mxu0 0
  %1257 = vmatpush.bf16.msra.mxu0 0
  %1258 = vmatpush.bf16.msra.mxu0 0
  %1259 = vmatpush.bf16.msra.mxu0 %v1222
  %1260 = vmatpush.bf16.msra.mxu0 %v1221
  %1261 = vmatpush.bf16.msra.mxu0 %v1220
  %1262 = vmatpush.bf16.msra.mxu0 %v1219
  %1263 = vmatmul.bf16.gmra.mxu0 %v1244
  %v1264 = vpop.f32.mrf.mxu0
  %v1265 = vadd.f32 0.0, %v1264
  %v1266 = vpop.f32.mrf.mxu0
  %v1267 = vadd.f32 0.0, %v1266
  %1268 = vmatmul.bf16.gmra.mxu0 %v1247
  %v1269 = vpop.f32.mrf.mxu0
  %v1270 = vadd.f32 0.0, %v1269
  %v1271 = vpop.f32.mrf.mxu0
  %v1272 = vadd.f32 0.0, %v1271
  %1273 = vmatmul.bf16.gmra.mxu0 %v1250
  %v1274 = vpop.f32.mrf.mxu0
  %v1275 = vadd.f32 0.0, %v1274
  %v1276 = vpop.f32.mrf.mxu0
  %v1277 = vadd.f32 0.0, %v1276
  %1278 = vmatmul.bf16.gmra.mxu0 %v1253
  %v1279 = vpop.f32.mrf.mxu0
  %v1280 = vadd.f32 0.0, %v1279
  %v1281 = vpop.f32.mrf.mxu0
  %v1282 = vadd.f32 0.0, %v1281
  %1283 = vdwg.mxu0
  %v1284 = vadd.f32 %v1186, %v1265
  %v1285 = vadd.f32 %v1187, %v1267
  %v1286 = vadd.f32 %v1188, %v1270
  %v1287 = vadd.f32 %v1189, %v1272
  %v1288 = vadd.f32 %v1190, %v1275
  %v1289 = vadd.f32 %v1191, %v1277
  %v1290 = vadd.f32 %v1192, %v1280
  %v1291 = vadd.f32 %v1193, %v1282
  %s1292 = scalar_lea.vmem %s4, 128
  %v1293 = vld [vmem:[%s1292] sm:$0xf]
  %v1294 = vld [vmem:[%s1292 + $0x4] sm:$0xf]
  %v1295 = vld [vmem:[%s1292 + $0x8] sm:$0xf]
  %v1296 = vld [vmem:[%s1292 + $0xc] sm:$0xf]
  %v1297 = vld [vmem:[%s1292 + $0x10] sm:$0xf]
  %v1298 = vld [vmem:[%s1292 + $0x14] sm:$0xf]
  %v1299 = vld [vmem:[%s1292 + $0x18] sm:$0xf]
  %v1300 = vld [vmem:[%s1292 + $0x1c] sm:$0xf]
  %v1301 = vpack.c.bf16 %v909, %v908
  %v1302 = vpack.c.bf16 %v911, %v910
  %v1303 = vpack.c.bf16 %v913, %v912
  %v1304 = vpack.c.bf16 %v915, %v914
  %v1313 = vunpack.c.l.b16 %v1293
  %v1314 = vunpack.c.l.b16 %v1294
  %v1315 = vunpack.c.l.b16 %v1295
  %v1316 = vunpack.c.l.b16 %v1296
  %v1317 = vunpack.c.l.b16 %v1297
  %v1318 = vunpack.c.l.b16 %v1298
  %v1319 = vunpack.c.l.b16 %v1299
  %v1320 = vunpack.c.l.b16 %v1300
  %v1321 = vpack.c.b16 %v1314, %v1313
  %v1322 = vpack.c.b16 %v1316, %v1315
  %v1323 = vpack.c.b16 %v1318, %v1317
  %v1324 = vpack.c.b16 %v1320, %v1319
  %v1326 = vsel %vm993, %v1321, 0
  %v1329 = vsel %vm993, %v1322, 0
  %v1332 = vsel %vm993, %v1323, 0
  %v1335 = vsel %vm993, %v1324, 0
  %1337 = vmatpush.bf16.msra.mxu0 0
  %1338 = vmatpush.bf16.msra.mxu0 0
  %1339 = vmatpush.bf16.msra.mxu0 0
  %1340 = vmatpush.bf16.msra.mxu0 0
  %1341 = vmatpush.bf16.msra.mxu0 %v1304
  %1342 = vmatpush.bf16.msra.mxu0 %v1303
  %1343 = vmatpush.bf16.msra.mxu0 %v1302
  %1344 = vmatpush.bf16.msra.mxu0 %v1301
  %1345 = vmatmul.bf16.gmra.mxu0 %v1326
  %v1346 = vpop.f32.mrf.mxu0
  %v1347 = vadd.f32 0.0, %v1346
  %v1348 = vpop.f32.mrf.mxu0
  %v1349 = vadd.f32 0.0, %v1348
  %1350 = vmatmul.bf16.gmra.mxu0 %v1329
  %v1351 = vpop.f32.mrf.mxu0
  %v1352 = vadd.f32 0.0, %v1351
  %v1353 = vpop.f32.mrf.mxu0
  %v1354 = vadd.f32 0.0, %v1353
  %1355 = vmatmul.bf16.gmra.mxu0 %v1332
  %v1356 = vpop.f32.mrf.mxu0
  %v1357 = vadd.f32 0.0, %v1356
  %v1358 = vpop.f32.mrf.mxu0
  %v1359 = vadd.f32 0.0, %v1358
  %1360 = vmatmul.bf16.gmra.mxu0 %v1335
  %v1361 = vpop.f32.mrf.mxu0
  %v1362 = vadd.f32 0.0, %v1361
  %v1363 = vpop.f32.mrf.mxu0
  %v1364 = vadd.f32 0.0, %v1363
  %1365 = vdwg.mxu0
  %v1366 = vadd.f32 %v1284, %v1347
  %v1367 = vadd.f32 %v1285, %v1349
  %v1368 = vadd.f32 %v1286, %v1352
  %v1369 = vadd.f32 %v1287, %v1354
  %v1370 = vadd.f32 %v1288, %v1357
  %v1371 = vadd.f32 %v1289, %v1359
  %v1372 = vadd.f32 %v1290, %v1362
  %v1373 = vadd.f32 %v1291, %v1364
  %1374 = vrot.lane.b32.xlu0 %v908, 127
  %v1375 = vpop.permute.xlu0 %1374
  %1376 = vrot.lane.b32.xlu0 %v909, 127
  %v1377 = vpop.permute.xlu0 %1376
  %1378 = vrot.lane.b32.xlu0 %v910, 127
  %v1379 = vpop.permute.xlu0 %1378
  %1380 = vrot.lane.b32.xlu0 %v911, 127
  %v1381 = vpop.permute.xlu0 %1380
  %1382 = vrot.lane.b32.xlu0 %v912, 127
  %v1383 = vpop.permute.xlu0 %1382
  %1384 = vrot.lane.b32.xlu0 %v913, 127
  %v1385 = vpop.permute.xlu0 %1384
  %1386 = vrot.lane.b32.xlu0 %v914, 127
  %v1387 = vpop.permute.xlu0 %1386
  %1388 = vrot.lane.b32.xlu0 %v915, 127
  %v1389 = vpop.permute.xlu0 %1388
  %s1390 = scalar_lea.vmem %s4, 160
  %v1391 = vld [vmem:[%s1390] sm:$0xf]
  %v1392 = vld [vmem:[%s1390 + $0x4] sm:$0xf]
  %v1393 = vld [vmem:[%s1390 + $0x8] sm:$0xf]
  %v1394 = vld [vmem:[%s1390 + $0xc] sm:$0xf]
  %v1395 = vld [vmem:[%s1390 + $0x10] sm:$0xf]
  %v1396 = vld [vmem:[%s1390 + $0x14] sm:$0xf]
  %v1397 = vld [vmem:[%s1390 + $0x18] sm:$0xf]
  %v1398 = vld [vmem:[%s1390 + $0x1c] sm:$0xf]
  %v1399 = vpack.c.bf16 %v1377, %v1375
  %v1400 = vpack.c.bf16 %v1381, %v1379
  %v1401 = vpack.c.bf16 %v1385, %v1383
  %v1402 = vpack.c.bf16 %v1389, %v1387
  %v1411 = vunpack.c.l.b16 %v1391
  %v1412 = vunpack.c.l.b16 %v1392
  %v1413 = vunpack.c.l.b16 %v1393
  %v1414 = vunpack.c.l.b16 %v1394
  %v1415 = vunpack.c.l.b16 %v1395
  %v1416 = vunpack.c.l.b16 %v1396
  %v1417 = vunpack.c.l.b16 %v1397
  %v1418 = vunpack.c.l.b16 %v1398
  %v1419 = vpack.c.b16 %v1412, %v1411
  %v1420 = vpack.c.b16 %v1414, %v1413
  %v1421 = vpack.c.b16 %v1416, %v1415
  %v1422 = vpack.c.b16 %v1418, %v1417
  %v1424 = vsel %vm993, %v1419, 0
  %v1427 = vsel %vm993, %v1420, 0
  %v1430 = vsel %vm993, %v1421, 0
  %v1433 = vsel %vm993, %v1422, 0
  %1435 = vmatpush.bf16.msra.mxu0 0
  %1436 = vmatpush.bf16.msra.mxu0 0
  %1437 = vmatpush.bf16.msra.mxu0 0
  %1438 = vmatpush.bf16.msra.mxu0 0
  %1439 = vmatpush.bf16.msra.mxu0 %v1402
  %1440 = vmatpush.bf16.msra.mxu0 %v1401
  %1441 = vmatpush.bf16.msra.mxu0 %v1400
  %1442 = vmatpush.bf16.msra.mxu0 %v1399
  %1443 = vmatmul.bf16.gmra.mxu0 %v1424
  %v1444 = vpop.f32.mrf.mxu0
  %v1445 = vadd.f32 0.0, %v1444
  %v1446 = vpop.f32.mrf.mxu0
  %v1447 = vadd.f32 0.0, %v1446
  %1448 = vmatmul.bf16.gmra.mxu0 %v1427
  %v1449 = vpop.f32.mrf.mxu0
  %v1450 = vadd.f32 0.0, %v1449
  %v1451 = vpop.f32.mrf.mxu0
  %v1452 = vadd.f32 0.0, %v1451
  %1453 = vmatmul.bf16.gmra.mxu0 %v1430
  %v1454 = vpop.f32.mrf.mxu0
  %v1455 = vadd.f32 0.0, %v1454
  %v1456 = vpop.f32.mrf.mxu0
  %v1457 = vadd.f32 0.0, %v1456
  %1458 = vmatmul.bf16.gmra.mxu0 %v1433
  %v1459 = vpop.f32.mrf.mxu0
  %v1460 = vadd.f32 0.0, %v1459
  %v1461 = vpop.f32.mrf.mxu0
  %v1462 = vadd.f32 0.0, %v1461
  %1463 = vdwg.mxu0
  %v1464 = vadd.f32 %v1366, %v1445
  %v1465 = vadd.f32 %v1367, %v1447
  %v1466 = vadd.f32 %v1368, %v1450
  %v1467 = vadd.f32 %v1369, %v1452
  %v1468 = vadd.f32 %v1370, %v1455
  %v1469 = vadd.f32 %v1371, %v1457
  %v1470 = vadd.f32 %v1372, %v1460
  %v1471 = vadd.f32 %v1373, %v1462
  %1472 = vrot.lane.b32.xlu0 %v908, 118
  %v1473 = vpop.permute.xlu0 %1472
  %1474 = vrot.lane.b32.xlu0 %v909, 118
  %v1475 = vpop.permute.xlu0 %1474
  %1476 = vrot.lane.b32.xlu0 %v910, 118
  %v1477 = vpop.permute.xlu0 %1476
  %1478 = vrot.lane.b32.xlu0 %v911, 118
  %v1479 = vpop.permute.xlu0 %1478
  %1480 = vrot.lane.b32.xlu0 %v912, 118
  %v1481 = vpop.permute.xlu0 %1480
  %1482 = vrot.lane.b32.xlu0 %v913, 118
  %v1483 = vpop.permute.xlu0 %1482
  %1484 = vrot.lane.b32.xlu0 %v914, 118
  %v1485 = vpop.permute.xlu0 %1484
  %1486 = vrot.lane.b32.xlu0 %v915, 118
  %v1487 = vpop.permute.xlu0 %1486
  %s1488 = scalar_lea.vmem %s4, 192
  %v1489 = vld [vmem:[%s1488] sm:$0xf]
  %v1490 = vld [vmem:[%s1488 + $0x4] sm:$0xf]
  %v1491 = vld [vmem:[%s1488 + $0x8] sm:$0xf]
  %v1492 = vld [vmem:[%s1488 + $0xc] sm:$0xf]
  %v1493 = vld [vmem:[%s1488 + $0x10] sm:$0xf]
  %v1494 = vld [vmem:[%s1488 + $0x14] sm:$0xf]
  %v1495 = vld [vmem:[%s1488 + $0x18] sm:$0xf]
  %v1496 = vld [vmem:[%s1488 + $0x1c] sm:$0xf]
  %v1497 = vpack.c.bf16 %v1475, %v1473
  %v1498 = vpack.c.bf16 %v1479, %v1477
  %v1499 = vpack.c.bf16 %v1483, %v1481
  %v1500 = vpack.c.bf16 %v1487, %v1485
  %v1509 = vunpack.c.l.b16 %v1489
  %v1510 = vunpack.c.l.b16 %v1490
  %v1511 = vunpack.c.l.b16 %v1491
  %v1512 = vunpack.c.l.b16 %v1492
  %v1513 = vunpack.c.l.b16 %v1493
  %v1514 = vunpack.c.l.b16 %v1494
  %v1515 = vunpack.c.l.b16 %v1495
  %v1516 = vunpack.c.l.b16 %v1496
  %v1517 = vpack.c.b16 %v1510, %v1509
  %v1518 = vpack.c.b16 %v1512, %v1511
  %v1519 = vpack.c.b16 %v1514, %v1513
  %v1520 = vpack.c.b16 %v1516, %v1515
  %v1522 = vsel %vm993, %v1517, 0
  %v1525 = vsel %vm993, %v1518, 0
  %v1528 = vsel %vm993, %v1519, 0
  %v1531 = vsel %vm993, %v1520, 0
  %1533 = vmatpush.bf16.msra.mxu0 0
  %1534 = vmatpush.bf16.msra.mxu0 0
  %1535 = vmatpush.bf16.msra.mxu0 0
  %1536 = vmatpush.bf16.msra.mxu0 0
  %1537 = vmatpush.bf16.msra.mxu0 %v1500
  %1538 = vmatpush.bf16.msra.mxu0 %v1499
  %1539 = vmatpush.bf16.msra.mxu0 %v1498
  %1540 = vmatpush.bf16.msra.mxu0 %v1497
  %1541 = vmatmul.bf16.gmra.mxu0 %v1522
  %v1542 = vpop.f32.mrf.mxu0
  %v1543 = vadd.f32 0.0, %v1542
  %v1544 = vpop.f32.mrf.mxu0
  %v1545 = vadd.f32 0.0, %v1544
  %1546 = vmatmul.bf16.gmra.mxu0 %v1525
  %v1547 = vpop.f32.mrf.mxu0
  %v1548 = vadd.f32 0.0, %v1547
  %v1549 = vpop.f32.mrf.mxu0
  %v1550 = vadd.f32 0.0, %v1549
  %1551 = vmatmul.bf16.gmra.mxu0 %v1528
  %v1552 = vpop.f32.mrf.mxu0
  %v1553 = vadd.f32 0.0, %v1552
  %v1554 = vpop.f32.mrf.mxu0
  %v1555 = vadd.f32 0.0, %v1554
  %1556 = vmatmul.bf16.gmra.mxu0 %v1531
  %v1557 = vpop.f32.mrf.mxu0
  %v1558 = vadd.f32 0.0, %v1557
  %v1559 = vpop.f32.mrf.mxu0
  %v1560 = vadd.f32 0.0, %v1559
  %1561 = vdwg.mxu0
  %v1562 = vadd.f32 %v1464, %v1543
  %v1563 = vadd.f32 %v1465, %v1545
  %v1564 = vadd.f32 %v1466, %v1548
  %v1565 = vadd.f32 %v1467, %v1550
  %v1566 = vadd.f32 %v1468, %v1553
  %v1567 = vadd.f32 %v1469, %v1555
  %v1568 = vadd.f32 %v1470, %v1558
  %v1569 = vadd.f32 %v1471, %v1560
  %1570 = vrot.lane.b32.xlu0 %v908, 117
  %v1571 = vpop.permute.xlu0 %1570
  %1572 = vrot.lane.b32.xlu0 %v909, 117
  %v1573 = vpop.permute.xlu0 %1572
  %1574 = vrot.lane.b32.xlu0 %v910, 117
  %v1575 = vpop.permute.xlu0 %1574
  %1576 = vrot.lane.b32.xlu0 %v911, 117
  %v1577 = vpop.permute.xlu0 %1576
  %1578 = vrot.lane.b32.xlu0 %v912, 117
  %v1579 = vpop.permute.xlu0 %1578
  %1580 = vrot.lane.b32.xlu0 %v913, 117
  %v1581 = vpop.permute.xlu0 %1580
  %1582 = vrot.lane.b32.xlu0 %v914, 117
  %v1583 = vpop.permute.xlu0 %1582
  %1584 = vrot.lane.b32.xlu0 %v915, 117
  %v1585 = vpop.permute.xlu0 %1584
  %s1586 = scalar_lea.vmem %s4, 224
  %v1587 = vld [vmem:[%s1586] sm:$0xf]
  %v1588 = vld [vmem:[%s1586 + $0x4] sm:$0xf]
  %v1589 = vld [vmem:[%s1586 + $0x8] sm:$0xf]
  %v1590 = vld [vmem:[%s1586 + $0xc] sm:$0xf]
  %v1591 = vld [vmem:[%s1586 + $0x10] sm:$0xf]
  %v1592 = vld [vmem:[%s1586 + $0x14] sm:$0xf]
  %v1593 = vld [vmem:[%s1586 + $0x18] sm:$0xf]
  %v1594 = vld [vmem:[%s1586 + $0x1c] sm:$0xf]
  %v1595 = vpack.c.bf16 %v1573, %v1571
  %v1596 = vpack.c.bf16 %v1577, %v1575
  %v1597 = vpack.c.bf16 %v1581, %v1579
  %v1598 = vpack.c.bf16 %v1585, %v1583
  %v1607 = vunpack.c.l.b16 %v1587
  %v1608 = vunpack.c.l.b16 %v1588
  %v1609 = vunpack.c.l.b16 %v1589
  %v1610 = vunpack.c.l.b16 %v1590
  %v1611 = vunpack.c.l.b16 %v1591
  %v1612 = vunpack.c.l.b16 %v1592
  %v1613 = vunpack.c.l.b16 %v1593
  %v1614 = vunpack.c.l.b16 %v1594
  %v1615 = vpack.c.b16 %v1608, %v1607
  %v1616 = vpack.c.b16 %v1610, %v1609
  %v1617 = vpack.c.b16 %v1612, %v1611
  %v1618 = vpack.c.b16 %v1614, %v1613
  %v1620 = vsel %vm993, %v1615, 0
  %v1623 = vsel %vm993, %v1616, 0
  %v1626 = vsel %vm993, %v1617, 0
  %v1629 = vsel %vm993, %v1618, 0
  %1631 = vmatpush.bf16.msra.mxu0 0
  %1632 = vmatpush.bf16.msra.mxu0 0
  %1633 = vmatpush.bf16.msra.mxu0 0
  %1634 = vmatpush.bf16.msra.mxu0 0
  %1635 = vmatpush.bf16.msra.mxu0 %v1598
  %1636 = vmatpush.bf16.msra.mxu0 %v1597
  %1637 = vmatpush.bf16.msra.mxu0 %v1596
  %1638 = vmatpush.bf16.msra.mxu0 %v1595
  %1639 = vmatmul.bf16.gmra.mxu0 %v1620
  %v1640 = vpop.f32.mrf.mxu0
  %v1641 = vadd.f32 0.0, %v1640
  %v1642 = vpop.f32.mrf.mxu0
  %v1643 = vadd.f32 0.0, %v1642
  %1644 = vmatmul.bf16.gmra.mxu0 %v1623
  %v1645 = vpop.f32.mrf.mxu0
  %v1646 = vadd.f32 0.0, %v1645
  %v1647 = vpop.f32.mrf.mxu0
  %v1648 = vadd.f32 0.0, %v1647
  %1649 = vmatmul.bf16.gmra.mxu0 %v1626
  %v1650 = vpop.f32.mrf.mxu0
  %v1651 = vadd.f32 0.0, %v1650
  %v1652 = vpop.f32.mrf.mxu0
  %v1653 = vadd.f32 0.0, %v1652
  %1654 = vmatmul.bf16.gmra.mxu0 %v1629
  %v1655 = vpop.f32.mrf.mxu0
  %v1656 = vadd.f32 0.0, %v1655
  %v1657 = vpop.f32.mrf.mxu0
  %v1658 = vadd.f32 0.0, %v1657
  %1659 = vdwg.mxu0
  %v1660 = vadd.f32 %v1562, %v1641
  %v1661 = vadd.f32 %v1563, %v1643
  %v1662 = vadd.f32 %v1564, %v1646
  %v1663 = vadd.f32 %v1565, %v1648
  %v1664 = vadd.f32 %v1566, %v1651
  %v1665 = vadd.f32 %v1567, %v1653
  %v1666 = vadd.f32 %v1568, %v1656
  %v1667 = vadd.f32 %v1569, %v1658
  %1668 = vrot.lane.b32.xlu0 %v908, 116
  %v1669 = vpop.permute.xlu0 %1668
  %1670 = vrot.lane.b32.xlu0 %v909, 116
  %v1671 = vpop.permute.xlu0 %1670
  %1672 = vrot.lane.b32.xlu0 %v910, 116
  %v1673 = vpop.permute.xlu0 %1672
  %1674 = vrot.lane.b32.xlu0 %v911, 116
  %v1675 = vpop.permute.xlu0 %1674
  %1676 = vrot.lane.b32.xlu0 %v912, 116
  %v1677 = vpop.permute.xlu0 %1676
  %1678 = vrot.lane.b32.xlu0 %v913, 116
  %v1679 = vpop.permute.xlu0 %1678
  %1680 = vrot.lane.b32.xlu0 %v914, 116
  %v1681 = vpop.permute.xlu0 %1680
  %1682 = vrot.lane.b32.xlu0 %v915, 116
  %v1683 = vpop.permute.xlu0 %1682
  %s1684 = scalar_lea.vmem %s4, 256
  %v1685 = vld [vmem:[%s1684] sm:$0xf]
  %v1686 = vld [vmem:[%s1684 + $0x4] sm:$0xf]
  %v1687 = vld [vmem:[%s1684 + $0x8] sm:$0xf]
  %v1688 = vld [vmem:[%s1684 + $0xc] sm:$0xf]
  %v1689 = vld [vmem:[%s1684 + $0x10] sm:$0xf]
  %v1690 = vld [vmem:[%s1684 + $0x14] sm:$0xf]
  %v1691 = vld [vmem:[%s1684 + $0x18] sm:$0xf]
  %v1692 = vld [vmem:[%s1684 + $0x1c] sm:$0xf]
  %v1693 = vpack.c.bf16 %v1671, %v1669
  %v1694 = vpack.c.bf16 %v1675, %v1673
  %v1695 = vpack.c.bf16 %v1679, %v1677
  %v1696 = vpack.c.bf16 %v1683, %v1681
  %v1705 = vunpack.c.l.b16 %v1685
  %v1706 = vunpack.c.l.b16 %v1686
  %v1707 = vunpack.c.l.b16 %v1687
  %v1708 = vunpack.c.l.b16 %v1688
  %v1709 = vunpack.c.l.b16 %v1689
  %v1710 = vunpack.c.l.b16 %v1690
  %v1711 = vunpack.c.l.b16 %v1691
  %v1712 = vunpack.c.l.b16 %v1692
  %v1713 = vpack.c.b16 %v1706, %v1705
  %v1714 = vpack.c.b16 %v1708, %v1707
  %v1715 = vpack.c.b16 %v1710, %v1709
  %v1716 = vpack.c.b16 %v1712, %v1711
  %v1718 = vsel %vm993, %v1713, 0
  %v1721 = vsel %vm993, %v1714, 0
  %v1724 = vsel %vm993, %v1715, 0
  %v1727 = vsel %vm993, %v1716, 0
  %1729 = vmatpush.bf16.msra.mxu0 0
  %1730 = vmatpush.bf16.msra.mxu0 0
  %1731 = vmatpush.bf16.msra.mxu0 0
  %1732 = vmatpush.bf16.msra.mxu0 0
  %1733 = vmatpush.bf16.msra.mxu0 %v1696
  %1734 = vmatpush.bf16.msra.mxu0 %v1695
  %1735 = vmatpush.bf16.msra.mxu0 %v1694
  %1736 = vmatpush.bf16.msra.mxu0 %v1693
  %1737 = vmatmul.bf16.gmra.mxu0 %v1718
  %v1738 = vpop.f32.mrf.mxu0
  %v1739 = vadd.f32 0.0, %v1738
  %v1740 = vpop.f32.mrf.mxu0
  %v1741 = vadd.f32 0.0, %v1740
  %1742 = vmatmul.bf16.gmra.mxu0 %v1721
  %v1743 = vpop.f32.mrf.mxu0
  %v1744 = vadd.f32 0.0, %v1743
  %v1745 = vpop.f32.mrf.mxu0
  %v1746 = vadd.f32 0.0, %v1745
  %1747 = vmatmul.bf16.gmra.mxu0 %v1724
  %v1748 = vpop.f32.mrf.mxu0
  %v1749 = vadd.f32 0.0, %v1748
  %v1750 = vpop.f32.mrf.mxu0
  %v1751 = vadd.f32 0.0, %v1750
  %1752 = vmatmul.bf16.gmra.mxu0 %v1727
  %v1753 = vpop.f32.mrf.mxu0
  %v1754 = vadd.f32 0.0, %v1753
  %v1755 = vpop.f32.mrf.mxu0
  %v1756 = vadd.f32 0.0, %v1755
  %1757 = vdwg.mxu0
  %v1758 = vadd.f32 %v1660, %v1739
  %v1759 = vadd.f32 %v1661, %v1741
  %v1760 = vadd.f32 %v1662, %v1744
  %v1761 = vadd.f32 %v1663, %v1746
  %v1762 = vadd.f32 %v1664, %v1749
  %v1763 = vadd.f32 %v1665, %v1751
  %v1764 = vadd.f32 %v1666, %v1754
  %v1765 = vadd.f32 %v1667, %v1756
  %v1766 = vld [vmem:[%s5] sm:$0xff]
  %v1767 = vld [vmem:[%s5 + $0x8] sm:$0xff]
  %v1768 = vld [vmem:[%s5 + $0x10] sm:$0xff]
  %v1769 = vld [vmem:[%s5 + $0x18] sm:$0xff]
  %v1770 = vld [vmem:[%s5 + $0x20] sm:$0xff]
  %v1771 = vld [vmem:[%s5 + $0x28] sm:$0xff]
  %v1772 = vld [vmem:[%s5 + $0x30] sm:$0xff]
  %v1773 = vld [vmem:[%s5 + $0x38] sm:$0xff]
  %1775 = vset.pattern.permute.xlu0 0
  %1776 = vperm.xlu0 %1775, %v1766
  %v1777 = vpop.permute.xlu0 %1776
  %1780 = vset.pattern.permute.xlu0 0
  %1781 = vperm.xlu0 %1780, %v1767
  %v1782 = vpop.permute.xlu0 %1781
  %1785 = vset.pattern.permute.xlu0 0
  %1786 = vperm.xlu0 %1785, %v1768
  %v1787 = vpop.permute.xlu0 %1786
  %1790 = vset.pattern.permute.xlu0 0
  %1791 = vperm.xlu0 %1790, %v1769
  %v1792 = vpop.permute.xlu0 %1791
  %1795 = vset.pattern.permute.xlu0 0
  %1796 = vperm.xlu0 %1795, %v1770
  %v1797 = vpop.permute.xlu0 %1796
  %1800 = vset.pattern.permute.xlu0 0
  %1801 = vperm.xlu0 %1800, %v1771
  %v1802 = vpop.permute.xlu0 %1801
  %1805 = vset.pattern.permute.xlu0 0
  %1806 = vperm.xlu0 %1805, %v1772
  %v1807 = vpop.permute.xlu0 %1806
  %1810 = vset.pattern.permute.xlu0 0
  %1811 = vperm.xlu0 %1810, %v1773
  %v1812 = vpop.permute.xlu0 %1811
  %v1814 = vadd.f32 %v1758, %v1777
  %v1815 = vadd.f32 %v1759, %v1782
  %v1816 = vadd.f32 %v1760, %v1787
  %v1817 = vadd.f32 %v1761, %v1792
  %v1818 = vadd.f32 %v1762, %v1797
  %v1819 = vadd.f32 %v1763, %v1802
  %v1820 = vadd.f32 %v1764, %v1807
  %v1821 = vadd.f32 %v1765, %v1812
  %v1822 = vmax.f32 %v1814, 0.0
  %v1823 = vmax.f32 %v1815, 0.0
  %v1824 = vmax.f32 %v1816, 0.0
  %v1825 = vmax.f32 %v1817, 0.0
  %v1826 = vmax.f32 %v1818, 0.0
  %v1827 = vmax.f32 %v1819, 0.0
  %v1828 = vmax.f32 %v1820, 0.0
  %v1829 = vmax.f32 %v1821, 0.0
  %v1830 = vmax.f32 %v58, 0.0
  %v1831 = vmax.f32 %v59, 0.0
  %v1832 = vmax.f32 %v60, 0.0
  %v1833 = vmul.f32 %v1822, %v906
  %v1834 = vmul.f32 %v1823, %v906
  %v1835 = vmul.f32 %v1824, %v906
  %v1836 = vmul.f32 %v1825, %v906
  %v1837 = vmul.f32 %v1826, %v906
  %v1838 = vmul.f32 %v1827, %v906
  %v1839 = vmul.f32 %v1828, %v906
  %v1840 = vmul.f32 %v1829, %v906
  %v1841 = vmul.f32 %v1830, %v906
  %v1842 = vmul.f32 %v1831, %v906
  %v1843 = vmul.f32 %v1832, %v906
  %1844 = vrot.lane.b32.xlu0 %v1833, 12
  %v1845 = vpop.permute.xlu0 %1844
  %1846 = vrot.lane.b32.xlu0 %v1834, 12
  %v1847 = vpop.permute.xlu0 %1846
  %1848 = vrot.lane.b32.xlu0 %v1835, 12
  %v1849 = vpop.permute.xlu0 %1848
  %1850 = vrot.lane.b32.xlu0 %v1836, 12
  %v1851 = vpop.permute.xlu0 %1850
  %1852 = vrot.lane.b32.xlu0 %v1837, 12
  %v1853 = vpop.permute.xlu0 %1852
  %1854 = vrot.lane.b32.xlu0 %v1838, 12
  %v1855 = vpop.permute.xlu0 %1854
  %1856 = vrot.lane.b32.xlu0 %v1839, 12
  %v1857 = vpop.permute.xlu0 %1856
  %1858 = vrot.lane.b32.xlu0 %v1840, 12
  %v1859 = vpop.permute.xlu0 %1858
  %1860 = vrot.lane.b32.xlu0 %v1841, 12
  %v1861 = vpop.permute.xlu0 %1860
  %1862 = vrot.lane.b32.xlu0 %v1842, 12
  %v1863 = vpop.permute.xlu0 %1862
  %1864 = vrot.lane.b32.xlu0 %v1843, 12
  %v1865 = vpop.permute.xlu0 %1864
  %v1866 = vld [vmem:[%s6] sm:$0xf]
  %v1867 = vld [vmem:[%s6 + $0x4] sm:$0xf]
  %v1868 = vld [vmem:[%s6 + $0x8] sm:$0xf]
  %v1869 = vld [vmem:[%s6 + $0xc] sm:$0xf]
  %v1870 = vld [vmem:[%s6 + $0x10] sm:$0xf]
  %v1871 = vld [vmem:[%s6 + $0x14] sm:$0xf]
  %v1872 = vld [vmem:[%s6 + $0x18] sm:$0xf]
  %v1873 = vld [vmem:[%s6 + $0x1c] sm:$0xf]
  %v1874 = vpack.c.bf16 %v1847, %v1845
  %v1875 = vpack.c.bf16 %v1851, %v1849
  %v1876 = vpack.c.bf16 %v1855, %v1853
  %v1877 = vpack.c.bf16 %v1859, %v1857
  %v1878 = vpack.c.bf16 %v1863, %v1861
  %v1879 = vpack.c.bf16 %v1865, %v1865
  %1880 = vrot.lane.b32.xlu0 %v1833, 11
  %v1881 = vpop.permute.xlu0 %1880
  %1882 = vrot.lane.b32.xlu0 %v1834, 11
  %v1883 = vpop.permute.xlu0 %1882
  %1884 = vrot.lane.b32.xlu0 %v1835, 11
  %v1885 = vpop.permute.xlu0 %1884
  %1886 = vrot.lane.b32.xlu0 %v1836, 11
  %v1887 = vpop.permute.xlu0 %1886
  %1888 = vrot.lane.b32.xlu0 %v1837, 11
  %v1889 = vpop.permute.xlu0 %1888
  %1890 = vrot.lane.b32.xlu0 %v1838, 11
  %v1891 = vpop.permute.xlu0 %1890
  %1892 = vrot.lane.b32.xlu0 %v1839, 11
  %v1893 = vpop.permute.xlu0 %1892
  %1894 = vrot.lane.b32.xlu0 %v1840, 11
  %v1895 = vpop.permute.xlu0 %1894
  %1896 = vrot.lane.b32.xlu0 %v1841, 11
  %v1897 = vpop.permute.xlu0 %1896
  %1898 = vrot.lane.b32.xlu0 %v1842, 11
  %v1899 = vpop.permute.xlu0 %1898
  %1900 = vrot.lane.b32.xlu0 %v1843, 11
  %v1901 = vpop.permute.xlu0 %1900
  %s1902 = scalar_lea.vmem %s6, 32
  %v1903 = vld [vmem:[%s1902] sm:$0xf]
  %v1904 = vld [vmem:[%s1902 + $0x4] sm:$0xf]
  %v1905 = vld [vmem:[%s1902 + $0x8] sm:$0xf]
  %v1906 = vld [vmem:[%s1902 + $0xc] sm:$0xf]
  %v1907 = vld [vmem:[%s1902 + $0x10] sm:$0xf]
  %v1908 = vld [vmem:[%s1902 + $0x14] sm:$0xf]
  %v1909 = vld [vmem:[%s1902 + $0x18] sm:$0xf]
  %v1910 = vld [vmem:[%s1902 + $0x1c] sm:$0xf]
  %v1911 = vpack.c.bf16 %v1883, %v1881
  %v1912 = vpack.c.bf16 %v1887, %v1885
  %v1913 = vpack.c.bf16 %v1891, %v1889
  %v1914 = vpack.c.bf16 %v1895, %v1893
  %v1915 = vpack.c.bf16 %v1899, %v1897
  %v1916 = vpack.c.bf16 %v1901, %v1901
  %v1925 = vunpack.c.l.b16 %v1903
  %v1926 = vunpack.c.l.b16 %v1904
  %v1927 = vunpack.c.l.b16 %v1905
  %v1928 = vunpack.c.l.b16 %v1906
  %v1929 = vunpack.c.l.b16 %v1907
  %v1930 = vunpack.c.l.b16 %v1908
  %v1931 = vunpack.c.l.b16 %v1909
  %v1932 = vunpack.c.l.b16 %v1910
  %v1933 = vpack.c.b16 %v1926, %v1925
  %v1934 = vpack.c.b16 %v1928, %v1927
  %v1935 = vpack.c.b16 %v1930, %v1929
  %v1936 = vpack.c.b16 %v1932, %v1931
  %vm1937 = vcmask 703488
  %v1939 = vsel %vm1937, %v1933, 0
  %v1942 = vsel %vm1937, %v1934, 0
  %v1945 = vsel %vm1937, %v1935, 0
  %v1948 = vsel %vm1937, %v1936, 0
  %v1951 = vsel %vm127, %v1916, 0
  %1953 = vmatpush.bf16.msra.mxu0 0
  %1954 = vmatpush.bf16.msra.mxu0 0
  %1955 = vmatpush.bf16.msra.mxu0 %v1951
  %1956 = vmatpush.bf16.msra.mxu0 %v1915
  %1957 = vmatpush.bf16.msra.mxu0 %v1914
  %1958 = vmatpush.bf16.msra.mxu0 %v1913
  %1959 = vmatpush.bf16.msra.mxu0 %v1912
  %1960 = vmatpush.bf16.msra.mxu0 %v1911
  %1961 = vmatmul.bf16.gmra.mxu0 %v1939
  %v1962 = vpop.f32.mrf.mxu0
  %v1963 = vadd.f32 0.0, %v1962
  %v1964 = vpop.f32.mrf.mxu0
  %v1965 = vadd.f32 0.0, %v1964
  %1966 = vmatmul.bf16.gmra.mxu0 %v1942
  %v1967 = vpop.f32.mrf.mxu0
  %v1968 = vadd.f32 0.0, %v1967
  %v1969 = vpop.f32.mrf.mxu0
  %v1970 = vadd.f32 0.0, %v1969
  %1971 = vmatmul.bf16.gmra.mxu0 %v1945
  %v1972 = vpop.f32.mrf.mxu0
  %v1973 = vadd.f32 0.0, %v1972
  %v1974 = vpop.f32.mrf.mxu0
  %v1975 = vadd.f32 0.0, %v1974
  %1976 = vmatmul.bf16.gmra.mxu0 %v1948
  %v1977 = vpop.f32.mrf.mxu0
  %v1978 = vadd.f32 0.0, %v1977
  %v1979 = vpop.f32.mrf.mxu0
  %v1980 = vadd.f32 0.0, %v1979
  %1981 = vdwg.mxu0
  %v1990 = vunpack.c.l.b16 %v1866
  %v1991 = vunpack.c.l.b16 %v1867
  %v1992 = vunpack.c.l.b16 %v1868
  %v1993 = vunpack.c.l.b16 %v1869
  %v1994 = vunpack.c.l.b16 %v1870
  %v1995 = vunpack.c.l.b16 %v1871
  %v1996 = vunpack.c.l.b16 %v1872
  %v1997 = vunpack.c.l.b16 %v1873
  %v1998 = vpack.c.b16 %v1991, %v1990
  %v1999 = vpack.c.b16 %v1993, %v1992
  %v2000 = vpack.c.b16 %v1995, %v1994
  %v2001 = vpack.c.b16 %v1997, %v1996
  %v2003 = vsel %vm1937, %v1998, 0
  %v2006 = vsel %vm1937, %v1999, 0
  %v2009 = vsel %vm1937, %v2000, 0
  %v2012 = vsel %vm1937, %v2001, 0
  %v2015 = vsel %vm127, %v1879, 0
  %2017 = vmatpush.bf16.msra.mxu0 0
  %2018 = vmatpush.bf16.msra.mxu0 0
  %2019 = vmatpush.bf16.msra.mxu0 %v2015
  %2020 = vmatpush.bf16.msra.mxu0 %v1878
  %2021 = vmatpush.bf16.msra.mxu0 %v1877
  %2022 = vmatpush.bf16.msra.mxu0 %v1876
  %2023 = vmatpush.bf16.msra.mxu0 %v1875
  %2024 = vmatpush.bf16.msra.mxu0 %v1874
  %2025 = vmatmul.bf16.gmra.mxu0 %v2003
  %v2026 = vpop.f32.mrf.mxu0
  %v2027 = vadd.f32 %v1963, %v2026
  %v2028 = vpop.f32.mrf.mxu0
  %v2029 = vadd.f32 %v1965, %v2028
  %2030 = vmatmul.bf16.gmra.mxu0 %v2006
  %v2031 = vpop.f32.mrf.mxu0
  %v2032 = vadd.f32 %v1968, %v2031
  %v2033 = vpop.f32.mrf.mxu0
  %v2034 = vadd.f32 %v1970, %v2033
  %2035 = vmatmul.bf16.gmra.mxu0 %v2009
  %v2036 = vpop.f32.mrf.mxu0
  %v2037 = vadd.f32 %v1973, %v2036
  %v2038 = vpop.f32.mrf.mxu0
  %v2039 = vadd.f32 %v1975, %v2038
  %2040 = vmatmul.bf16.gmra.mxu0 %v2012
  %v2041 = vpop.f32.mrf.mxu0
  %v2042 = vadd.f32 %v1978, %v2041
  %v2043 = vpop.f32.mrf.mxu0
  %v2044 = vadd.f32 %v1980, %v2043
  %2045 = vdwg.mxu0
  %2046 = vrot.lane.b32.xlu0 %v1833, 10
  %v2047 = vpop.permute.xlu0 %2046
  %2048 = vrot.lane.b32.xlu0 %v1834, 10
  %v2049 = vpop.permute.xlu0 %2048
  %2050 = vrot.lane.b32.xlu0 %v1835, 10
  %v2051 = vpop.permute.xlu0 %2050
  %2052 = vrot.lane.b32.xlu0 %v1836, 10
  %v2053 = vpop.permute.xlu0 %2052
  %2054 = vrot.lane.b32.xlu0 %v1837, 10
  %v2055 = vpop.permute.xlu0 %2054
  %2056 = vrot.lane.b32.xlu0 %v1838, 10
  %v2057 = vpop.permute.xlu0 %2056
  %2058 = vrot.lane.b32.xlu0 %v1839, 10
  %v2059 = vpop.permute.xlu0 %2058
  %2060 = vrot.lane.b32.xlu0 %v1840, 10
  %v2061 = vpop.permute.xlu0 %2060
  %2062 = vrot.lane.b32.xlu0 %v1841, 10
  %v2063 = vpop.permute.xlu0 %2062
  %2064 = vrot.lane.b32.xlu0 %v1842, 10
  %v2065 = vpop.permute.xlu0 %2064
  %2066 = vrot.lane.b32.xlu0 %v1843, 10
  %v2067 = vpop.permute.xlu0 %2066
  %s2068 = scalar_lea.vmem %s6, 64
  %v2069 = vld [vmem:[%s2068] sm:$0xf]
  %v2070 = vld [vmem:[%s2068 + $0x4] sm:$0xf]
  %v2071 = vld [vmem:[%s2068 + $0x8] sm:$0xf]
  %v2072 = vld [vmem:[%s2068 + $0xc] sm:$0xf]
  %v2073 = vld [vmem:[%s2068 + $0x10] sm:$0xf]
  %v2074 = vld [vmem:[%s2068 + $0x14] sm:$0xf]
  %v2075 = vld [vmem:[%s2068 + $0x18] sm:$0xf]
  %v2076 = vld [vmem:[%s2068 + $0x1c] sm:$0xf]
  %v2077 = vpack.c.bf16 %v2049, %v2047
  %v2078 = vpack.c.bf16 %v2053, %v2051
  %v2079 = vpack.c.bf16 %v2057, %v2055
  %v2080 = vpack.c.bf16 %v2061, %v2059
  %v2081 = vpack.c.bf16 %v2065, %v2063
  %v2082 = vpack.c.bf16 %v2067, %v2067
  %v2091 = vunpack.c.l.b16 %v2069
  %v2092 = vunpack.c.l.b16 %v2070
  %v2093 = vunpack.c.l.b16 %v2071
  %v2094 = vunpack.c.l.b16 %v2072
  %v2095 = vunpack.c.l.b16 %v2073
  %v2096 = vunpack.c.l.b16 %v2074
  %v2097 = vunpack.c.l.b16 %v2075
  %v2098 = vunpack.c.l.b16 %v2076
  %v2099 = vpack.c.b16 %v2092, %v2091
  %v2100 = vpack.c.b16 %v2094, %v2093
  %v2101 = vpack.c.b16 %v2096, %v2095
  %v2102 = vpack.c.b16 %v2098, %v2097
  %v2104 = vsel %vm1937, %v2099, 0
  %v2107 = vsel %vm1937, %v2100, 0
  %v2110 = vsel %vm1937, %v2101, 0
  %v2113 = vsel %vm1937, %v2102, 0
  %v2116 = vsel %vm127, %v2082, 0
  %2118 = vmatpush.bf16.msra.mxu0 0
  %2119 = vmatpush.bf16.msra.mxu0 0
  %2120 = vmatpush.bf16.msra.mxu0 %v2116
  %2121 = vmatpush.bf16.msra.mxu0 %v2081
  %2122 = vmatpush.bf16.msra.mxu0 %v2080
  %2123 = vmatpush.bf16.msra.mxu0 %v2079
  %2124 = vmatpush.bf16.msra.mxu0 %v2078
  %2125 = vmatpush.bf16.msra.mxu0 %v2077
  %2126 = vmatmul.bf16.gmra.mxu0 %v2104
  %v2127 = vpop.f32.mrf.mxu0
  %v2128 = vadd.f32 0.0, %v2127
  %v2129 = vpop.f32.mrf.mxu0
  %v2130 = vadd.f32 0.0, %v2129
  %2131 = vmatmul.bf16.gmra.mxu0 %v2107
  %v2132 = vpop.f32.mrf.mxu0
  %v2133 = vadd.f32 0.0, %v2132
  %v2134 = vpop.f32.mrf.mxu0
  %v2135 = vadd.f32 0.0, %v2134
  %2136 = vmatmul.bf16.gmra.mxu0 %v2110
  %v2137 = vpop.f32.mrf.mxu0
  %v2138 = vadd.f32 0.0, %v2137
  %v2139 = vpop.f32.mrf.mxu0
  %v2140 = vadd.f32 0.0, %v2139
  %2141 = vmatmul.bf16.gmra.mxu0 %v2113
  %v2142 = vpop.f32.mrf.mxu0
  %v2143 = vadd.f32 0.0, %v2142
  %v2144 = vpop.f32.mrf.mxu0
  %v2145 = vadd.f32 0.0, %v2144
  %2146 = vdwg.mxu0
  %v2147 = vadd.f32 %v2027, %v2128
  %v2148 = vadd.f32 %v2029, %v2130
  %v2149 = vadd.f32 %v2032, %v2133
  %v2150 = vadd.f32 %v2034, %v2135
  %v2151 = vadd.f32 %v2037, %v2138
  %v2152 = vadd.f32 %v2039, %v2140
  %v2153 = vadd.f32 %v2042, %v2143
  %v2154 = vadd.f32 %v2044, %v2145
  %2155 = vrot.lane.b32.xlu0 %v1833, 1
  %v2156 = vpop.permute.xlu0 %2155
  %2157 = vrot.lane.b32.xlu0 %v1834, 1
  %v2158 = vpop.permute.xlu0 %2157
  %2159 = vrot.lane.b32.xlu0 %v1835, 1
  %v2160 = vpop.permute.xlu0 %2159
  %2161 = vrot.lane.b32.xlu0 %v1836, 1
  %v2162 = vpop.permute.xlu0 %2161
  %2163 = vrot.lane.b32.xlu0 %v1837, 1
  %v2164 = vpop.permute.xlu0 %2163
  %2165 = vrot.lane.b32.xlu0 %v1838, 1
  %v2166 = vpop.permute.xlu0 %2165
  %2167 = vrot.lane.b32.xlu0 %v1839, 1
  %v2168 = vpop.permute.xlu0 %2167
  %2169 = vrot.lane.b32.xlu0 %v1840, 1
  %v2170 = vpop.permute.xlu0 %2169
  %2171 = vrot.lane.b32.xlu0 %v1841, 1
  %v2172 = vpop.permute.xlu0 %2171
  %2173 = vrot.lane.b32.xlu0 %v1842, 1
  %v2174 = vpop.permute.xlu0 %2173
  %2175 = vrot.lane.b32.xlu0 %v1843, 1
  %v2176 = vpop.permute.xlu0 %2175
  %s2177 = scalar_lea.vmem %s6, 96
  %v2178 = vld [vmem:[%s2177] sm:$0xf]
  %v2179 = vld [vmem:[%s2177 + $0x4] sm:$0xf]
  %v2180 = vld [vmem:[%s2177 + $0x8] sm:$0xf]
  %v2181 = vld [vmem:[%s2177 + $0xc] sm:$0xf]
  %v2182 = vld [vmem:[%s2177 + $0x10] sm:$0xf]
  %v2183 = vld [vmem:[%s2177 + $0x14] sm:$0xf]
  %v2184 = vld [vmem:[%s2177 + $0x18] sm:$0xf]
  %v2185 = vld [vmem:[%s2177 + $0x1c] sm:$0xf]
  %v2186 = vpack.c.bf16 %v2158, %v2156
  %v2187 = vpack.c.bf16 %v2162, %v2160
  %v2188 = vpack.c.bf16 %v2166, %v2164
  %v2189 = vpack.c.bf16 %v2170, %v2168
  %v2190 = vpack.c.bf16 %v2174, %v2172
  %v2191 = vpack.c.bf16 %v2176, %v2176
  %v2200 = vunpack.c.l.b16 %v2178
  %v2201 = vunpack.c.l.b16 %v2179
  %v2202 = vunpack.c.l.b16 %v2180
  %v2203 = vunpack.c.l.b16 %v2181
  %v2204 = vunpack.c.l.b16 %v2182
  %v2205 = vunpack.c.l.b16 %v2183
  %v2206 = vunpack.c.l.b16 %v2184
  %v2207 = vunpack.c.l.b16 %v2185
  %v2208 = vpack.c.b16 %v2201, %v2200
  %v2209 = vpack.c.b16 %v2203, %v2202
  %v2210 = vpack.c.b16 %v2205, %v2204
  %v2211 = vpack.c.b16 %v2207, %v2206
  %v2213 = vsel %vm1937, %v2208, 0
  %v2216 = vsel %vm1937, %v2209, 0
  %v2219 = vsel %vm1937, %v2210, 0
  %v2222 = vsel %vm1937, %v2211, 0
  %v2225 = vsel %vm127, %v2191, 0
  %2227 = vmatpush.bf16.msra.mxu0 0
  %2228 = vmatpush.bf16.msra.mxu0 0
  %2229 = vmatpush.bf16.msra.mxu0 %v2225
  %2230 = vmatpush.bf16.msra.mxu0 %v2190
  %2231 = vmatpush.bf16.msra.mxu0 %v2189
  %2232 = vmatpush.bf16.msra.mxu0 %v2188
  %2233 = vmatpush.bf16.msra.mxu0 %v2187
  %2234 = vmatpush.bf16.msra.mxu0 %v2186
  %2235 = vmatmul.bf16.gmra.mxu0 %v2213
  %v2236 = vpop.f32.mrf.mxu0
  %v2237 = vadd.f32 0.0, %v2236
  %v2238 = vpop.f32.mrf.mxu0
  %v2239 = vadd.f32 0.0, %v2238
  %2240 = vmatmul.bf16.gmra.mxu0 %v2216
  %v2241 = vpop.f32.mrf.mxu0
  %v2242 = vadd.f32 0.0, %v2241
  %v2243 = vpop.f32.mrf.mxu0
  %v2244 = vadd.f32 0.0, %v2243
  %2245 = vmatmul.bf16.gmra.mxu0 %v2219
  %v2246 = vpop.f32.mrf.mxu0
  %v2247 = vadd.f32 0.0, %v2246
  %v2248 = vpop.f32.mrf.mxu0
  %v2249 = vadd.f32 0.0, %v2248
  %2250 = vmatmul.bf16.gmra.mxu0 %v2222
  %v2251 = vpop.f32.mrf.mxu0
  %v2252 = vadd.f32 0.0, %v2251
  %v2253 = vpop.f32.mrf.mxu0
  %v2254 = vadd.f32 0.0, %v2253
  %2255 = vdwg.mxu0
  %v2256 = vadd.f32 %v2147, %v2237
  %v2257 = vadd.f32 %v2148, %v2239
  %v2258 = vadd.f32 %v2149, %v2242
  %v2259 = vadd.f32 %v2150, %v2244
  %v2260 = vadd.f32 %v2151, %v2247
  %v2261 = vadd.f32 %v2152, %v2249
  %v2262 = vadd.f32 %v2153, %v2252
  %v2263 = vadd.f32 %v2154, %v2254
  %s2264 = scalar_lea.vmem %s6, 128
  %v2265 = vld [vmem:[%s2264] sm:$0xf]
  %v2266 = vld [vmem:[%s2264 + $0x4] sm:$0xf]
  %v2267 = vld [vmem:[%s2264 + $0x8] sm:$0xf]
  %v2268 = vld [vmem:[%s2264 + $0xc] sm:$0xf]
  %v2269 = vld [vmem:[%s2264 + $0x10] sm:$0xf]
  %v2270 = vld [vmem:[%s2264 + $0x14] sm:$0xf]
  %v2271 = vld [vmem:[%s2264 + $0x18] sm:$0xf]
  %v2272 = vld [vmem:[%s2264 + $0x1c] sm:$0xf]
  %v2273 = vpack.c.bf16 %v1834, %v1833
  %v2274 = vpack.c.bf16 %v1836, %v1835
  %v2275 = vpack.c.bf16 %v1838, %v1837
  %v2276 = vpack.c.bf16 %v1840, %v1839
  %v2277 = vpack.c.bf16 %v1842, %v1841
  %v2278 = vpack.c.bf16 %v1843, %v1843
  %v2287 = vunpack.c.l.b16 %v2265
  %v2288 = vunpack.c.l.b16 %v2266
  %v2289 = vunpack.c.l.b16 %v2267
  %v2290 = vunpack.c.l.b16 %v2268
  %v2291 = vunpack.c.l.b16 %v2269
  %v2292 = vunpack.c.l.b16 %v2270
  %v2293 = vunpack.c.l.b16 %v2271
  %v2294 = vunpack.c.l.b16 %v2272
  %v2295 = vpack.c.b16 %v2288, %v2287
  %v2296 = vpack.c.b16 %v2290, %v2289
  %v2297 = vpack.c.b16 %v2292, %v2291
  %v2298 = vpack.c.b16 %v2294, %v2293
  %v2300 = vsel %vm1937, %v2295, 0
  %v2303 = vsel %vm1937, %v2296, 0
  %v2306 = vsel %vm1937, %v2297, 0
  %v2309 = vsel %vm1937, %v2298, 0
  %v2312 = vsel %vm127, %v2278, 0
  %2314 = vmatpush.bf16.msra.mxu0 0
  %2315 = vmatpush.bf16.msra.mxu0 0
  %2316 = vmatpush.bf16.msra.mxu0 %v2312
  %2317 = vmatpush.bf16.msra.mxu0 %v2277
  %2318 = vmatpush.bf16.msra.mxu0 %v2276
  %2319 = vmatpush.bf16.msra.mxu0 %v2275
  %2320 = vmatpush.bf16.msra.mxu0 %v2274
  %2321 = vmatpush.bf16.msra.mxu0 %v2273
  %2322 = vmatmul.bf16.gmra.mxu0 %v2300
  %v2323 = vpop.f32.mrf.mxu0
  %v2324 = vadd.f32 0.0, %v2323
  %v2325 = vpop.f32.mrf.mxu0
  %v2326 = vadd.f32 0.0, %v2325
  %2327 = vmatmul.bf16.gmra.mxu0 %v2303
  %v2328 = vpop.f32.mrf.mxu0
  %v2329 = vadd.f32 0.0, %v2328
  %v2330 = vpop.f32.mrf.mxu0
  %v2331 = vadd.f32 0.0, %v2330
  %2332 = vmatmul.bf16.gmra.mxu0 %v2306
  %v2333 = vpop.f32.mrf.mxu0
  %v2334 = vadd.f32 0.0, %v2333
  %v2335 = vpop.f32.mrf.mxu0
  %v2336 = vadd.f32 0.0, %v2335
  %2337 = vmatmul.bf16.gmra.mxu0 %v2309
  %v2338 = vpop.f32.mrf.mxu0
  %v2339 = vadd.f32 0.0, %v2338
  %v2340 = vpop.f32.mrf.mxu0
  %v2341 = vadd.f32 0.0, %v2340
  %2342 = vdwg.mxu0
  %v2343 = vadd.f32 %v2256, %v2324
  %v2344 = vadd.f32 %v2257, %v2326
  %v2345 = vadd.f32 %v2258, %v2329
  %v2346 = vadd.f32 %v2259, %v2331
  %v2347 = vadd.f32 %v2260, %v2334
  %v2348 = vadd.f32 %v2261, %v2336
  %v2349 = vadd.f32 %v2262, %v2339
  %v2350 = vadd.f32 %v2263, %v2341
  %2351 = vrot.lane.b32.xlu0 %v1833, 127
  %v2352 = vpop.permute.xlu0 %2351
  %2353 = vrot.lane.b32.xlu0 %v1834, 127
  %v2354 = vpop.permute.xlu0 %2353
  %2355 = vrot.lane.b32.xlu0 %v1835, 127
  %v2356 = vpop.permute.xlu0 %2355
  %2357 = vrot.lane.b32.xlu0 %v1836, 127
  %v2358 = vpop.permute.xlu0 %2357
  %2359 = vrot.lane.b32.xlu0 %v1837, 127
  %v2360 = vpop.permute.xlu0 %2359
  %2361 = vrot.lane.b32.xlu0 %v1838, 127
  %v2362 = vpop.permute.xlu0 %2361
  %2363 = vrot.lane.b32.xlu0 %v1839, 127
  %v2364 = vpop.permute.xlu0 %2363
  %2365 = vrot.lane.b32.xlu0 %v1840, 127
  %v2366 = vpop.permute.xlu0 %2365
  %2367 = vrot.lane.b32.xlu0 %v1841, 127
  %v2368 = vpop.permute.xlu0 %2367
  %2369 = vrot.lane.b32.xlu0 %v1842, 127
  %v2370 = vpop.permute.xlu0 %2369
  %2371 = vrot.lane.b32.xlu0 %v1843, 127
  %v2372 = vpop.permute.xlu0 %2371
  %s2373 = scalar_lea.vmem %s6, 160
  %v2374 = vld [vmem:[%s2373] sm:$0xf]
  %v2375 = vld [vmem:[%s2373 + $0x4] sm:$0xf]
  %v2376 = vld [vmem:[%s2373 + $0x8] sm:$0xf]
  %v2377 = vld [vmem:[%s2373 + $0xc] sm:$0xf]
  %v2378 = vld [vmem:[%s2373 + $0x10] sm:$0xf]
  %v2379 = vld [vmem:[%s2373 + $0x14] sm:$0xf]
  %v2380 = vld [vmem:[%s2373 + $0x18] sm:$0xf]
  %v2381 = vld [vmem:[%s2373 + $0x1c] sm:$0xf]
  %v2382 = vpack.c.bf16 %v2354, %v2352
  %v2383 = vpack.c.bf16 %v2358, %v2356
  %v2384 = vpack.c.bf16 %v2362, %v2360
  %v2385 = vpack.c.bf16 %v2366, %v2364
  %v2386 = vpack.c.bf16 %v2370, %v2368
  %v2387 = vpack.c.bf16 %v2372, %v2372
  %v2396 = vunpack.c.l.b16 %v2374
  %v2397 = vunpack.c.l.b16 %v2375
  %v2398 = vunpack.c.l.b16 %v2376
  %v2399 = vunpack.c.l.b16 %v2377
  %v2400 = vunpack.c.l.b16 %v2378
  %v2401 = vunpack.c.l.b16 %v2379
  %v2402 = vunpack.c.l.b16 %v2380
  %v2403 = vunpack.c.l.b16 %v2381
  %v2404 = vpack.c.b16 %v2397, %v2396
  %v2405 = vpack.c.b16 %v2399, %v2398
  %v2406 = vpack.c.b16 %v2401, %v2400
  %v2407 = vpack.c.b16 %v2403, %v2402
  %v2409 = vsel %vm1937, %v2404, 0
  %v2412 = vsel %vm1937, %v2405, 0
  %v2415 = vsel %vm1937, %v2406, 0
  %v2418 = vsel %vm1937, %v2407, 0
  %v2421 = vsel %vm127, %v2387, 0
  %2423 = vmatpush.bf16.msra.mxu0 0
  %2424 = vmatpush.bf16.msra.mxu0 0
  %2425 = vmatpush.bf16.msra.mxu0 %v2421
  %2426 = vmatpush.bf16.msra.mxu0 %v2386
  %2427 = vmatpush.bf16.msra.mxu0 %v2385
  %2428 = vmatpush.bf16.msra.mxu0 %v2384
  %2429 = vmatpush.bf16.msra.mxu0 %v2383
  %2430 = vmatpush.bf16.msra.mxu0 %v2382
  %2431 = vmatmul.bf16.gmra.mxu0 %v2409
  %v2432 = vpop.f32.mrf.mxu0
  %v2433 = vadd.f32 0.0, %v2432
  %v2434 = vpop.f32.mrf.mxu0
  %v2435 = vadd.f32 0.0, %v2434
  %2436 = vmatmul.bf16.gmra.mxu0 %v2412
  %v2437 = vpop.f32.mrf.mxu0
  %v2438 = vadd.f32 0.0, %v2437
  %v2439 = vpop.f32.mrf.mxu0
  %v2440 = vadd.f32 0.0, %v2439
  %2441 = vmatmul.bf16.gmra.mxu0 %v2415
  %v2442 = vpop.f32.mrf.mxu0
  %v2443 = vadd.f32 0.0, %v2442
  %v2444 = vpop.f32.mrf.mxu0
  %v2445 = vadd.f32 0.0, %v2444
  %2446 = vmatmul.bf16.gmra.mxu0 %v2418
  %v2447 = vpop.f32.mrf.mxu0
  %v2448 = vadd.f32 0.0, %v2447
  %v2449 = vpop.f32.mrf.mxu0
  %v2450 = vadd.f32 0.0, %v2449
  %2451 = vdwg.mxu0
  %v2452 = vadd.f32 %v2343, %v2433
  %v2453 = vadd.f32 %v2344, %v2435
  %v2454 = vadd.f32 %v2345, %v2438
  %v2455 = vadd.f32 %v2346, %v2440
  %v2456 = vadd.f32 %v2347, %v2443
  %v2457 = vadd.f32 %v2348, %v2445
  %v2458 = vadd.f32 %v2349, %v2448
  %v2459 = vadd.f32 %v2350, %v2450
  %2460 = vrot.lane.b32.xlu0 %v1833, 118
  %v2461 = vpop.permute.xlu0 %2460
  %2462 = vrot.lane.b32.xlu0 %v1834, 118
  %v2463 = vpop.permute.xlu0 %2462
  %2464 = vrot.lane.b32.xlu0 %v1835, 118
  %v2465 = vpop.permute.xlu0 %2464
  %2466 = vrot.lane.b32.xlu0 %v1836, 118
  %v2467 = vpop.permute.xlu0 %2466
  %2468 = vrot.lane.b32.xlu0 %v1837, 118
  %v2469 = vpop.permute.xlu0 %2468
  %2470 = vrot.lane.b32.xlu0 %v1838, 118
  %v2471 = vpop.permute.xlu0 %2470
  %2472 = vrot.lane.b32.xlu0 %v1839, 118
  %v2473 = vpop.permute.xlu0 %2472
  %2474 = vrot.lane.b32.xlu0 %v1840, 118
  %v2475 = vpop.permute.xlu0 %2474
  %2476 = vrot.lane.b32.xlu0 %v1841, 118
  %v2477 = vpop.permute.xlu0 %2476
  %2478 = vrot.lane.b32.xlu0 %v1842, 118
  %v2479 = vpop.permute.xlu0 %2478
  %2480 = vrot.lane.b32.xlu0 %v1843, 118
  %v2481 = vpop.permute.xlu0 %2480
  %s2482 = scalar_lea.vmem %s6, 192
  %v2483 = vld [vmem:[%s2482] sm:$0xf]
  %v2484 = vld [vmem:[%s2482 + $0x4] sm:$0xf]
  %v2485 = vld [vmem:[%s2482 + $0x8] sm:$0xf]
  %v2486 = vld [vmem:[%s2482 + $0xc] sm:$0xf]
  %v2487 = vld [vmem:[%s2482 + $0x10] sm:$0xf]
  %v2488 = vld [vmem:[%s2482 + $0x14] sm:$0xf]
  %v2489 = vld [vmem:[%s2482 + $0x18] sm:$0xf]
  %v2490 = vld [vmem:[%s2482 + $0x1c] sm:$0xf]
  %v2491 = vpack.c.bf16 %v2463, %v2461
  %v2492 = vpack.c.bf16 %v2467, %v2465
  %v2493 = vpack.c.bf16 %v2471, %v2469
  %v2494 = vpack.c.bf16 %v2475, %v2473
  %v2495 = vpack.c.bf16 %v2479, %v2477
  %v2496 = vpack.c.bf16 %v2481, %v2481
  %v2505 = vunpack.c.l.b16 %v2483
  %v2506 = vunpack.c.l.b16 %v2484
  %v2507 = vunpack.c.l.b16 %v2485
  %v2508 = vunpack.c.l.b16 %v2486
  %v2509 = vunpack.c.l.b16 %v2487
  %v2510 = vunpack.c.l.b16 %v2488
  %v2511 = vunpack.c.l.b16 %v2489
  %v2512 = vunpack.c.l.b16 %v2490
  %v2513 = vpack.c.b16 %v2506, %v2505
  %v2514 = vpack.c.b16 %v2508, %v2507
  %v2515 = vpack.c.b16 %v2510, %v2509
  %v2516 = vpack.c.b16 %v2512, %v2511
  %v2518 = vsel %vm1937, %v2513, 0
  %v2521 = vsel %vm1937, %v2514, 0
  %v2524 = vsel %vm1937, %v2515, 0
  %v2527 = vsel %vm1937, %v2516, 0
  %v2530 = vsel %vm127, %v2496, 0
  %2532 = vmatpush.bf16.msra.mxu0 0
  %2533 = vmatpush.bf16.msra.mxu0 0
  %2534 = vmatpush.bf16.msra.mxu0 %v2530
  %2535 = vmatpush.bf16.msra.mxu0 %v2495
  %2536 = vmatpush.bf16.msra.mxu0 %v2494
  %2537 = vmatpush.bf16.msra.mxu0 %v2493
  %2538 = vmatpush.bf16.msra.mxu0 %v2492
  %2539 = vmatpush.bf16.msra.mxu0 %v2491
  %2540 = vmatmul.bf16.gmra.mxu0 %v2518
  %v2541 = vpop.f32.mrf.mxu0
  %v2542 = vadd.f32 0.0, %v2541
  %v2543 = vpop.f32.mrf.mxu0
  %v2544 = vadd.f32 0.0, %v2543
  %2545 = vmatmul.bf16.gmra.mxu0 %v2521
  %v2546 = vpop.f32.mrf.mxu0
  %v2547 = vadd.f32 0.0, %v2546
  %v2548 = vpop.f32.mrf.mxu0
  %v2549 = vadd.f32 0.0, %v2548
  %2550 = vmatmul.bf16.gmra.mxu0 %v2524
  %v2551 = vpop.f32.mrf.mxu0
  %v2552 = vadd.f32 0.0, %v2551
  %v2553 = vpop.f32.mrf.mxu0
  %v2554 = vadd.f32 0.0, %v2553
  %2555 = vmatmul.bf16.gmra.mxu0 %v2527
  %v2556 = vpop.f32.mrf.mxu0
  %v2557 = vadd.f32 0.0, %v2556
  %v2558 = vpop.f32.mrf.mxu0
  %v2559 = vadd.f32 0.0, %v2558
  %2560 = vdwg.mxu0
  %v2561 = vadd.f32 %v2452, %v2542
  %v2562 = vadd.f32 %v2453, %v2544
  %v2563 = vadd.f32 %v2454, %v2547
  %v2564 = vadd.f32 %v2455, %v2549
  %v2565 = vadd.f32 %v2456, %v2552
  %v2566 = vadd.f32 %v2457, %v2554
  %v2567 = vadd.f32 %v2458, %v2557
  %v2568 = vadd.f32 %v2459, %v2559
  %2569 = vrot.lane.b32.xlu0 %v1833, 117
  %v2570 = vpop.permute.xlu0 %2569
  %2571 = vrot.lane.b32.xlu0 %v1834, 117
  %v2572 = vpop.permute.xlu0 %2571
  %2573 = vrot.lane.b32.xlu0 %v1835, 117
  %v2574 = vpop.permute.xlu0 %2573
  %2575 = vrot.lane.b32.xlu0 %v1836, 117
  %v2576 = vpop.permute.xlu0 %2575
  %2577 = vrot.lane.b32.xlu0 %v1837, 117
  %v2578 = vpop.permute.xlu0 %2577
  %2579 = vrot.lane.b32.xlu0 %v1838, 117
  %v2580 = vpop.permute.xlu0 %2579
  %2581 = vrot.lane.b32.xlu0 %v1839, 117
  %v2582 = vpop.permute.xlu0 %2581
  %2583 = vrot.lane.b32.xlu0 %v1840, 117
  %v2584 = vpop.permute.xlu0 %2583
  %2585 = vrot.lane.b32.xlu0 %v1841, 117
  %v2586 = vpop.permute.xlu0 %2585
  %2587 = vrot.lane.b32.xlu0 %v1842, 117
  %v2588 = vpop.permute.xlu0 %2587
  %2589 = vrot.lane.b32.xlu0 %v1843, 117
  %v2590 = vpop.permute.xlu0 %2589
  %s2591 = scalar_lea.vmem %s6, 224
  %v2592 = vld [vmem:[%s2591] sm:$0xf]
  %v2593 = vld [vmem:[%s2591 + $0x4] sm:$0xf]
  %v2594 = vld [vmem:[%s2591 + $0x8] sm:$0xf]
  %v2595 = vld [vmem:[%s2591 + $0xc] sm:$0xf]
  %v2596 = vld [vmem:[%s2591 + $0x10] sm:$0xf]
  %v2597 = vld [vmem:[%s2591 + $0x14] sm:$0xf]
  %v2598 = vld [vmem:[%s2591 + $0x18] sm:$0xf]
  %v2599 = vld [vmem:[%s2591 + $0x1c] sm:$0xf]
  %v2600 = vpack.c.bf16 %v2572, %v2570
  %v2601 = vpack.c.bf16 %v2576, %v2574
  %v2602 = vpack.c.bf16 %v2580, %v2578
  %v2603 = vpack.c.bf16 %v2584, %v2582
  %v2604 = vpack.c.bf16 %v2588, %v2586
  %v2605 = vpack.c.bf16 %v2590, %v2590
  %v2614 = vunpack.c.l.b16 %v2592
  %v2615 = vunpack.c.l.b16 %v2593
  %v2616 = vunpack.c.l.b16 %v2594
  %v2617 = vunpack.c.l.b16 %v2595
  %v2618 = vunpack.c.l.b16 %v2596
  %v2619 = vunpack.c.l.b16 %v2597
  %v2620 = vunpack.c.l.b16 %v2598
  %v2621 = vunpack.c.l.b16 %v2599
  %v2622 = vpack.c.b16 %v2615, %v2614
  %v2623 = vpack.c.b16 %v2617, %v2616
  %v2624 = vpack.c.b16 %v2619, %v2618
  %v2625 = vpack.c.b16 %v2621, %v2620
  %v2627 = vsel %vm1937, %v2622, 0
  %v2630 = vsel %vm1937, %v2623, 0
  %v2633 = vsel %vm1937, %v2624, 0
  %v2636 = vsel %vm1937, %v2625, 0
  %v2639 = vsel %vm127, %v2605, 0
  %2641 = vmatpush.bf16.msra.mxu0 0
  %2642 = vmatpush.bf16.msra.mxu0 0
  %2643 = vmatpush.bf16.msra.mxu0 %v2639
  %2644 = vmatpush.bf16.msra.mxu0 %v2604
  %2645 = vmatpush.bf16.msra.mxu0 %v2603
  %2646 = vmatpush.bf16.msra.mxu0 %v2602
  %2647 = vmatpush.bf16.msra.mxu0 %v2601
  %2648 = vmatpush.bf16.msra.mxu0 %v2600
  %2649 = vmatmul.bf16.gmra.mxu0 %v2627
  %v2650 = vpop.f32.mrf.mxu0
  %v2651 = vadd.f32 0.0, %v2650
  %v2652 = vpop.f32.mrf.mxu0
  %v2653 = vadd.f32 0.0, %v2652
  %2654 = vmatmul.bf16.gmra.mxu0 %v2630
  %v2655 = vpop.f32.mrf.mxu0
  %v2656 = vadd.f32 0.0, %v2655
  %v2657 = vpop.f32.mrf.mxu0
  %v2658 = vadd.f32 0.0, %v2657
  %2659 = vmatmul.bf16.gmra.mxu0 %v2633
  %v2660 = vpop.f32.mrf.mxu0
  %v2661 = vadd.f32 0.0, %v2660
  %v2662 = vpop.f32.mrf.mxu0
  %v2663 = vadd.f32 0.0, %v2662
  %2664 = vmatmul.bf16.gmra.mxu0 %v2636
  %v2665 = vpop.f32.mrf.mxu0
  %v2666 = vadd.f32 0.0, %v2665
  %v2667 = vpop.f32.mrf.mxu0
  %v2668 = vadd.f32 0.0, %v2667
  %2669 = vdwg.mxu0
  %v2670 = vadd.f32 %v2561, %v2651
  %v2671 = vadd.f32 %v2562, %v2653
  %v2672 = vadd.f32 %v2563, %v2656
  %v2673 = vadd.f32 %v2564, %v2658
  %v2674 = vadd.f32 %v2565, %v2661
  %v2675 = vadd.f32 %v2566, %v2663
  %v2676 = vadd.f32 %v2567, %v2666
  %v2677 = vadd.f32 %v2568, %v2668
  %2678 = vrot.lane.b32.xlu0 %v1833, 116
  %v2679 = vpop.permute.xlu0 %2678
  %2680 = vrot.lane.b32.xlu0 %v1834, 116
  %v2681 = vpop.permute.xlu0 %2680
  %2682 = vrot.lane.b32.xlu0 %v1835, 116
  %v2683 = vpop.permute.xlu0 %2682
  %2684 = vrot.lane.b32.xlu0 %v1836, 116
  %v2685 = vpop.permute.xlu0 %2684
  %2686 = vrot.lane.b32.xlu0 %v1837, 116
  %v2687 = vpop.permute.xlu0 %2686
  %2688 = vrot.lane.b32.xlu0 %v1838, 116
  %v2689 = vpop.permute.xlu0 %2688
  %2690 = vrot.lane.b32.xlu0 %v1839, 116
  %v2691 = vpop.permute.xlu0 %2690
  %2692 = vrot.lane.b32.xlu0 %v1840, 116
  %v2693 = vpop.permute.xlu0 %2692
  %2694 = vrot.lane.b32.xlu0 %v1841, 116
  %v2695 = vpop.permute.xlu0 %2694
  %2696 = vrot.lane.b32.xlu0 %v1842, 116
  %v2697 = vpop.permute.xlu0 %2696
  %2698 = vrot.lane.b32.xlu0 %v1843, 116
  %v2699 = vpop.permute.xlu0 %2698
  %s2700 = scalar_lea.vmem %s6, 256
  %v2701 = vld [vmem:[%s2700] sm:$0xf]
  %v2702 = vld [vmem:[%s2700 + $0x4] sm:$0xf]
  %v2703 = vld [vmem:[%s2700 + $0x8] sm:$0xf]
  %v2704 = vld [vmem:[%s2700 + $0xc] sm:$0xf]
  %v2705 = vld [vmem:[%s2700 + $0x10] sm:$0xf]
  %v2706 = vld [vmem:[%s2700 + $0x14] sm:$0xf]
  %v2707 = vld [vmem:[%s2700 + $0x18] sm:$0xf]
  %v2708 = vld [vmem:[%s2700 + $0x1c] sm:$0xf]
  %v2709 = vpack.c.bf16 %v2681, %v2679
  %v2710 = vpack.c.bf16 %v2685, %v2683
  %v2711 = vpack.c.bf16 %v2689, %v2687
  %v2712 = vpack.c.bf16 %v2693, %v2691
  %v2713 = vpack.c.bf16 %v2697, %v2695
  %v2714 = vpack.c.bf16 %v2699, %v2699
  %v2723 = vunpack.c.l.b16 %v2701
  %v2724 = vunpack.c.l.b16 %v2702
  %v2725 = vunpack.c.l.b16 %v2703
  %v2726 = vunpack.c.l.b16 %v2704
  %v2727 = vunpack.c.l.b16 %v2705
  %v2728 = vunpack.c.l.b16 %v2706
  %v2729 = vunpack.c.l.b16 %v2707
  %v2730 = vunpack.c.l.b16 %v2708
  %v2731 = vpack.c.b16 %v2724, %v2723
  %v2732 = vpack.c.b16 %v2726, %v2725
  %v2733 = vpack.c.b16 %v2728, %v2727
  %v2734 = vpack.c.b16 %v2730, %v2729
  %v2736 = vsel %vm1937, %v2731, 0
  %v2739 = vsel %vm1937, %v2732, 0
  %v2742 = vsel %vm1937, %v2733, 0
  %v2745 = vsel %vm1937, %v2734, 0
  %v2748 = vsel %vm127, %v2714, 0
  %2750 = vmatpush.bf16.msra.mxu0 0
  %2751 = vmatpush.bf16.msra.mxu0 0
  %2752 = vmatpush.bf16.msra.mxu0 %v2748
  %2753 = vmatpush.bf16.msra.mxu0 %v2713
  %2754 = vmatpush.bf16.msra.mxu0 %v2712
  %2755 = vmatpush.bf16.msra.mxu0 %v2711
  %2756 = vmatpush.bf16.msra.mxu0 %v2710
  %2757 = vmatpush.bf16.msra.mxu0 %v2709
  %2758 = vmatmul.bf16.gmra.mxu0 %v2736
  %v2759 = vpop.f32.mrf.mxu0
  %v2760 = vadd.f32 0.0, %v2759
  %v2761 = vpop.f32.mrf.mxu0
  %v2762 = vadd.f32 0.0, %v2761
  %2763 = vmatmul.bf16.gmra.mxu0 %v2739
  %v2764 = vpop.f32.mrf.mxu0
  %v2765 = vadd.f32 0.0, %v2764
  %v2766 = vpop.f32.mrf.mxu0
  %v2767 = vadd.f32 0.0, %v2766
  %2768 = vmatmul.bf16.gmra.mxu0 %v2742
  %v2769 = vpop.f32.mrf.mxu0
  %v2770 = vadd.f32 0.0, %v2769
  %v2771 = vpop.f32.mrf.mxu0
  %v2772 = vadd.f32 0.0, %v2771
  %2773 = vmatmul.bf16.gmra.mxu0 %v2745
  %v2774 = vpop.f32.mrf.mxu0
  %v2775 = vadd.f32 0.0, %v2774
  %v2776 = vpop.f32.mrf.mxu0
  %v2777 = vadd.f32 0.0, %v2776
  %2778 = vdwg.mxu0
  %v2779 = vadd.f32 %v2670, %v2760
  %v2780 = vadd.f32 %v2671, %v2762
  %v2781 = vadd.f32 %v2672, %v2765
  %v2782 = vadd.f32 %v2673, %v2767
  %v2783 = vadd.f32 %v2674, %v2770
  %v2784 = vadd.f32 %v2675, %v2772
  %v2785 = vadd.f32 %v2676, %v2775
  %v2786 = vadd.f32 %v2677, %v2777
  %v2787 = vld [vmem:[%s7] sm:$0xff]
  %v2788 = vld [vmem:[%s7 + $0x8] sm:$0xff]
  %v2789 = vld [vmem:[%s7 + $0x10] sm:$0xff]
  %v2790 = vld [vmem:[%s7 + $0x18] sm:$0xff]
  %v2791 = vld [vmem:[%s7 + $0x20] sm:$0xff]
  %v2792 = vld [vmem:[%s7 + $0x28] sm:$0xff]
  %v2793 = vld [vmem:[%s7 + $0x30] sm:$0xff]
  %v2794 = vld [vmem:[%s7 + $0x38] sm:$0xff]
  %2796 = vset.pattern.permute.xlu0 0
  %2797 = vperm.xlu0 %2796, %v2787
  %v2798 = vpop.permute.xlu0 %2797
  %2801 = vset.pattern.permute.xlu0 0
  %2802 = vperm.xlu0 %2801, %v2788
  %v2803 = vpop.permute.xlu0 %2802
  %2806 = vset.pattern.permute.xlu0 0
  %2807 = vperm.xlu0 %2806, %v2789
  %v2808 = vpop.permute.xlu0 %2807
  %2811 = vset.pattern.permute.xlu0 0
  %2812 = vperm.xlu0 %2811, %v2790
  %v2813 = vpop.permute.xlu0 %2812
  %2816 = vset.pattern.permute.xlu0 0
  %2817 = vperm.xlu0 %2816, %v2791
  %v2818 = vpop.permute.xlu0 %2817
  %2821 = vset.pattern.permute.xlu0 0
  %2822 = vperm.xlu0 %2821, %v2792
  %v2823 = vpop.permute.xlu0 %2822
  %2826 = vset.pattern.permute.xlu0 0
  %2827 = vperm.xlu0 %2826, %v2793
  %v2828 = vpop.permute.xlu0 %2827
  %2831 = vset.pattern.permute.xlu0 0
  %2832 = vperm.xlu0 %2831, %v2794
  %v2833 = vpop.permute.xlu0 %2832
  %v2835 = vadd.f32 %v2779, %v2798
  %v2836 = vadd.f32 %v2780, %v2803
  %v2837 = vadd.f32 %v2781, %v2808
  %v2838 = vadd.f32 %v2782, %v2813
  %v2839 = vadd.f32 %v2783, %v2818
  %v2840 = vadd.f32 %v2784, %v2823
  %v2841 = vadd.f32 %v2785, %v2828
  %v2842 = vadd.f32 %v2786, %v2833
  %v2843 = vmax.f32 %v2835, 0.0
  %v2844 = vmax.f32 %v2836, 0.0
  %v2845 = vmax.f32 %v2837, 0.0
  %v2846 = vmax.f32 %v2838, 0.0
  %v2847 = vmax.f32 %v2839, 0.0
  %v2848 = vmax.f32 %v2840, 0.0
  %v2849 = vmax.f32 %v2841, 0.0
  %v2850 = vmax.f32 %v2842, 0.0
  %v2851 = vmul.f32 %v2843, %v906
  %v2852 = vmul.f32 %v2844, %v906
  %v2853 = vmul.f32 %v2845, %v906
  %v2854 = vmul.f32 %v2846, %v906
  %v2855 = vmul.f32 %v2847, %v906
  %v2856 = vmul.f32 %v2848, %v906
  %v2857 = vmul.f32 %v2849, %v906
  %v2858 = vmul.f32 %v2850, %v906
  %2859 = vrot.lane.b32.xlu0 %v2851, 12
  %v2860 = vpop.permute.xlu0 %2859
  %2861 = vrot.lane.b32.xlu0 %v2852, 12
  %v2862 = vpop.permute.xlu0 %2861
  %2863 = vrot.lane.b32.xlu0 %v2853, 12
  %v2864 = vpop.permute.xlu0 %2863
  %2865 = vrot.lane.b32.xlu0 %v2854, 12
  %v2866 = vpop.permute.xlu0 %2865
  %2867 = vrot.lane.b32.xlu0 %v2855, 12
  %v2868 = vpop.permute.xlu0 %2867
  %2869 = vrot.lane.b32.xlu0 %v2856, 12
  %v2870 = vpop.permute.xlu0 %2869
  %2871 = vrot.lane.b32.xlu0 %v2857, 12
  %v2872 = vpop.permute.xlu0 %2871
  %2873 = vrot.lane.b32.xlu0 %v2858, 12
  %v2874 = vpop.permute.xlu0 %2873
  %v2875 = vpack.c.bf16 %v2862, %v2860
  %v2876 = vpack.c.bf16 %v2866, %v2864
  %v2877 = vpack.c.bf16 %v2870, %v2868
  %v2878 = vpack.c.bf16 %v2874, %v2872
  %2879 = vrot.lane.b32.xlu0 %v2851, 11
  %v2880 = vpop.permute.xlu0 %2879
  %2881 = vrot.lane.b32.xlu0 %v2852, 11
  %v2882 = vpop.permute.xlu0 %2881
  %2883 = vrot.lane.b32.xlu0 %v2853, 11
  %v2884 = vpop.permute.xlu0 %2883
  %2885 = vrot.lane.b32.xlu0 %v2854, 11
  %v2886 = vpop.permute.xlu0 %2885
  %2887 = vrot.lane.b32.xlu0 %v2855, 11
  %v2888 = vpop.permute.xlu0 %2887
  %2889 = vrot.lane.b32.xlu0 %v2856, 11
  %v2890 = vpop.permute.xlu0 %2889
  %2891 = vrot.lane.b32.xlu0 %v2857, 11
  %v2892 = vpop.permute.xlu0 %2891
  %2893 = vrot.lane.b32.xlu0 %v2858, 11
  %v2894 = vpop.permute.xlu0 %2893
  %v2895 = vpack.c.bf16 %v2882, %v2880
  %v2896 = vpack.c.bf16 %v2886, %v2884
  %v2897 = vpack.c.bf16 %v2890, %v2888
  %v2898 = vpack.c.bf16 %v2894, %v2892
  %2899 = vmatpush.bf16.msra.mxu0 0
  %2900 = vmatpush.bf16.msra.mxu0 0
  %2901 = vmatpush.bf16.msra.mxu0 0
  %2902 = vmatpush.bf16.msra.mxu0 0
  %2903 = vmatpush.bf16.msra.mxu0 %v2898
  %2904 = vmatpush.bf16.msra.mxu0 %v2897
  %2905 = vmatpush.bf16.msra.mxu0 %v2896
  %2906 = vmatpush.bf16.msra.mxu0 %v2895
  %2907 = vmatmul.bf16.gmra.mxu0 %v995
  %v2908 = vpop.f32.mrf.mxu0
  %v2909 = vadd.f32 0.0, %v2908
  %v2910 = vpop.f32.mrf.mxu0
  %v2911 = vadd.f32 0.0, %v2910
  %2912 = vmatmul.bf16.gmra.mxu0 %v998
  %v2913 = vpop.f32.mrf.mxu0
  %v2914 = vadd.f32 0.0, %v2913
  %v2915 = vpop.f32.mrf.mxu0
  %v2916 = vadd.f32 0.0, %v2915
  %2917 = vmatmul.bf16.gmra.mxu0 %v1001
  %v2918 = vpop.f32.mrf.mxu0
  %v2919 = vadd.f32 0.0, %v2918
  %v2920 = vpop.f32.mrf.mxu0
  %v2921 = vadd.f32 0.0, %v2920
  %2922 = vmatmul.bf16.gmra.mxu0 %v1004
  %v2923 = vpop.f32.mrf.mxu0
  %v2924 = vadd.f32 0.0, %v2923
  %v2925 = vpop.f32.mrf.mxu0
  %v2926 = vadd.f32 0.0, %v2925
  %2927 = vdwg.mxu0
  %2928 = vmatpush.bf16.msra.mxu0 0
  %2929 = vmatpush.bf16.msra.mxu0 0
  %2930 = vmatpush.bf16.msra.mxu0 0
  %2931 = vmatpush.bf16.msra.mxu0 0
  %2932 = vmatpush.bf16.msra.mxu0 %v2878
  %2933 = vmatpush.bf16.msra.mxu0 %v2877
  %2934 = vmatpush.bf16.msra.mxu0 %v2876
  %2935 = vmatpush.bf16.msra.mxu0 %v2875
  %2936 = vmatmul.bf16.gmra.mxu0 %v1056
  %v2937 = vpop.f32.mrf.mxu0
  %v2938 = vadd.f32 %v2909, %v2937
  %v2939 = vpop.f32.mrf.mxu0
  %v2940 = vadd.f32 %v2911, %v2939
  %2941 = vmatmul.bf16.gmra.mxu0 %v1059
  %v2942 = vpop.f32.mrf.mxu0
  %v2943 = vadd.f32 %v2914, %v2942
  %v2944 = vpop.f32.mrf.mxu0
  %v2945 = vadd.f32 %v2916, %v2944
  %2946 = vmatmul.bf16.gmra.mxu0 %v1062
  %v2947 = vpop.f32.mrf.mxu0
  %v2948 = vadd.f32 %v2919, %v2947
  %v2949 = vpop.f32.mrf.mxu0
  %v2950 = vadd.f32 %v2921, %v2949
  %2951 = vmatmul.bf16.gmra.mxu0 %v1065
  %v2952 = vpop.f32.mrf.mxu0
  %v2953 = vadd.f32 %v2924, %v2952
  %v2954 = vpop.f32.mrf.mxu0
  %v2955 = vadd.f32 %v2926, %v2954
  %2956 = vdwg.mxu0
  %2957 = vrot.lane.b32.xlu0 %v2851, 10
  %v2958 = vpop.permute.xlu0 %2957
  %2959 = vrot.lane.b32.xlu0 %v2852, 10
  %v2960 = vpop.permute.xlu0 %2959
  %2961 = vrot.lane.b32.xlu0 %v2853, 10
  %v2962 = vpop.permute.xlu0 %2961
  %2963 = vrot.lane.b32.xlu0 %v2854, 10
  %v2964 = vpop.permute.xlu0 %2963
  %2965 = vrot.lane.b32.xlu0 %v2855, 10
  %v2966 = vpop.permute.xlu0 %2965
  %2967 = vrot.lane.b32.xlu0 %v2856, 10
  %v2968 = vpop.permute.xlu0 %2967
  %2969 = vrot.lane.b32.xlu0 %v2857, 10
  %v2970 = vpop.permute.xlu0 %2969
  %2971 = vrot.lane.b32.xlu0 %v2858, 10
  %v2972 = vpop.permute.xlu0 %2971
  %v2973 = vpack.c.bf16 %v2960, %v2958
  %v2974 = vpack.c.bf16 %v2964, %v2962
  %v2975 = vpack.c.bf16 %v2968, %v2966
  %v2976 = vpack.c.bf16 %v2972, %v2970
  %2977 = vmatpush.bf16.msra.mxu0 0
  %2978 = vmatpush.bf16.msra.mxu0 0
  %2979 = vmatpush.bf16.msra.mxu0 0
  %2980 = vmatpush.bf16.msra.mxu0 0
  %2981 = vmatpush.bf16.msra.mxu0 %v2976
  %2982 = vmatpush.bf16.msra.mxu0 %v2975
  %2983 = vmatpush.bf16.msra.mxu0 %v2974
  %2984 = vmatpush.bf16.msra.mxu0 %v2973
  %2985 = vmatmul.bf16.gmra.mxu0 %v1146
  %v2986 = vpop.f32.mrf.mxu0
  %v2987 = vadd.f32 0.0, %v2986
  %v2988 = vpop.f32.mrf.mxu0
  %v2989 = vadd.f32 0.0, %v2988
  %2990 = vmatmul.bf16.gmra.mxu0 %v1149
  %v2991 = vpop.f32.mrf.mxu0
  %v2992 = vadd.f32 0.0, %v2991
  %v2993 = vpop.f32.mrf.mxu0
  %v2994 = vadd.f32 0.0, %v2993
  %2995 = vmatmul.bf16.gmra.mxu0 %v1152
  %v2996 = vpop.f32.mrf.mxu0
  %v2997 = vadd.f32 0.0, %v2996
  %v2998 = vpop.f32.mrf.mxu0
  %v2999 = vadd.f32 0.0, %v2998
  %3000 = vmatmul.bf16.gmra.mxu0 %v1155
  %v3001 = vpop.f32.mrf.mxu0
  %v3002 = vadd.f32 0.0, %v3001
  %v3003 = vpop.f32.mrf.mxu0
  %v3004 = vadd.f32 0.0, %v3003
  %3005 = vdwg.mxu0
  %v3006 = vadd.f32 %v2938, %v2987
  %v3007 = vadd.f32 %v2940, %v2989
  %v3008 = vadd.f32 %v2943, %v2992
  %v3009 = vadd.f32 %v2945, %v2994
  %v3010 = vadd.f32 %v2948, %v2997
  %v3011 = vadd.f32 %v2950, %v2999
  %v3012 = vadd.f32 %v2953, %v3002
  %v3013 = vadd.f32 %v2955, %v3004
  %3014 = vrot.lane.b32.xlu0 %v2851, 1
  %v3015 = vpop.permute.xlu0 %3014
  %3016 = vrot.lane.b32.xlu0 %v2852, 1
  %v3017 = vpop.permute.xlu0 %3016
  %3018 = vrot.lane.b32.xlu0 %v2853, 1
  %v3019 = vpop.permute.xlu0 %3018
  %3020 = vrot.lane.b32.xlu0 %v2854, 1
  %v3021 = vpop.permute.xlu0 %3020
  %3022 = vrot.lane.b32.xlu0 %v2855, 1
  %v3023 = vpop.permute.xlu0 %3022
  %3024 = vrot.lane.b32.xlu0 %v2856, 1
  %v3025 = vpop.permute.xlu0 %3024
  %3026 = vrot.lane.b32.xlu0 %v2857, 1
  %v3027 = vpop.permute.xlu0 %3026
  %3028 = vrot.lane.b32.xlu0 %v2858, 1
  %v3029 = vpop.permute.xlu0 %3028
  %v3030 = vpack.c.bf16 %v3017, %v3015
  %v3031 = vpack.c.bf16 %v3021, %v3019
  %v3032 = vpack.c.bf16 %v3025, %v3023
  %v3033 = vpack.c.bf16 %v3029, %v3027
  %3034 = vmatpush.bf16.msra.mxu0 0
  %3035 = vmatpush.bf16.msra.mxu0 0
  %3036 = vmatpush.bf16.msra.mxu0 0
  %3037 = vmatpush.bf16.msra.mxu0 0
  %3038 = vmatpush.bf16.msra.mxu0 %v3033
  %3039 = vmatpush.bf16.msra.mxu0 %v3032
  %3040 = vmatpush.bf16.msra.mxu0 %v3031
  %3041 = vmatpush.bf16.msra.mxu0 %v3030
  %3042 = vmatmul.bf16.gmra.mxu0 %v1244
  %v3043 = vpop.f32.mrf.mxu0
  %v3044 = vadd.f32 0.0, %v3043
  %v3045 = vpop.f32.mrf.mxu0
  %v3046 = vadd.f32 0.0, %v3045
  %3047 = vmatmul.bf16.gmra.mxu0 %v1247
  %v3048 = vpop.f32.mrf.mxu0
  %v3049 = vadd.f32 0.0, %v3048
  %v3050 = vpop.f32.mrf.mxu0
  %v3051 = vadd.f32 0.0, %v3050
  %3052 = vmatmul.bf16.gmra.mxu0 %v1250
  %v3053 = vpop.f32.mrf.mxu0
  %v3054 = vadd.f32 0.0, %v3053
  %v3055 = vpop.f32.mrf.mxu0
  %v3056 = vadd.f32 0.0, %v3055
  %3057 = vmatmul.bf16.gmra.mxu0 %v1253
  %v3058 = vpop.f32.mrf.mxu0
  %v3059 = vadd.f32 0.0, %v3058
  %v3060 = vpop.f32.mrf.mxu0
  %v3061 = vadd.f32 0.0, %v3060
  %3062 = vdwg.mxu0
  %v3063 = vadd.f32 %v3006, %v3044
  %v3064 = vadd.f32 %v3007, %v3046
  %v3065 = vadd.f32 %v3008, %v3049
  %v3066 = vadd.f32 %v3009, %v3051
  %v3067 = vadd.f32 %v3010, %v3054
  %v3068 = vadd.f32 %v3011, %v3056
  %v3069 = vadd.f32 %v3012, %v3059
  %v3070 = vadd.f32 %v3013, %v3061
  %v3071 = vpack.c.bf16 %v2852, %v2851
  %v3072 = vpack.c.bf16 %v2854, %v2853
  %v3073 = vpack.c.bf16 %v2856, %v2855
  %v3074 = vpack.c.bf16 %v2858, %v2857
  %3075 = vmatpush.bf16.msra.mxu0 0
  %3076 = vmatpush.bf16.msra.mxu0 0
  %3077 = vmatpush.bf16.msra.mxu0 0
  %3078 = vmatpush.bf16.msra.mxu0 0
  %3079 = vmatpush.bf16.msra.mxu0 %v3074
  %3080 = vmatpush.bf16.msra.mxu0 %v3073
  %3081 = vmatpush.bf16.msra.mxu0 %v3072
  %3082 = vmatpush.bf16.msra.mxu0 %v3071
  %3083 = vmatmul.bf16.gmra.mxu0 %v1326
  %v3084 = vpop.f32.mrf.mxu0
  %v3085 = vadd.f32 0.0, %v3084
  %v3086 = vpop.f32.mrf.mxu0
  %v3087 = vadd.f32 0.0, %v3086
  %3088 = vmatmul.bf16.gmra.mxu0 %v1329
  %v3089 = vpop.f32.mrf.mxu0
  %v3090 = vadd.f32 0.0, %v3089
  %v3091 = vpop.f32.mrf.mxu0
  %v3092 = vadd.f32 0.0, %v3091
  %3093 = vmatmul.bf16.gmra.mxu0 %v1332
  %v3094 = vpop.f32.mrf.mxu0
  %v3095 = vadd.f32 0.0, %v3094
  %v3096 = vpop.f32.mrf.mxu0
  %v3097 = vadd.f32 0.0, %v3096
  %3098 = vmatmul.bf16.gmra.mxu0 %v1335
  %v3099 = vpop.f32.mrf.mxu0
  %v3100 = vadd.f32 0.0, %v3099
  %v3101 = vpop.f32.mrf.mxu0
  %v3102 = vadd.f32 0.0, %v3101
  %3103 = vdwg.mxu0
  %v3104 = vadd.f32 %v3063, %v3085
  %v3105 = vadd.f32 %v3064, %v3087
  %v3106 = vadd.f32 %v3065, %v3090
  %v3107 = vadd.f32 %v3066, %v3092
  %v3108 = vadd.f32 %v3067, %v3095
  %v3109 = vadd.f32 %v3068, %v3097
  %v3110 = vadd.f32 %v3069, %v3100
  %v3111 = vadd.f32 %v3070, %v3102
  %3112 = vrot.lane.b32.xlu0 %v2851, 127
  %v3113 = vpop.permute.xlu0 %3112
  %3114 = vrot.lane.b32.xlu0 %v2852, 127
  %v3115 = vpop.permute.xlu0 %3114
  %3116 = vrot.lane.b32.xlu0 %v2853, 127
  %v3117 = vpop.permute.xlu0 %3116
  %3118 = vrot.lane.b32.xlu0 %v2854, 127
  %v3119 = vpop.permute.xlu0 %3118
  %3120 = vrot.lane.b32.xlu0 %v2855, 127
  %v3121 = vpop.permute.xlu0 %3120
  %3122 = vrot.lane.b32.xlu0 %v2856, 127
  %v3123 = vpop.permute.xlu0 %3122
  %3124 = vrot.lane.b32.xlu0 %v2857, 127
  %v3125 = vpop.permute.xlu0 %3124
  %3126 = vrot.lane.b32.xlu0 %v2858, 127
  %v3127 = vpop.permute.xlu0 %3126
  %v3128 = vpack.c.bf16 %v3115, %v3113
  %v3129 = vpack.c.bf16 %v3119, %v3117
  %v3130 = vpack.c.bf16 %v3123, %v3121
  %v3131 = vpack.c.bf16 %v3127, %v3125
  %3132 = vmatpush.bf16.msra.mxu0 0
  %3133 = vmatpush.bf16.msra.mxu0 0
  %3134 = vmatpush.bf16.msra.mxu0 0
  %3135 = vmatpush.bf16.msra.mxu0 0
  %3136 = vmatpush.bf16.msra.mxu0 %v3131
  %3137 = vmatpush.bf16.msra.mxu0 %v3130
  %3138 = vmatpush.bf16.msra.mxu0 %v3129
  %3139 = vmatpush.bf16.msra.mxu0 %v3128
  %3140 = vmatmul.bf16.gmra.mxu0 %v1424
  %v3141 = vpop.f32.mrf.mxu0
  %v3142 = vadd.f32 0.0, %v3141
  %v3143 = vpop.f32.mrf.mxu0
  %v3144 = vadd.f32 0.0, %v3143
  %3145 = vmatmul.bf16.gmra.mxu0 %v1427
  %v3146 = vpop.f32.mrf.mxu0
  %v3147 = vadd.f32 0.0, %v3146
  %v3148 = vpop.f32.mrf.mxu0
  %v3149 = vadd.f32 0.0, %v3148
  %3150 = vmatmul.bf16.gmra.mxu0 %v1430
  %v3151 = vpop.f32.mrf.mxu0
  %v3152 = vadd.f32 0.0, %v3151
  %v3153 = vpop.f32.mrf.mxu0
  %v3154 = vadd.f32 0.0, %v3153
  %3155 = vmatmul.bf16.gmra.mxu0 %v1433
  %v3156 = vpop.f32.mrf.mxu0
  %v3157 = vadd.f32 0.0, %v3156
  %v3158 = vpop.f32.mrf.mxu0
  %v3159 = vadd.f32 0.0, %v3158
  %3160 = vdwg.mxu0
  %v3161 = vadd.f32 %v3104, %v3142
  %v3162 = vadd.f32 %v3105, %v3144
  %v3163 = vadd.f32 %v3106, %v3147
  %v3164 = vadd.f32 %v3107, %v3149
  %v3165 = vadd.f32 %v3108, %v3152
  %v3166 = vadd.f32 %v3109, %v3154
  %v3167 = vadd.f32 %v3110, %v3157
  %v3168 = vadd.f32 %v3111, %v3159
  %3169 = vrot.lane.b32.xlu0 %v2851, 118
  %v3170 = vpop.permute.xlu0 %3169
  %3171 = vrot.lane.b32.xlu0 %v2852, 118
  %v3172 = vpop.permute.xlu0 %3171
  %3173 = vrot.lane.b32.xlu0 %v2853, 118
  %v3174 = vpop.permute.xlu0 %3173
  %3175 = vrot.lane.b32.xlu0 %v2854, 118
  %v3176 = vpop.permute.xlu0 %3175
  %3177 = vrot.lane.b32.xlu0 %v2855, 118
  %v3178 = vpop.permute.xlu0 %3177
  %3179 = vrot.lane.b32.xlu0 %v2856, 118
  %v3180 = vpop.permute.xlu0 %3179
  %3181 = vrot.lane.b32.xlu0 %v2857, 118
  %v3182 = vpop.permute.xlu0 %3181
  %3183 = vrot.lane.b32.xlu0 %v2858, 118
  %v3184 = vpop.permute.xlu0 %3183
  %v3185 = vpack.c.bf16 %v3172, %v3170
  %v3186 = vpack.c.bf16 %v3176, %v3174
  %v3187 = vpack.c.bf16 %v3180, %v3178
  %v3188 = vpack.c.bf16 %v3184, %v3182
  %3189 = vmatpush.bf16.msra.mxu0 0
  %3190 = vmatpush.bf16.msra.mxu0 0
  %3191 = vmatpush.bf16.msra.mxu0 0
  %3192 = vmatpush.bf16.msra.mxu0 0
  %3193 = vmatpush.bf16.msra.mxu0 %v3188
  %3194 = vmatpush.bf16.msra.mxu0 %v3187
  %3195 = vmatpush.bf16.msra.mxu0 %v3186
  %3196 = vmatpush.bf16.msra.mxu0 %v3185
  %3197 = vmatmul.bf16.gmra.mxu0 %v1522
  %v3198 = vpop.f32.mrf.mxu0
  %v3199 = vadd.f32 0.0, %v3198
  %v3200 = vpop.f32.mrf.mxu0
  %v3201 = vadd.f32 0.0, %v3200
  %3202 = vmatmul.bf16.gmra.mxu0 %v1525
  %v3203 = vpop.f32.mrf.mxu0
  %v3204 = vadd.f32 0.0, %v3203
  %v3205 = vpop.f32.mrf.mxu0
  %v3206 = vadd.f32 0.0, %v3205
  %3207 = vmatmul.bf16.gmra.mxu0 %v1528
  %v3208 = vpop.f32.mrf.mxu0
  %v3209 = vadd.f32 0.0, %v3208
  %v3210 = vpop.f32.mrf.mxu0
  %v3211 = vadd.f32 0.0, %v3210
  %3212 = vmatmul.bf16.gmra.mxu0 %v1531
  %v3213 = vpop.f32.mrf.mxu0
  %v3214 = vadd.f32 0.0, %v3213
  %v3215 = vpop.f32.mrf.mxu0
  %v3216 = vadd.f32 0.0, %v3215
  %3217 = vdwg.mxu0
  %v3218 = vadd.f32 %v3161, %v3199
  %v3219 = vadd.f32 %v3162, %v3201
  %v3220 = vadd.f32 %v3163, %v3204
  %v3221 = vadd.f32 %v3164, %v3206
  %v3222 = vadd.f32 %v3165, %v3209
  %v3223 = vadd.f32 %v3166, %v3211
  %v3224 = vadd.f32 %v3167, %v3214
  %v3225 = vadd.f32 %v3168, %v3216
  %3226 = vrot.lane.b32.xlu0 %v2851, 117
  %v3227 = vpop.permute.xlu0 %3226
  %3228 = vrot.lane.b32.xlu0 %v2852, 117
  %v3229 = vpop.permute.xlu0 %3228
  %3230 = vrot.lane.b32.xlu0 %v2853, 117
  %v3231 = vpop.permute.xlu0 %3230
  %3232 = vrot.lane.b32.xlu0 %v2854, 117
  %v3233 = vpop.permute.xlu0 %3232
  %3234 = vrot.lane.b32.xlu0 %v2855, 117
  %v3235 = vpop.permute.xlu0 %3234
  %3236 = vrot.lane.b32.xlu0 %v2856, 117
  %v3237 = vpop.permute.xlu0 %3236
  %3238 = vrot.lane.b32.xlu0 %v2857, 117
  %v3239 = vpop.permute.xlu0 %3238
  %3240 = vrot.lane.b32.xlu0 %v2858, 117
  %v3241 = vpop.permute.xlu0 %3240
  %v3242 = vpack.c.bf16 %v3229, %v3227
  %v3243 = vpack.c.bf16 %v3233, %v3231
  %v3244 = vpack.c.bf16 %v3237, %v3235
  %v3245 = vpack.c.bf16 %v3241, %v3239
  %3246 = vmatpush.bf16.msra.mxu0 0
  %3247 = vmatpush.bf16.msra.mxu0 0
  %3248 = vmatpush.bf16.msra.mxu0 0
  %3249 = vmatpush.bf16.msra.mxu0 0
  %3250 = vmatpush.bf16.msra.mxu0 %v3245
  %3251 = vmatpush.bf16.msra.mxu0 %v3244
  %3252 = vmatpush.bf16.msra.mxu0 %v3243
  %3253 = vmatpush.bf16.msra.mxu0 %v3242
  %3254 = vmatmul.bf16.gmra.mxu0 %v1620
  %v3255 = vpop.f32.mrf.mxu0
  %v3256 = vadd.f32 0.0, %v3255
  %v3257 = vpop.f32.mrf.mxu0
  %v3258 = vadd.f32 0.0, %v3257
  %3259 = vmatmul.bf16.gmra.mxu0 %v1623
  %v3260 = vpop.f32.mrf.mxu0
  %v3261 = vadd.f32 0.0, %v3260
  %v3262 = vpop.f32.mrf.mxu0
  %v3263 = vadd.f32 0.0, %v3262
  %3264 = vmatmul.bf16.gmra.mxu0 %v1626
  %v3265 = vpop.f32.mrf.mxu0
  %v3266 = vadd.f32 0.0, %v3265
  %v3267 = vpop.f32.mrf.mxu0
  %v3268 = vadd.f32 0.0, %v3267
  %3269 = vmatmul.bf16.gmra.mxu0 %v1629
  %v3270 = vpop.f32.mrf.mxu0
  %v3271 = vadd.f32 0.0, %v3270
  %v3272 = vpop.f32.mrf.mxu0
  %v3273 = vadd.f32 0.0, %v3272
  %3274 = vdwg.mxu0
  %v3275 = vadd.f32 %v3218, %v3256
  %v3276 = vadd.f32 %v3219, %v3258
  %v3277 = vadd.f32 %v3220, %v3261
  %v3278 = vadd.f32 %v3221, %v3263
  %v3279 = vadd.f32 %v3222, %v3266
  %v3280 = vadd.f32 %v3223, %v3268
  %v3281 = vadd.f32 %v3224, %v3271
  %v3282 = vadd.f32 %v3225, %v3273
  %3283 = vrot.lane.b32.xlu0 %v2851, 116
  %v3284 = vpop.permute.xlu0 %3283
  %3285 = vrot.lane.b32.xlu0 %v2852, 116
  %v3286 = vpop.permute.xlu0 %3285
  %3287 = vrot.lane.b32.xlu0 %v2853, 116
  %v3288 = vpop.permute.xlu0 %3287
  %3289 = vrot.lane.b32.xlu0 %v2854, 116
  %v3290 = vpop.permute.xlu0 %3289
  %3291 = vrot.lane.b32.xlu0 %v2855, 116
  %v3292 = vpop.permute.xlu0 %3291
  %3293 = vrot.lane.b32.xlu0 %v2856, 116
  %v3294 = vpop.permute.xlu0 %3293
  %3295 = vrot.lane.b32.xlu0 %v2857, 116
  %v3296 = vpop.permute.xlu0 %3295
  %3297 = vrot.lane.b32.xlu0 %v2858, 116
  %v3298 = vpop.permute.xlu0 %3297
  %v3299 = vpack.c.bf16 %v3286, %v3284
  %v3300 = vpack.c.bf16 %v3290, %v3288
  %v3301 = vpack.c.bf16 %v3294, %v3292
  %v3302 = vpack.c.bf16 %v3298, %v3296
  %3303 = vmatpush.bf16.msra.mxu0 0
  %3304 = vmatpush.bf16.msra.mxu0 0
  %3305 = vmatpush.bf16.msra.mxu0 0
  %3306 = vmatpush.bf16.msra.mxu0 0
  %3307 = vmatpush.bf16.msra.mxu0 %v3302
  %3308 = vmatpush.bf16.msra.mxu0 %v3301
  %3309 = vmatpush.bf16.msra.mxu0 %v3300
  %3310 = vmatpush.bf16.msra.mxu0 %v3299
  %3311 = vmatmul.bf16.gmra.mxu0 %v1718
  %v3312 = vpop.f32.mrf.mxu0
  %v3313 = vadd.f32 0.0, %v3312
  %v3314 = vpop.f32.mrf.mxu0
  %v3315 = vadd.f32 0.0, %v3314
  %3316 = vmatmul.bf16.gmra.mxu0 %v1721
  %v3317 = vpop.f32.mrf.mxu0
  %v3318 = vadd.f32 0.0, %v3317
  %v3319 = vpop.f32.mrf.mxu0
  %v3320 = vadd.f32 0.0, %v3319
  %3321 = vmatmul.bf16.gmra.mxu0 %v1724
  %v3322 = vpop.f32.mrf.mxu0
  %v3323 = vadd.f32 0.0, %v3322
  %v3324 = vpop.f32.mrf.mxu0
  %v3325 = vadd.f32 0.0, %v3324
  %3326 = vmatmul.bf16.gmra.mxu0 %v1727
  %v3327 = vpop.f32.mrf.mxu0
  %v3328 = vadd.f32 0.0, %v3327
  %v3329 = vpop.f32.mrf.mxu0
  %v3330 = vadd.f32 0.0, %v3329
  %3331 = vdwg.mxu0
  %v3332 = vadd.f32 %v3275, %v3313
  %v3333 = vadd.f32 %v3276, %v3315
  %v3334 = vadd.f32 %v3277, %v3318
  %v3335 = vadd.f32 %v3278, %v3320
  %v3336 = vadd.f32 %v3279, %v3323
  %v3337 = vadd.f32 %v3280, %v3325
  %v3338 = vadd.f32 %v3281, %v3328
  %v3339 = vadd.f32 %v3282, %v3330
  %v3340 = vadd.f32 %v3332, %v1777
  %v3341 = vadd.f32 %v3333, %v1782
  %v3342 = vadd.f32 %v3334, %v1787
  %v3343 = vadd.f32 %v3335, %v1792
  %v3344 = vadd.f32 %v3336, %v1797
  %v3345 = vadd.f32 %v3337, %v1802
  %v3346 = vadd.f32 %v3338, %v1807
  %v3347 = vadd.f32 %v3339, %v1812
  %v3348 = vmax.f32 %v3340, 0.0
  %v3349 = vmax.f32 %v3341, 0.0
  %v3350 = vmax.f32 %v3342, 0.0
  %v3351 = vmax.f32 %v3343, 0.0
  %v3352 = vmax.f32 %v3344, 0.0
  %v3353 = vmax.f32 %v3345, 0.0
  %v3354 = vmax.f32 %v3346, 0.0
  %v3355 = vmax.f32 %v3347, 0.0
  %v3356 = vmul.f32 %v3348, %v906
  %v3357 = vmul.f32 %v3349, %v906
  %v3358 = vmul.f32 %v3350, %v906
  %v3359 = vmul.f32 %v3351, %v906
  %v3360 = vmul.f32 %v3352, %v906
  %v3361 = vmul.f32 %v3353, %v906
  %v3362 = vmul.f32 %v3354, %v906
  %v3363 = vmul.f32 %v3355, %v906
  %v3364 = vld [vmem:[%s8] sm:$0x7]
  %v3365 = vpack.c.bf16 %v3357, %v3356
  %v3366 = vpack.c.bf16 %v3359, %v3358
  %v3367 = vpack.c.bf16 %v3361, %v3360
  %v3368 = vpack.c.bf16 %v3363, %v3362
  %v3369 = vld [vmem:[%s9] sm:$0x3f]
  %3371 = vset.pattern.permute.xlu0 0
  %3372 = vperm.xlu0 %3371, %v3369
  %v3373 = vpop.permute.xlu0 %3372
  %v3376 = vsel %vm1937, %v3364, 0
  %3378 = vmatpush.bf16.msra.mxu0 0
  %3379 = vmatpush.bf16.msra.mxu0 0
  %3380 = vmatpush.bf16.msra.mxu0 %v2312
  %3381 = vmatpush.bf16.msra.mxu0 %v2277
  %3382 = vmatpush.bf16.msra.mxu0 %v3368
  %3383 = vmatpush.bf16.msra.mxu0 %v3367
  %3384 = vmatpush.bf16.msra.mxu0 %v3366
  %3385 = vmatpush.bf16.msra.mxu0 %v3365
  %3386 = vmatmul.bf16.gmra.mxu0 %v3376
  %v3387 = vpop.f32.mrf.mxu0
  %v3388 = vadd.f32 %v3373, %v3387
  %v3389 = vpop.f32.mrf.mxu0
  %3390 = vdwg.mxu0
  %v3391 = vmax.f32 %v3388, 0.0
  %v3392 = vmul.f32 %v3391, %v906
  %v3393 = vpack.c.bf16 %v3392, %v3392
  %v3394 = vld [vmem:[%s10] sm:$0xff]
  %v3395 = vld [vmem:[%s10 + $0x8] sm:$0xff]
  %v3396 = vld [vmem:[%s10 + $0x10] sm:$0xff]
  %v3397 = vld [vmem:[%s10 + $0x18] sm:$0xff]
  %v3398 = vld [vmem:[%s10 + $0x20] sm:$0xff]
  %v3399 = vld [vmem:[%s10 + $0x28] sm:$0xff]
  %v3400 = vld [vmem:[%s10 + $0x30] sm:$0xff]
  %v3401 = vld [vmem:[%s10 + $0x38] sm:$0xff]
  %v3402 = vld [vmem:[%s10 + $0x40] sm:$0xff]
  %v3403 = vld [vmem:[%s10 + $0x48] sm:$0xff]
  %v3404 = vld [vmem:[%s10 + $0x50] sm:$0xff]
  %v3405 = vld [vmem:[%s10 + $0x58] sm:$0xff]
  %v3406 = vld [vmem:[%s10 + $0x60] sm:$0xff]
  %v3407 = vld [vmem:[%s10 + $0x68] sm:$0xff]
  %v3408 = vld [vmem:[%s10 + $0x70] sm:$0xff]
  %v3409 = vld [vmem:[%s10 + $0x78] sm:$0xff]
  %v3410 = vld [vmem:[%s11] sm:$0x3]
  %v3412 = vperm.slane %v3410, 0
  %v3413 = vperm.slane %v3410, 1
  %v3432 = vunpack.c.l.b16 %v3394
  %v3433 = vunpack.c.h.b16 %v3394
  %v3434 = vunpack.c.l.b16 %v3395
  %v3435 = vunpack.c.h.b16 %v3395
  %v3436 = vunpack.c.l.b16 %v3396
  %v3437 = vunpack.c.h.b16 %v3396
  %v3438 = vunpack.c.l.b16 %v3397
  %v3439 = vunpack.c.h.b16 %v3397
  %v3440 = vunpack.c.l.b16 %v3398
  %v3441 = vunpack.c.h.b16 %v3398
  %v3442 = vunpack.c.l.b16 %v3399
  %v3443 = vunpack.c.h.b16 %v3399
  %v3444 = vunpack.c.l.b16 %v3400
  %v3445 = vunpack.c.h.b16 %v3400
  %v3446 = vunpack.c.l.b16 %v3401
  %v3447 = vunpack.c.h.b16 %v3401
  %v3448 = vunpack.c.l.b16 %v3402
  %v3449 = vunpack.c.h.b16 %v3402
  %v3450 = vunpack.c.l.b16 %v3403
  %v3451 = vunpack.c.h.b16 %v3403
  %v3452 = vunpack.c.l.b16 %v3404
  %v3453 = vunpack.c.h.b16 %v3404
  %v3454 = vunpack.c.l.b16 %v3405
  %v3455 = vunpack.c.h.b16 %v3405
  %v3456 = vunpack.c.l.b16 %v3406
  %v3457 = vunpack.c.h.b16 %v3406
  %v3458 = vunpack.c.l.b16 %v3407
  %v3459 = vunpack.c.h.b16 %v3407
  %v3460 = vunpack.c.l.b16 %v3408
  %v3461 = vunpack.c.h.b16 %v3408
  %v3462 = vunpack.c.l.b16 %v3409
  %v3463 = vunpack.c.h.b16 %v3409
  %v3464 = vpack.c.b16 %v3434, %v3432
  %v3465 = vpack.c.b16 %v3435, %v3433
  %v3466 = vpack.c.b16 %v3438, %v3436
  %v3467 = vpack.c.b16 %v3439, %v3437
  %v3468 = vpack.c.b16 %v3442, %v3440
  %v3469 = vpack.c.b16 %v3443, %v3441
  %v3470 = vpack.c.b16 %v3446, %v3444
  %v3471 = vpack.c.b16 %v3447, %v3445
  %v3472 = vpack.c.b16 %v3450, %v3448
  %v3473 = vpack.c.b16 %v3451, %v3449
  %v3474 = vpack.c.b16 %v3454, %v3452
  %v3475 = vpack.c.b16 %v3455, %v3453
  %v3476 = vpack.c.b16 %v3458, %v3456
  %v3477 = vpack.c.b16 %v3459, %v3457
  %v3478 = vpack.c.b16 %v3462, %v3460
  %v3479 = vpack.c.b16 %v3463, %v3461
  %3496 = vmatpush.bf16.msra.mxu0 %v3478
  %3497 = vmatpush.bf16.msra.mxu0 %v3476
  %3498 = vmatpush.bf16.msra.mxu0 %v3474
  %3499 = vmatpush.bf16.msra.mxu0 %v3472
  %3500 = vmatpush.bf16.msra.mxu0 %v3470
  %3501 = vmatpush.bf16.msra.mxu0 %v3468
  %3502 = vmatpush.bf16.msra.mxu0 %v3466
  %3503 = vmatpush.bf16.msra.mxu0 %v3464
  %3504 = vmatmul.bf16.gmra.mxu0 %v3393
  %v3505 = vpop.f32.mrf.mxu0
  %v3506 = vadd.f32 %v3412, %v3505
  %v3507 = vpop.f32.mrf.mxu0
  %3508 = vdwg.mxu0
  %3509 = vmatpush.bf16.msra.mxu0 %v3479
  %3510 = vmatpush.bf16.msra.mxu0 %v3477
  %3511 = vmatpush.bf16.msra.mxu0 %v3475
  %3512 = vmatpush.bf16.msra.mxu0 %v3473
  %3513 = vmatpush.bf16.msra.mxu0 %v3471
  %3514 = vmatpush.bf16.msra.mxu0 %v3469
  %3515 = vmatpush.bf16.msra.mxu0 %v3467
  %3516 = vmatpush.bf16.msra.mxu0 %v3465
  %3517 = vmatmul.bf16.gmra.mxu0 %v3393
  %v3518 = vpop.f32.mrf.mxu0
  %v3519 = vadd.f32 %v3413, %v3518
  %v3520 = vpop.f32.mrf.mxu0
  %3521 = vdwg.mxu0
  %v3522 = vmax.f32 %v3506, 0.0
  %v3523 = vmax.f32 %v3519, 0.0
  %v3524 = vpack.c.bf16 %v3522, %v3522
  %v3525 = vpack.c.bf16 %v3523, %v3523
  %v3526 = vld [vmem:[%s12] sm:$0xf]
  %v3527 = vld [vmem:[%s12 + $0x4] sm:$0xf]
  %v3528 = vld [vmem:[%s12 + $0x8] sm:$0xf]
  %v3529 = vld [vmem:[%s12 + $0xc] sm:$0xf]
  %v3530 = vld [vmem:[%s12 + $0x10] sm:$0xf]
  %v3531 = vld [vmem:[%s12 + $0x14] sm:$0xf]
  %v3532 = vld [vmem:[%s12 + $0x18] sm:$0xf]
  %v3533 = vld [vmem:[%s12 + $0x1c] sm:$0xf]
  %v3534 = vld [vmem:[%s12 + $0x20] sm:$0xf]
  %v3535 = vld [vmem:[%s12 + $0x24] sm:$0xf]
  %v3536 = vld [vmem:[%s12 + $0x28] sm:$0xf]
  %v3537 = vld [vmem:[%s12 + $0x2c] sm:$0xf]
  %v3538 = vld [vmem:[%s12 + $0x30] sm:$0xf]
  %v3539 = vld [vmem:[%s12 + $0x34] sm:$0xf]
  %v3540 = vld [vmem:[%s12 + $0x38] sm:$0xf]
  %v3541 = vld [vmem:[%s12 + $0x3c] sm:$0xf]
  %v3542 = vld [vmem:[%s12 + $0x40] sm:$0xf]
  %v3543 = vld [vmem:[%s12 + $0x44] sm:$0xf]
  %v3544 = vld [vmem:[%s12 + $0x48] sm:$0xf]
  %v3545 = vld [vmem:[%s12 + $0x4c] sm:$0xf]
  %v3546 = vld [vmem:[%s12 + $0x50] sm:$0xf]
  %v3547 = vld [vmem:[%s12 + $0x54] sm:$0xf]
  %v3548 = vld [vmem:[%s12 + $0x58] sm:$0xf]
  %v3549 = vld [vmem:[%s12 + $0x5c] sm:$0xf]
  %v3550 = vld [vmem:[%s12 + $0x60] sm:$0xf]
  %v3551 = vld [vmem:[%s12 + $0x64] sm:$0xf]
  %v3552 = vld [vmem:[%s12 + $0x68] sm:$0xf]
  %v3553 = vld [vmem:[%s12 + $0x6c] sm:$0xf]
  %v3554 = vld [vmem:[%s12 + $0x70] sm:$0xf]
  %v3555 = vld [vmem:[%s12 + $0x74] sm:$0xf]
  %v3556 = vld [vmem:[%s12 + $0x78] sm:$0xf]
  %v3557 = vld [vmem:[%s12 + $0x7c] sm:$0xf]
  %v3558 = vld [vmem:[%s13] sm:$0x1]
  %v3560 = vperm.slane %v3558, 0
  %v3594 = vunpack.c.l.b16 %v3526
  %v3595 = vunpack.c.l.b16 %v3527
  %v3596 = vunpack.c.l.b16 %v3528
  %v3597 = vunpack.c.l.b16 %v3529
  %v3598 = vunpack.c.l.b16 %v3530
  %v3599 = vunpack.c.l.b16 %v3531
  %v3600 = vunpack.c.l.b16 %v3532
  %v3601 = vunpack.c.l.b16 %v3533
  %v3602 = vunpack.c.l.b16 %v3534
  %v3603 = vunpack.c.l.b16 %v3535
  %v3604 = vunpack.c.l.b16 %v3536
  %v3605 = vunpack.c.l.b16 %v3537
  %v3606 = vunpack.c.l.b16 %v3538
  %v3607 = vunpack.c.l.b16 %v3539
  %v3608 = vunpack.c.l.b16 %v3540
  %v3609 = vunpack.c.l.b16 %v3541
  %v3610 = vunpack.c.l.b16 %v3542
  %v3611 = vunpack.c.l.b16 %v3543
  %v3612 = vunpack.c.l.b16 %v3544
  %v3613 = vunpack.c.l.b16 %v3545
  %v3614 = vunpack.c.l.b16 %v3546
  %v3615 = vunpack.c.l.b16 %v3547
  %v3616 = vunpack.c.l.b16 %v3548
  %v3617 = vunpack.c.l.b16 %v3549
  %v3618 = vunpack.c.l.b16 %v3550
  %v3619 = vunpack.c.l.b16 %v3551
  %v3620 = vunpack.c.l.b16 %v3552
  %v3621 = vunpack.c.l.b16 %v3553
  %v3622 = vunpack.c.l.b16 %v3554
  %v3623 = vunpack.c.l.b16 %v3555
  %v3624 = vunpack.c.l.b16 %v3556
  %v3625 = vunpack.c.l.b16 %v3557
  %v3626 = vpack.c.b16 %v3595, %v3594
  %v3627 = vpack.c.b16 %v3597, %v3596
  %v3628 = vpack.c.b16 %v3599, %v3598
  %v3629 = vpack.c.b16 %v3601, %v3600
  %v3630 = vpack.c.b16 %v3603, %v3602
  %v3631 = vpack.c.b16 %v3605, %v3604
  %v3632 = vpack.c.b16 %v3607, %v3606
  %v3633 = vpack.c.b16 %v3609, %v3608
  %v3634 = vpack.c.b16 %v3611, %v3610
  %v3635 = vpack.c.b16 %v3613, %v3612
  %v3636 = vpack.c.b16 %v3615, %v3614
  %v3637 = vpack.c.b16 %v3617, %v3616
  %v3638 = vpack.c.b16 %v3619, %v3618
  %v3639 = vpack.c.b16 %v3621, %v3620
  %v3640 = vpack.c.b16 %v3623, %v3622
  %v3641 = vpack.c.b16 %v3625, %v3624
  %3658 = vmatpush.bf16.msra.mxu0 %v3633
  %3659 = vmatpush.bf16.msra.mxu0 %v3632
  %3660 = vmatpush.bf16.msra.mxu0 %v3631
  %3661 = vmatpush.bf16.msra.mxu0 %v3630
  %3662 = vmatpush.bf16.msra.mxu0 %v3629
  %3663 = vmatpush.bf16.msra.mxu0 %v3628
  %3664 = vmatpush.bf16.msra.mxu0 %v3627
  %3665 = vmatpush.bf16.msra.mxu0 %v3626
  %3666 = vmatmul.bf16.gmra.mxu0 %v3524
  %v3667 = vpop.f32.mrf.mxu0
  %v3668 = vadd.f32 %v3560, %v3667
  %v3669 = vpop.f32.mrf.mxu0
  %3670 = vdwg.mxu0
  %3671 = vmatpush.bf16.msra.mxu0 %v3641
  %3672 = vmatpush.bf16.msra.mxu0 %v3640
  %3673 = vmatpush.bf16.msra.mxu0 %v3639
  %3674 = vmatpush.bf16.msra.mxu0 %v3638
  %3675 = vmatpush.bf16.msra.mxu0 %v3637
  %3676 = vmatpush.bf16.msra.mxu0 %v3636
  %3677 = vmatpush.bf16.msra.mxu0 %v3635
  %3678 = vmatpush.bf16.msra.mxu0 %v3634
  %3679 = vmatmul.bf16.gmra.mxu0 %v3525
  %v3680 = vpop.f32.mrf.mxu0
  %v3681 = vadd.f32 %v3668, %v3680
  %v3682 = vpop.f32.mrf.mxu0
  %3683 = vdwg.mxu0
  %v3684 = vtanh.pop %v3681
  %v3685 = vld [vmem:[%s14] sm:$0xf]
  %v3686 = vld [vmem:[%s14 + $0x4] sm:$0xf]
  %v3687 = vld [vmem:[%s14 + $0x8] sm:$0xf]
  %v3688 = vld [vmem:[%s14 + $0xc] sm:$0xf]
  %v3689 = vld [vmem:[%s14 + $0x10] sm:$0xf]
  %v3690 = vld [vmem:[%s14 + $0x14] sm:$0xf]
  %v3691 = vld [vmem:[%s14 + $0x18] sm:$0xf]
  %v3692 = vld [vmem:[%s14 + $0x1c] sm:$0xf]
  %v3693 = vld [vmem:[%s14 + $0x20] sm:$0xf]
  %v3694 = vld [vmem:[%s14 + $0x24] sm:$0xf]
  %v3695 = vld [vmem:[%s14 + $0x28] sm:$0xf]
  %v3696 = vld [vmem:[%s14 + $0x2c] sm:$0xf]
  %v3697 = vld [vmem:[%s14 + $0x30] sm:$0xf]
  %v3698 = vld [vmem:[%s14 + $0x34] sm:$0xf]
  %v3699 = vld [vmem:[%s14 + $0x38] sm:$0xf]
  %v3700 = vld [vmem:[%s14 + $0x3c] sm:$0xf]
  %v3701 = vld [vmem:[%s15] sm:$0xf]
  %v3702 = vld [vmem:[%s15 + $0x4] sm:$0xf]
  %v3703 = vld [vmem:[%s15 + $0x8] sm:$0xf]
  %v3704 = vld [vmem:[%s15 + $0xc] sm:$0xf]
  %v3705 = vld [vmem:[%s15 + $0x10] sm:$0xf]
  %v3706 = vld [vmem:[%s15 + $0x14] sm:$0xf]
  %v3707 = vld [vmem:[%s15 + $0x18] sm:$0xf]
  %v3708 = vld [vmem:[%s15 + $0x1c] sm:$0xf]
  %v3709 = vld [vmem:[%s15 + $0x20] sm:$0xf]
  %v3710 = vld [vmem:[%s15 + $0x24] sm:$0xf]
  %v3711 = vld [vmem:[%s15 + $0x28] sm:$0xf]
  %v3712 = vld [vmem:[%s15 + $0x2c] sm:$0xf]
  %v3713 = vld [vmem:[%s15 + $0x30] sm:$0xf]
  %v3714 = vld [vmem:[%s15 + $0x34] sm:$0xf]
  %v3715 = vld [vmem:[%s15 + $0x38] sm:$0xf]
  %v3716 = vld [vmem:[%s15 + $0x3c] sm:$0xf]
  %v3718 = vrot.slane %v3393, 2
  %v3736 = vunpack.c.l.b16 %v3701
  %v3737 = vunpack.c.l.b16 %v3702
  %v3738 = vunpack.c.l.b16 %v3703
  %v3739 = vunpack.c.l.b16 %v3704
  %v3740 = vunpack.c.l.b16 %v3705
  %v3741 = vunpack.c.l.b16 %v3706
  %v3742 = vunpack.c.l.b16 %v3707
  %v3743 = vunpack.c.l.b16 %v3708
  %v3744 = vunpack.c.l.b16 %v3709
  %v3745 = vunpack.c.l.b16 %v3710
  %v3746 = vunpack.c.l.b16 %v3711
  %v3747 = vunpack.c.l.b16 %v3712
  %v3748 = vunpack.c.l.b16 %v3713
  %v3749 = vunpack.c.l.b16 %v3714
  %v3750 = vunpack.c.l.b16 %v3715
  %v3751 = vunpack.c.l.b16 %v3716
  %v3752 = vpack.c.b16 %v3737, %v3736
  %v3753 = vpack.c.b16 %v3739, %v3738
  %v3754 = vpack.c.b16 %v3741, %v3740
  %v3755 = vpack.c.b16 %v3743, %v3742
  %v3756 = vpack.c.b16 %v3745, %v3744
  %v3757 = vpack.c.b16 %v3747, %v3746
  %v3758 = vpack.c.b16 %v3749, %v3748
  %v3759 = vpack.c.b16 %v3751, %v3750
  %3768 = vmatpush.bf16.msra.mxu0 %v3759
  %3769 = vmatpush.bf16.msra.mxu0 %v3758
  %3770 = vmatpush.bf16.msra.mxu0 %v3757
  %3771 = vmatpush.bf16.msra.mxu0 %v3756
  %3772 = vmatpush.bf16.msra.mxu0 %v3755
  %3773 = vmatpush.bf16.msra.mxu0 %v3754
  %3774 = vmatpush.bf16.msra.mxu0 %v3753
  %3775 = vmatpush.bf16.msra.mxu0 %v3752
  %3776 = vmatmul.bf16.gmra.mxu0 %v3718
  %v3777 = vpop.f32.mrf.mxu0
  %v3778 = vadd.f32 0.0, %v3777
  %v3779 = vpop.f32.mrf.mxu0
  %3780 = vdwg.mxu0
  %v3781 = vrot.slane %v3393, 1
  %v3799 = vunpack.c.l.b16 %v3685
  %v3800 = vunpack.c.l.b16 %v3686
  %v3801 = vunpack.c.l.b16 %v3687
  %v3802 = vunpack.c.l.b16 %v3688
  %v3803 = vunpack.c.l.b16 %v3689
  %v3804 = vunpack.c.l.b16 %v3690
  %v3805 = vunpack.c.l.b16 %v3691
  %v3806 = vunpack.c.l.b16 %v3692
  %v3807 = vunpack.c.l.b16 %v3693
  %v3808 = vunpack.c.l.b16 %v3694
  %v3809 = vunpack.c.l.b16 %v3695
  %v3810 = vunpack.c.l.b16 %v3696
  %v3811 = vunpack.c.l.b16 %v3697
  %v3812 = vunpack.c.l.b16 %v3698
  %v3813 = vunpack.c.l.b16 %v3699
  %v3814 = vunpack.c.l.b16 %v3700
  %v3815 = vpack.c.b16 %v3800, %v3799
  %v3816 = vpack.c.b16 %v3802, %v3801
  %v3817 = vpack.c.b16 %v3804, %v3803
  %v3818 = vpack.c.b16 %v3806, %v3805
  %v3819 = vpack.c.b16 %v3808, %v3807
  %v3820 = vpack.c.b16 %v3810, %v3809
  %v3821 = vpack.c.b16 %v3812, %v3811
  %v3822 = vpack.c.b16 %v3814, %v3813
  %3831 = vmatpush.bf16.msra.mxu0 %v3822
  %3832 = vmatpush.bf16.msra.mxu0 %v3821
  %3833 = vmatpush.bf16.msra.mxu0 %v3820
  %3834 = vmatpush.bf16.msra.mxu0 %v3819
  %3835 = vmatpush.bf16.msra.mxu0 %v3818
  %3836 = vmatpush.bf16.msra.mxu0 %v3817
  %3837 = vmatpush.bf16.msra.mxu0 %v3816
  %3838 = vmatpush.bf16.msra.mxu0 %v3815
  %3839 = vmatmul.bf16.gmra.mxu0 %v3781
  %v3840 = vpop.f32.mrf.mxu0
  %v3841 = vadd.f32 %v3778, %v3840
  %v3842 = vpop.f32.mrf.mxu0
  %3843 = vdwg.mxu0
  %v3844 = vld [vmem:[%s16] sm:$0x1]
  %v3846 = vperm.slane %v3844, 0
  %v3848 = vadd.f32 %v3841, %v3846
  %v3849 = vlaneseq
  %v3850 = vand.u32 %v3849, 127
  %vm3851 = vcmp.lt.s32.totalorder %v3850, 82
  %v3852 = vsel %vm3851, %v3848, -1e+30
  %vm3853 = vcmask 1041408
  %v3854 = vsel %vm3853, %v3852, -inf
  %3855 = vmax.xlane.f32.xlu0 %v3854
  %v3856 = vpop.xlane.xlu0 %3855
  %v3857 = vsub.f32 %v3852, %v3856
  %v3858 = vmul.f32 %v3857, 1.442695
  %v3859 = vpow.pop %v3858
  %v3860 = vsel %vm3853, %v3859, 0.0
  %3861 = vadd.xlane.f32.xlu0 %v3860
  %v3862 = vpop.xlane.xlu0 %3861
  %v3863 = vrcp.pop %v3862
  %v3864 = vmul.f32 %v3859, %v3863
  %vm3865 = vcmp.eq.s32.totalorder %v3850, 82
  %v3866 = vsel %vm3865, 1, 0
  %v3867 = vcvt.s32.f32 %v3866
  %3869 = vset.pattern.permute.xlu0 0
  %3870 = vperm.xlu0 %3869, %v3684
  %v3871 = vpop.permute.xlu0 %3870
  %v3873 = vmul.f32 %v3867, %v3871
  %v3874 = vadd.f32 %v3864, %v3873
  %3875 = vst [vmem:[%s17] sm:$0x3] %v3874
  // Predicated region
  $region70: #{gocnn_forward.1} parent=0 // pred_check
    _
  $region71: #{gocnn_forward.1} parent=0 // pred_check_branch
    %3877 = sbr.rel (0) target = $region73
  $region72: #{gocnn_forward.1} parent=0 // pred_region
    _
  $region73: #{gocnn_forward.1} parent=0 // pred_fallthru
    _
  // Predicated region
  $region74: #{gocnn_forward.1} parent=0 // pred_check
    _
  $region75: #{gocnn_forward.1} parent=0 // pred_check_branch
    %3879 = sbr.rel (0) target = $region77
  $region76: #{gocnn_forward.1} parent=0 // pred_region
    _
  $region77: #{gocnn_forward.1} parent=0 // pred_fallthru
    _

</llo_original>
